<compile_context>
chip_gen: v6e
topology: v6e:2x2x1
jax: 0.10.0
libtpu: 0.0.40
codegen_flags: <defaults>
</compile_context>

<pallas_src>
import numpy as np
import jax
import jax.numpy as jnp
from jax.experimental import pallas as pl
from jax.experimental.pallas import tpu as pltpu


def _round_up(x, m):
    return ((x + m - 1) // m) * m


# ---------------------------------------------------------------------------
# Trace/build-time parameter folding (numpy)
# ---------------------------------------------------------------------------

def _fold_1x1_3x3(w1, b1, w3, b3):
    """Fold (1x1 conv, b1) through (3x3 conv): wf[o, j, ky, kx] = sum_m w3[o,m,ky,kx]*[w1|b1][m,j]."""
    w1 = np.asarray(w1, np.float32)
    b1 = np.asarray(b1, np.float32)
    w3 = np.asarray(w3, np.float32)
    b3 = np.asarray(b3, np.float32)
    cm, cin = w1.shape[0], w1.shape[1]
    w1aug = np.concatenate([w1.reshape(cm, cin), b1[:, None]], axis=1)     # (Cm, Cin+1)
    wf = np.einsum('omyx,mj->ojyx', w3, w1aug)                             # (Cout, Cin+1, 3, 3)
    return wf, b3


def _level0_weights(wf, b3, cin, cout, cp):
    """(2, 8*cp, 128) bf16 weights for the host-prepped level (2-row x 4-col super-pixel layout).

    Tap A (row offset 0):    (rp, uu) -> (ky=rp, kx=uu), uu < 3.
    Tap B (row offset Wq):   (rp=0, uu) -> (ky=2, kx=uu), uu < 3.
    The 3x3 bias b3 and the next level's 'ones' column ride on the centre tap's ones row.
    """
    cin1 = cin + 1
    k = 8 * cp
    w = np.zeros((2, k, 128), np.float32)
    for rp in range(2):
        for uu in range(3):
            base = (rp * 4 + uu) * cp
            w[0, base:base + cin1, :cout] = wf[:, :, rp, uu].T
    for uu in range(3):
        base = uu * cp
        w[1, base:base + cin1, :cout] = wf[:, :, 2, uu].T
    ones_row = (1 * 4 + 1) * cp + cin          # centre tap (ky=1, kx=1), ones channel
    w[0, ones_row, :cout] += b3                # fold 3x3 bias (review #7)
    w[0, ones_row, cout] = 1.0                 # 'ones' column feeding the next level
    return jnp.asarray(w, jnp.bfloat16)


def _inner_level_weights(wf, b3, cin, cout):
    """(9, 128, 128) bf16 per-tap weights for an in-kernel (gather-by-matmul) level."""
    assert cin + 1 <= 128 and cout + 1 <= 128
    w = np.zeros((9, 128, 128), np.float32)
    for ky in range(3):
        for kx in range(3):
            w[ky * 3 + kx, :cin + 1, :cout] = wf[:, :, ky, kx].T
    w[4, cin, :cout] += b3                     # centre tap: 3x3 bias on the ones row
    w[4, cin, cout] = 1.0                      # 'ones' column for a potential next level
    return jnp.asarray(w, jnp.bfloat16)


def _selection_matrix(ho, wo, wq, src_h, src_w, src_wq):
    """0/1 gather matrix (9*ho*wq, src_h*src_wq) mapping the previous level's output slab
    to this level's 9 tap blocks.  Rows for conv zero-padding pixels / alignment-junk
    output columns are all zero (so the ones channel is 0 there too)."""
    m = ho * wq
    s = np.zeros((9 * m, src_h * src_wq), np.float32)
    for j in range(9):
        ky, kx = divmod(j, 3)
        for oy in range(ho):
            for ox in range(wo):
                h = 2 * oy + ky - 1
                w = 2 * ox + kx - 1
                if 0 <= h < src_h and 0 <= w < src_w:
                    s[j * m + oy * wq + ox, h * src_wq + w] = 1.0
    return jnp.asarray(s, jnp.bfloat16)


# ---------------------------------------------------------------------------
# Host-side layout for the first level only (the rest stays in VMEM)
# ---------------------------------------------------------------------------

def _build_level0_input(x_nhwc, cp, wq):
    """(B,H,W,Cin) -> (B, (Ho+1)*wq, 8*cp) bf16 '2-row x 4-col' super-pixel layout.

    Row (p, q) holds padded pixels (2p+rp, 2q+uu), rp in {0,1}, uu in {0..3}; the ones
    channel sits at index Cin of each cp-wide group (1 at real pixels, 0 at conv padding).
    """
    B, H, W, Cin = x_nhwc.shape
    Ho, Wo = H // 2, W // 2
    HP = Ho + 1
    pad_ch = np.zeros((cp - Cin,), np.float32)
    pad_ch[0] = 1.0
    xa = jnp.concatenate(
        [x_nhwc,
         jnp.broadcast_to(jnp.asarray(pad_ch, x_nhwc.dtype), (B, H, W, cp - Cin))],
        axis=-1)                                                        # (B,H,W,cp)
    xp = jnp.pad(xa, ((0, 0), (1, 1), (1, 1), (0, 0)))                  # (B,H+2,W+2,cp)
    xp = xp.reshape(B, HP, 2, W + 2, cp)
    lo = xp[:, :, :, 0:2 * Wo, :].reshape(B, HP, 2, Wo, 2, cp)          # cols 2q, 2q+1
    hi = xp[:, :, :, 2:2 * Wo + 2, :].reshape(B, HP, 2, Wo, 2, cp)      # cols 2q+2, 2q+3
    xs = jnp.concatenate([lo, hi], axis=4)                              # (B,HP,2,Wo,4,cp)
    xs = xs.transpose(0, 1, 3, 2, 4, 5)                                 # (B,HP,Wo,2,4,cp)
    xs = jnp.pad(xs, ((0, 0), (0, 0), (0, wq - Wo), (0, 0), (0, 0), (0, 0)))
    return xs.reshape(B, HP * wq, 8 * cp).astype(jnp.bfloat16)


# ---------------------------------------------------------------------------
# The fused Pallas kernel (all extern levels, one grid step per batch element)
# ---------------------------------------------------------------------------

def _make_neck_kernel(num_levels, m0_out, wq0, m_outs):
    n_sel = num_levels - 1

    def kernel(*refs):
        xs0_ref = refs[0]
        w0_ref = refs[1]
        s_refs = refs[2:2 + n_sel]
        w_refs = refs[2 + n_sel:2 + 2 * n_sel]
        o_refs = refs[2 + 2 * n_sel:2 + 2 * n_sel + num_levels]
        xs_scr = refs[2 + 2 * n_sel + num_levels:]

        # ---- level 0: folded (1x1 -> 3x3 s2 p1) conv as two aligned-tap matmuls.
        # Slice starts (0 and wq0) are static multiples of 16 -> no sublane realignment.
        acc = jnp.dot(xs0_ref[0:m0_out, :], w0_ref[0],
                      preferred_element_type=jnp.float32)
        acc = acc + jnp.dot(xs0_ref[wq0:wq0 + m0_out, :], w0_ref[1],
                            preferred_element_type=jnp.float32)
        y = acc.astype(jnp.bfloat16)
        o_refs[0][...] = y

        # ---- levels 1..: 2x2 regroup by exact 0/1 gather-matmul, then 9 tap matmuls.
        for lvl in range(1, num_levels):
            m = m_outs[lvl]
            xs_ref = xs_scr[lvl - 1]
            xs_ref[...] = jnp.dot(s_refs[lvl - 1][...], y,
                                  preferred_element_type=jnp.float32
                                  ).astype(jnp.bfloat16)
            acc = jnp.dot(xs_ref[0:m, :], w_refs[lvl - 1][0],
                          preferred_element_type=jnp.float32)
            for j in range(1, 9):
                acc = acc + jnp.dot(xs_ref[j * m:(j + 1) * m, :], w_refs[lvl - 1][j],
                                    preferred_element_type=jnp.float32)
            y = acc.astype(jnp.bfloat16)
            o_refs[lvl][...] = y

    return kernel


def _ssd_extern_fused(x2_nhwc, folded):
    """Run all extern levels in one pallas_call.  Returns ([(B, Mout_i, 128) bf16 slabs], dims)."""
    B, H, W, Cin = x2_nhwc.shape
    nlev = len(folded)
    assert folded[0][2] == Cin

    # Static per-level geometry.  Row stride padded to 16 (bf16 sublane pack).
    dims = []
    h, w = H, W
    for i in range(nlev):
        assert h % 2 == 0 and w % 2 == 0, "even spatial dims required for the stride-2 fold"
        ho, wo = h // 2, w // 2
        wq = _round_up(wo, 16)
        dims.append(dict(ho=ho, wo=wo, wq=wq, m_out=ho * wq))
        h, w = ho, wo

    cp0 = _round_up(Cin + 1, 16)             # K0 = 8*cp0 is then a multiple of 128
    k0 = 8 * cp0
    wq0 = dims[0]['wq']
    m0_out = dims[0]['m_out']
    m0_in = (dims[0]['ho'] + 1) * wq0

    xs0 = _build_level0_input(x2_nhwc, cp0, wq0)                 # (B, m0_in, k0) bf16

    wf0, b30 = folded[0][0], folded[0][1]
    w0 = _level0_weights(wf0, b30, folded[0][2], folded[0][3], cp0)

    s_mats, w_mats = [], []
    for i in range(1, nlev):
        wf, b3, cin, cout = folded[i]
        assert cin == folded[i - 1][3]
        s_mats.append(_selection_matrix(dims[i]['ho'], dims[i]['wo'], dims[i]['wq'],
                                        dims[i - 1]['ho'], dims[i - 1]['wo'],
                                        dims[i - 1]['wq']))
        w_mats.append(_inner_level_weights(wf, b3, cin, cout))

    m_outs = [d['m_out'] for d in dims]
    kernel = _make_neck_kernel(nlev, m0_out, wq0, m_outs)

    in_specs = [
        pl.BlockSpec((None, m0_in, k0), lambda b: (b, 0, 0)),
        pl.BlockSpec((2, k0, 128), lambda b: (0, 0, 0)),
    ]
    for s in s_mats:
        in_specs.append(pl.BlockSpec(s.shape, lambda b: (0, 0)))
    for wm in w_mats:
        in_specs.append(pl.BlockSpec(wm.shape, lambda b: (0, 0, 0)))

    out_shapes = tuple(jax.ShapeDtypeStruct((B, m, 128), jnp.bfloat16) for m in m_outs)
    out_specs = tuple(pl.BlockSpec((None, m, 128), lambda b: (b, 0, 0)) for m in m_outs)
    scratch = [pltpu.VMEM((9 * m, 128), jnp.bfloat16) for m in m_outs[1:]]

    outs = pl.pallas_call(
        kernel,
        out_shape=out_shapes,
        grid=(B,),
        in_specs=in_specs,
        out_specs=out_specs,
        scratch_shapes=scratch,
        compiler_params=pltpu.CompilerParams(dimension_semantics=("parallel",)),
    )(xs0, w0, *s_mats, *w_mats)

    if not isinstance(outs, (tuple, list)):
        outs = (outs,)
    return outs, dims


def _slab_to_nchw(slab, ho, wo, wq, cout, out_dtype=jnp.float32):
    B = slab.shape[0]
    y = slab.reshape(B, ho, wq, 128)[:, :, :wo, :cout]
    return jnp.transpose(y, (0, 3, 1, 2)).astype(out_dtype)


# ------------------------------ SSDNeck module --------------------------------

class SSDNeckPallas:
    """Pallas TPU implementation of SSDNeck.forward (normalize=None, no activation)."""

    def __init__(self, inplanes, outplanes, out_strides, extern_level,
                 extern_outplanes, key):
        self.inplanes = inplanes
        self.outplanes = outplanes
        self.out_strides = out_strides
        self.extern_level = extern_level

        # Mirror add_extras(): build the extern conv parameter list deterministically.
        layers = []
        in_channels = inplanes[-1]
        cfg = extern_outplanes
        flag = False
        for k, v in enumerate(cfg):
            if in_channels != 'S':
                ksize = (1, 3)[flag]
                if v == 'S':
                    out_c, stride, padding = cfg[k + 1], 2, 1
                else:
                    out_c, stride, padding = v, 1, 0
                key, kw, kb = jax.random.split(key, 3)
                fan_in = in_channels * ksize * ksize
                w = jax.random.normal(kw, (out_c, in_channels, ksize, ksize),
                                      jnp.float32) * (fan_in ** -0.5)
                bias = jax.random.normal(kb, (out_c,), jnp.float32) * 0.01
                layers.append(dict(ksize=ksize, stride=stride, padding=padding,
                                   w=w, b=bias))
                flag = not flag
            in_channels = v
        assert len(layers) == 2 * extern_level
        self.layers = layers

        # Fold each (1x1, s1, p0) -> (3x3, s2, p1) pair (valid for normalize=None).
        self.folded = []
        for lvl in range(extern_level):
            l1, l3 = layers[2 * lvl], layers[2 * lvl + 1]
            assert (l1['ksize'], l1['stride'], l1['padding']) == (1, 1, 0)
            assert (l3['ksize'], l3['stride'], l3['padding']) == (3, 2, 1)
            wf, b3 = _fold_1x1_3x3(l1['w'], l1['b'], l3['w'], l3['b'])
            cin = l1['w'].shape[1]
            cout = l3['w'].shape[0]
            assert cout < 128, "in-kernel chaining keeps all channels in one 128-lane slab"
            self.folded.append((wf, b3, cin, cout))

        self._forward = jax.jit(self._forward_impl)

    def _forward_impl(self, x0, x1, x2):
        features = [x0, x1, x2]
        x2_nhwc = jnp.transpose(x2, (0, 2, 3, 1))                # NCHW -> NHWC
        slabs, dims = _ssd_extern_fused(x2_nhwc, self.folded)
        for i, slab in enumerate(slabs):
            d = dims[i]
            cout = self.folded[i][3]
            features.append(_slab_to_nchw(slab, d['ho'], d['wo'], d['wq'], cout))
        return {'features': features,
                'strides': jnp.asarray(self.out_strides, dtype=jnp.int32)}

    def __call__(self, inputs):
        feats = inputs['features']
        return self._forward(feats[0], feats[1], feats[2])

    def get_outplanes(self):
        return self.outplanes

    def get_outstrides(self):
        return jnp.asarray(self.out_strides, dtype=jnp.int32)


# ---------------------------------- main ---------------------------------------

def _ref_conv_nchw(x_nchw, w_oihw, b, stride, padding):
    y = jax.lax.conv_general_dilated(
        x_nchw, w_oihw, window_strides=(stride, stride),
        padding=[(padding, padding), (padding, padding)],
        dimension_numbers=('NCHW', 'OIHW', 'NCHW'))
    return y + b.reshape(1, -1, 1, 1)


if __name__ == "__main__":
    key = jax.random.PRNGKey(0)
    k0, k1, k2, kparams = jax.random.split(key, 4)

    B = 2
    inplanes = [32, 64, 128]
    extern_outplanes = [32, 'S', 64, 32, 'S', 64]   # -> 4 extern convs, extern_level=2
    extern_level = 2
    out_strides = [8, 16, 32, 64, 128]
    outplanes = [32, 64, 128, 64, 64]

    # Backbone features C3-C5 (NCHW, PyTorch convention)
    x0 = jax.random.normal(k0, (B, 32, 32, 32), jnp.float32)
    x1 = jax.random.normal(k1, (B, 64, 16, 16), jnp.float32)
    x2 = jax.random.normal(k2, (B, 128, 16, 16), jnp.float32)

    neck = SSDNeckPallas(inplanes, outplanes, out_strides, extern_level,
                         extern_outplanes, kparams)

    out = neck({'features': [x0, x1, x2], 'strides': [8, 16, 32]})
    feats = [jax.block_until_ready(f) for f in out['features']]
    strides = jax.block_until_ready(out['strides'])

    # Reference: the original two sequential f32 convs per extern level, via XLA.
    ref_feats = [x0, x1, x2]
    ref = x2
    for idx in range(neck.extern_level):
        for layer in (neck.layers[2 * idx], neck.layers[2 * idx + 1]):
            ref = _ref_conv_nchw(ref, layer['w'], layer['b'],
                                 layer['stride'], layer['padding'])
        ref_feats.append(ref)

    assert len(feats) == 5
    for got, want in zip(feats, ref_feats):
        assert got.shape == want.shape, (got.shape, want.shape)
        np.testing.assert_allclose(np.asarray(got), np.asarray(want),
                                   atol=5e-2, rtol=5e-2)
    assert strides.dtype == jnp.int32 and list(np.asarray(strides)) == out_strides

    print("KERNEL_OK")
</pallas_src>

<mosaic_0001>
module attributes {stable_mosaic.version = 11 : i64} {
  func.func @kernel(%arg0: i32, %arg1: memref<1x144x1152xbf16, #tpu.memory_space<vmem>>, %arg2: memref<2x1152x128xbf16, #tpu.memory_space<vmem>>, %arg3: memref<576x128xbf16, #tpu.memory_space<vmem>>, %arg4: memref<9x128x128xbf16, #tpu.memory_space<vmem>>, %arg5: memref<1x128x128xbf16, #tpu.memory_space<vmem>>, %arg6: memref<1x64x128xbf16, #tpu.memory_space<vmem>>, %arg7: memref<576x128xbf16, #tpu.memory_space<vmem>>) attributes {dimension_semantics = [#tpu.dimension_semantics<parallel>], iteration_bounds = array<i64: 2>, scalar_prefetch = 0 : i64, scratch_operands = 1 : i64, tpu.core_type = #tpu.core_type<tc>, window_params = [{transform_indices = @transform_0, window_bounds = array<i64: 1, 144, 1152>}, {pipeline_mode = #tpu.pipeline_mode<synchronous>, transform_indices = @transform_1, window_bounds = array<i64: 2, 1152, 128>}, {pipeline_mode = #tpu.pipeline_mode<synchronous>, transform_indices = @transform_2, window_bounds = array<i64: 576, 128>}, {pipeline_mode = #tpu.pipeline_mode<synchronous>, transform_indices = @transform_3, window_bounds = array<i64: 9, 128, 128>}, {transform_indices = @transform_4, window_bounds = array<i64: 1, 128, 128>}, {transform_indices = @transform_5, window_bounds = array<i64: 1, 64, 128>}]} {
    %c0 = arith.constant 0 : index
    %c0_0 = arith.constant 0 : index
    %c0_1 = arith.constant 0 : index
    %0 = vector.load %arg1[%c0, %c0_0, %c0_1] : memref<1x144x1152xbf16, #tpu.memory_space<vmem>>, vector<1x128x1152xbf16>
    %1 = vector.shape_cast %0 : vector<1x128x1152xbf16> to vector<128x1152xbf16>
    %c0_2 = arith.constant 0 : index
    %c0_3 = arith.constant 0 : index
    %c0_4 = arith.constant 0 : index
    %2 = vector.load %arg2[%c0_2, %c0_3, %c0_4] : memref<2x1152x128xbf16, #tpu.memory_space<vmem>>, vector<1x1152x128xbf16>
    %3 = vector.shape_cast %2 : vector<1x1152x128xbf16> to vector<1152x128xbf16>
    %cst = arith.constant dense<0.000000e+00> : vector<128x128xf32>
    %4 = tpu.matmul %1, %3, %cst {dimension_numbers = #tpu.dot_dimension_numbers<[1], [0], [0], [1], [0, 0, 1, 1], [], []>} : vector<128x1152xbf16>, vector<1152x128xbf16>, vector<128x128xf32> -> vector<128x128xf32>
    %c0_5 = arith.constant 0 : index
    %c16 = arith.constant 16 : index
    %c0_6 = arith.constant 0 : index
    %5 = vector.load %arg1[%c0_5, %c16, %c0_6] : memref<1x144x1152xbf16, #tpu.memory_space<vmem>>, vector<1x128x1152xbf16>
    %6 = vector.shape_cast %5 : vector<1x128x1152xbf16> to vector<128x1152xbf16>
    %c1 = arith.constant 1 : index
    %c0_7 = arith.constant 0 : index
    %c0_8 = arith.constant 0 : index
    %7 = vector.load %arg2[%c1, %c0_7, %c0_8] : memref<2x1152x128xbf16, #tpu.memory_space<vmem>>, vector<1x1152x128xbf16>
    %8 = vector.shape_cast %7 : vector<1x1152x128xbf16> to vector<1152x128xbf16>
    %cst_9 = arith.constant dense<0.000000e+00> : vector<128x128xf32>
    %9 = tpu.matmul %6, %8, %cst_9 {dimension_numbers = #tpu.dot_dimension_numbers<[1], [0], [0], [1], [0, 0, 1, 1], [], []>} : vector<128x1152xbf16>, vector<1152x128xbf16>, vector<128x128xf32> -> vector<128x128xf32>
    %10 = arith.addf %4, %9 : vector<128x128xf32>
    %11 = arith.truncf %10 : vector<128x128xf32> to vector<128x128xbf16>
    %c0_10 = arith.constant 0 : index
    %c0_11 = arith.constant 0 : index
    %c0_12 = arith.constant 0 : index
    %12 = vector.load %arg5[%c0_10, %c0_11, %c0_12] : memref<1x128x128xbf16, #tpu.memory_space<vmem>>, vector<1x128x128xbf16>
    %13 = vector.shape_cast %12 : vector<1x128x128xbf16> to vector<128x128xbf16>
    %14 = vector.shape_cast %11 : vector<128x128xbf16> to vector<1x128x128xbf16>
    tpu.vector_store %arg5[%c0_10, %c0_11, %c0_12], %14 {strides = array<i32>} : memref<1x128x128xbf16, #tpu.memory_space<vmem>>, vector<1x128x128xbf16>,
    %c0_13 = arith.constant 0 : index
    %c0_14 = arith.constant 0 : index
    %15 = vector.load %arg3[%c0_13, %c0_14] : memref<576x128xbf16, #tpu.memory_space<vmem>>, vector<576x128xbf16>
    %cst_15 = arith.constant dense<0.000000e+00> : vector<576x128xf32>
    %16 = tpu.matmul %15, %11, %cst_15 {dimension_numbers = #tpu.dot_dimension_numbers<[1], [0], [0], [1], [0, 0, 1, 1], [], []>} : vector<576x128xbf16>, vector<128x128xbf16>, vector<576x128xf32> -> vector<576x128xf32>
    %17 = arith.truncf %16 : vector<576x128xf32> to vector<576x128xbf16>
    %c0_16 = arith.constant 0 : index
    %c0_17 = arith.constant 0 : index
    %18 = vector.load %arg7[%c0_16, %c0_17] : memref<576x128xbf16, #tpu.memory_space<vmem>>, vector<576x128xbf16>
    tpu.vector_store %arg7[%c0_16, %c0_17], %17 {strides = array<i32>} : memref<576x128xbf16, #tpu.memory_space<vmem>>, vector<576x128xbf16>,
    %c0_18 = arith.constant 0 : index
    %c0_19 = arith.constant 0 : index
    %19 = vector.load %arg7[%c0_18, %c0_19] : memref<576x128xbf16, #tpu.memory_space<vmem>>, vector<64x128xbf16>
    %c0_20 = arith.constant 0 : index
    %c0_21 = arith.constant 0 : index
    %c0_22 = arith.constant 0 : index
    %20 = vector.load %arg4[%c0_20, %c0_21, %c0_22] : memref<9x128x128xbf16, #tpu.memory_space<vmem>>, vector<1x128x128xbf16>
    %21 = vector.shape_cast %20 : vector<1x128x128xbf16> to vector<128x128xbf16>
    %cst_23 = arith.constant dense<0.000000e+00> : vector<64x128xf32>
    %22 = tpu.matmul %19, %21, %cst_23 {dimension_numbers = #tpu.dot_dimension_numbers<[1], [0], [0], [1], [0, 0, 1, 1], [], []>} : vector<64x128xbf16>, vector<128x128xbf16>, vector<64x128xf32> -> vector<64x128xf32>
    %c64 = arith.constant 64 : index
    %c0_24 = arith.constant 0 : index
    %23 = vector.load %arg7[%c64, %c0_24] : memref<576x128xbf16, #tpu.memory_space<vmem>>, vector<64x128xbf16>
    %c1_25 = arith.constant 1 : index
    %c0_26 = arith.constant 0 : index
    %c0_27 = arith.constant 0 : index
    %24 = vector.load %arg4[%c1_25, %c0_26, %c0_27] : memref<9x128x128xbf16, #tpu.memory_space<vmem>>, vector<1x128x128xbf16>
    %25 = vector.shape_cast %24 : vector<1x128x128xbf16> to vector<128x128xbf16>
    %cst_28 = arith.constant dense<0.000000e+00> : vector<64x128xf32>
    %26 = tpu.matmul %23, %25, %cst_28 {dimension_numbers = #tpu.dot_dimension_numbers<[1], [0], [0], [1], [0, 0, 1, 1], [], []>} : vector<64x128xbf16>, vector<128x128xbf16>, vector<64x128xf32> -> vector<64x128xf32>
    %27 = arith.addf %22, %26 : vector<64x128xf32>
    %c128 = arith.constant 128 : index
    %c0_29 = arith.constant 0 : index
    %28 = vector.load %arg7[%c128, %c0_29] : memref<576x128xbf16, #tpu.memory_space<vmem>>, vector<64x128xbf16>
    %c2 = arith.constant 2 : index
    %c0_30 = arith.constant 0 : index
    %c0_31 = arith.constant 0 : index
    %29 = vector.load %arg4[%c2, %c0_30, %c0_31] : memref<9x128x128xbf16, #tpu.memory_space<vmem>>, vector<1x128x128xbf16>
    %30 = vector.shape_cast %29 : vector<1x128x128xbf16> to vector<128x128xbf16>
    %cst_32 = arith.constant dense<0.000000e+00> : vector<64x128xf32>
    %31 = tpu.matmul %28, %30, %cst_32 {dimension_numbers = #tpu.dot_dimension_numbers<[1], [0], [0], [1], [0, 0, 1, 1], [], []>} : vector<64x128xbf16>, vector<128x128xbf16>, vector<64x128xf32> -> vector<64x128xf32>
    %32 = arith.addf %27, %31 : vector<64x128xf32>
    %c192 = arith.constant 192 : index
    %c0_33 = arith.constant 0 : index
    %33 = vector.load %arg7[%c192, %c0_33] : memref<576x128xbf16, #tpu.memory_space<vmem>>, vector<64x128xbf16>
    %c3 = arith.constant 3 : index
    %c0_34 = arith.constant 0 : index
    %c0_35 = arith.constant 0 : index
    %34 = vector.load %arg4[%c3, %c0_34, %c0_35] : memref<9x128x128xbf16, #tpu.memory_space<vmem>>, vector<1x128x128xbf16>
    %35 = vector.shape_cast %34 : vector<1x128x128xbf16> to vector<128x128xbf16>
    %cst_36 = arith.constant dense<0.000000e+00> : vector<64x128xf32>
    %36 = tpu.matmul %33, %35, %cst_36 {dimension_numbers = #tpu.dot_dimension_numbers<[1], [0], [0], [1], [0, 0, 1, 1], [], []>} : vector<64x128xbf16>, vector<128x128xbf16>, vector<64x128xf32> -> vector<64x128xf32>
    %37 = arith.addf %32, %36 : vector<64x128xf32>
    %c256 = arith.constant 256 : index
    %c0_37 = arith.constant 0 : index
    %38 = vector.load %arg7[%c256, %c0_37] : memref<576x128xbf16, #tpu.memory_space<vmem>>, vector<64x128xbf16>
    %c4 = arith.constant 4 : index
    %c0_38 = arith.constant 0 : index
    %c0_39 = arith.constant 0 : index
    %39 = vector.load %arg4[%c4, %c0_38, %c0_39] : memref<9x128x128xbf16, #tpu.memory_space<vmem>>, vector<1x128x128xbf16>
    %40 = vector.shape_cast %39 : vector<1x128x128xbf16> to vector<128x128xbf16>
    %cst_40 = arith.constant dense<0.000000e+00> : vector<64x128xf32>
    %41 = tpu.matmul %38, %40, %cst_40 {dimension_numbers = #tpu.dot_dimension_numbers<[1], [0], [0], [1], [0, 0, 1, 1], [], []>} : vector<64x128xbf16>, vector<128x128xbf16>, vector<64x128xf32> -> vector<64x128xf32>
    %42 = arith.addf %37, %41 : vector<64x128xf32>
    %c320 = arith.constant 320 : index
    %c0_41 = arith.constant 0 : index
    %43 = vector.load %arg7[%c320, %c0_41] : memref<576x128xbf16, #tpu.memory_space<vmem>>, vector<64x128xbf16>
    %c5 = arith.constant 5 : index
    %c0_42 = arith.constant 0 : index
    %c0_43 = arith.constant 0 : index
    %44 = vector.load %arg4[%c5, %c0_42, %c0_43] : memref<9x128x128xbf16, #tpu.memory_space<vmem>>, vector<1x128x128xbf16>
    %45 = vector.shape_cast %44 : vector<1x128x128xbf16> to vector<128x128xbf16>
    %cst_44 = arith.constant dense<0.000000e+00> : vector<64x128xf32>
    %46 = tpu.matmul %43, %45, %cst_44 {dimension_numbers = #tpu.dot_dimension_numbers<[1], [0], [0], [1], [0, 0, 1, 1], [], []>} : vector<64x128xbf16>, vector<128x128xbf16>, vector<64x128xf32> -> vector<64x128xf32>
    %47 = arith.addf %42, %46 : vector<64x128xf32>
    %c384 = arith.constant 384 : index
    %c0_45 = arith.constant 0 : index
    %48 = vector.load %arg7[%c384, %c0_45] : memref<576x128xbf16, #tpu.memory_space<vmem>>, vector<64x128xbf16>
    %c6 = arith.constant 6 : index
    %c0_46 = arith.constant 0 : index
    %c0_47 = arith.constant 0 : index
    %49 = vector.load %arg4[%c6, %c0_46, %c0_47] : memref<9x128x128xbf16, #tpu.memory_space<vmem>>, vector<1x128x128xbf16>
    %50 = vector.shape_cast %49 : vector<1x128x128xbf16> to vector<128x128xbf16>
    %cst_48 = arith.constant dense<0.000000e+00> : vector<64x128xf32>
    %51 = tpu.matmul %48, %50, %cst_48 {dimension_numbers = #tpu.dot_dimension_numbers<[1], [0], [0], [1], [0, 0, 1, 1], [], []>} : vector<64x128xbf16>, vector<128x128xbf16>, vector<64x128xf32> -> vector<64x128xf32>
    %52 = arith.addf %47, %51 : vector<64x128xf32>
    %c448 = arith.constant 448 : index
    %c0_49 = arith.constant 0 : index
    %53 = vector.load %arg7[%c448, %c0_49] : memref<576x128xbf16, #tpu.memory_space<vmem>>, vector<64x128xbf16>
    %c7 = arith.constant 7 : index
    %c0_50 = arith.constant 0 : index
    %c0_51 = arith.constant 0 : index
    %54 = vector.load %arg4[%c7, %c0_50, %c0_51] : memref<9x128x128xbf16, #tpu.memory_space<vmem>>, vector<1x128x128xbf16>
    %55 = vector.shape_cast %54 : vector<1x128x128xbf16> to vector<128x128xbf16>
    %cst_52 = arith.constant dense<0.000000e+00> : vector<64x128xf32>
    %56 = tpu.matmul %53, %55, %cst_52 {dimension_numbers = #tpu.dot_dimension_numbers<[1], [0], [0], [1], [0, 0, 1, 1], [], []>} : vector<64x128xbf16>, vector<128x128xbf16>, vector<64x128xf32> -> vector<64x128xf32>
    %57 = arith.addf %52, %56 : vector<64x128xf32>
    %c512 = arith.constant 512 : index
    %c0_53 = arith.constant 0 : index
    %58 = vector.load %arg7[%c512, %c0_53] : memref<576x128xbf16, #tpu.memory_space<vmem>>, vector<64x128xbf16>
    %c8 = arith.constant 8 : index
    %c0_54 = arith.constant 0 : index
    %c0_55 = arith.constant 0 : index
    %59 = vector.load %arg4[%c8, %c0_54, %c0_55] : memref<9x128x128xbf16, #tpu.memory_space<vmem>>, vector<1x128x128xbf16>
    %60 = vector.shape_cast %59 : vector<1x128x128xbf16> to vector<128x128xbf16>
    %cst_56 = arith.constant dense<0.000000e+00> : vector<64x128xf32>
    %61 = tpu.matmul %58, %60, %cst_56 {dimension_numbers = #tpu.dot_dimension_numbers<[1], [0], [0], [1], [0, 0, 1, 1], [], []>} : vector<64x128xbf16>, vector<128x128xbf16>, vector<64x128xf32> -> vector<64x128xf32>
    %62 = arith.addf %57, %61 : vector<64x128xf32>
    %63 = arith.truncf %62 : vector<64x128xf32> to vector<64x128xbf16>
    %c0_57 = arith.constant 0 : index
    %c0_58 = arith.constant 0 : index
    %c0_59 = arith.constant 0 : index
    %64 = vector.load %arg6[%c0_57, %c0_58, %c0_59] : memref<1x64x128xbf16, #tpu.memory_space<vmem>>, vector<1x64x128xbf16>
    %65 = vector.shape_cast %64 : vector<1x64x128xbf16> to vector<64x128xbf16>
    %66 = vector.shape_cast %63 : vector<64x128xbf16> to vector<1x64x128xbf16>
    tpu.vector_store %arg6[%c0_57, %c0_58, %c0_59], %66 {strides = array<i32>} : memref<1x64x128xbf16, #tpu.memory_space<vmem>>, vector<1x64x128xbf16>,
    return
  }
  func.func @transform_0(%arg0: i32) -> (i32, i32, i32) {
    %c0_i32 = arith.constant 0 : i32
    %c0_i32_0 = arith.constant 0 : i32
    %c0_i32_1 = arith.constant 0 : i32
    return %arg0, %c0_i32, %c0_i32_0 : i32, i32, i32
  }
  func.func @transform_1(%arg0: i32) -> (i32, i32, i32) {
    %c0_i32 = arith.constant 0 : i32
    %c0_i32_0 = arith.constant 0 : i32
    %c0_i32_1 = arith.constant 0 : i32
    %c0_i32_2 = arith.constant 0 : i32
    return %c0_i32, %c0_i32_0, %c0_i32_1 : i32, i32, i32
  }
  func.func @transform_2(%arg0: i32) -> (i32, i32) {
    %c0_i32 = arith.constant 0 : i32
    %c0_i32_0 = arith.constant 0 : i32
    %c0_i32_1 = arith.constant 0 : i32
    return %c0_i32, %c0_i32_0 : i32, i32
  }
  func.func @transform_3(%arg0: i32) -> (i32, i32, i32) {
    %c0_i32 = arith.constant 0 : i32
    %c0_i32_0 = arith.constant 0 : i32
    %c0_i32_1 = arith.constant 0 : i32
    %c0_i32_2 = arith.constant 0 : i32
    return %c0_i32, %c0_i32_0, %c0_i32_1 : i32, i32, i32
  }
  func.func @transform_4(%arg0: i32) -> (i32, i32, i32) {
    %c0_i32 = arith.constant 0 : i32
    %c0_i32_0 = arith.constant 0 : i32
    %c0_i32_1 = arith.constant 0 : i32
    return %arg0, %c0_i32, %c0_i32_0 : i32, i32, i32
  }
  func.func @transform_5(%arg0: i32) -> (i32, i32, i32) {
    %c0_i32 = arith.constant 0 : i32
    %c0_i32_0 = arith.constant 0 : i32
    %c0_i32_1 = arith.constant 0 : i32
    return %arg0, %c0_i32, %c0_i32_0 : i32, i32, i32
  }
}

</mosaic_0001>

<llo_original>
// kernel: _forward_impl.1
$region0: #{_forward_impl.1}
  #allocation0 [shape = 'u32[]', space=smem, size = 0x4, offset = 0x4, fixed_abs, tag = 'smem constant byte address 0x4 - core index']
  #allocation1 [shape = 'u32[144,128]{1,0:T(1,128)}', space=vmem, size = 0x12000, scoped, tag = 'internal scratch']
  #allocation2 [shape = 'bf16[576,128]{1,0:T(8,128)(2,1)}', space=vmem, size = 0x24000, scoped, tag = 'scratch operand']
  %s0 = inlined_call_operand.vmem [shape: bf16[2,144,1152], index: 0, kind: input, shape index: {}]
  %s1 = inlined_call_operand.vmem [shape: bf16[2,1152,128], index: 1, kind: input, shape index: {}]
  %s2 = inlined_call_operand.vmem [shape: bf16[576,128], index: 2, kind: input, shape index: {}]
  %s3 = inlined_call_operand.vmem [shape: bf16[9,128,128], index: 3, kind: input, shape index: {}]
  %s4 = inlined_call_operand.vmem [shape: bf16[2,128,128], index: 4, kind: output, shape index: {0}]
  %s5 = inlined_call_operand.vmem [shape: bf16[2,64,128], index: 5, kind: output, shape index: {1}]
  %6 = xla_tuple %s4, %s5
  %s7 = sld [smem:[#allocation0]]
  $region57: #{_forward_impl.1} parent=0
    _
  %s9 = ssub.s32 1, %s7
  %s10 = scalar_select 0, %s9, %s7
  loop: start=0, step=1, limit=4
  $region2: #{_forward_impl.1} parent=0 // loop_pre_header
    _
  $region3: #{_forward_impl.1} parent=0 // loop_header
    %s12 = sphi 0, %s16
    %p13 = scmp.ge.s32.totalorder %s12, 4
    %s22 = sphi 0, %s24
    %s25 = sphi 0, %s22
    %s26 = sphi 0, %s25
    %s42 = sphi 0, %s26
    %s46 = sphi 0, %s46
    %s48 = sphi 0, %s46
    %s49 = sphi 0, %s48
    %s63 = sphi 0, %s49
    %s67 = sphi 0, %s67
    %s69 = sphi 0, %s67
    %s70 = sphi 0, %s69
    %s84 = sphi 0, %s70
    %s88 = sphi 0, %s88
    %s90 = sphi 0, %s88
    %s91 = sphi 0, %s90
    %s105 = sphi 0, %s91
    %s111 = sphi 0, %s113
    %s114 = sphi 0, %s111
    %s115 = sphi 0, %s114
    %s131 = sphi 0, %s115
    %s137 = sphi 0, %s139
    %s140 = sphi 0, %s137
    %s141 = sphi 0, %s140
    %s157 = sphi 0, %s141
  $region4: #{_forward_impl.1} parent=0 // loop_header_branch
    %15 = sbr.rel (%p13) target = $region8
  $region5: #{_forward_impl.1} parent=0 // loop_body
    %s17 = ssub.s32 %s12, 1
    %s18 = ssub.s32 %s12, 2
    %s19 = sadd.s32 %s12, 1
    %s20 = ssub.s32 %s12, %s19
    %p21 = scmp.eq.s32.totalorder %s20, 0
    %s23 = sadd.s32 %s22, 1
    %s24 = scalar_select %p21, %s22, %s23
    %p27 = pneg %p21
    %p28 = scmp.eq.s32.totalorder %s12, 1
    %p29 = por %p27, %p28
    %p30 = scmp.ne.s32.totalorder %s22, %s25
    %p31 = scmp.eq.s32.totalorder %s12, 0
    %p32 = por %p30, %p31
    %p33 = scmp.ne.s32.totalorder %s22, %s25
    %p34 = scmp.eq.s32.totalorder %s17, 1
    %p35 = por %p33, %p34
    %p36 = scmp.ne.s32.totalorder %s25, %s26
    %p37 = scmp.eq.s32.totalorder %s17, 0
    %p38 = por %p36, %p37
    %p39 = scmp.ne.s32.totalorder %s25, %s26
    %p40 = scmp.eq.s32.totalorder %s18, 1
    %p41 = por %p39, %p40
    %p43 = scmp.ne.s32.totalorder %s26, %s42
    %p44 = scmp.eq.s32.totalorder %s18, 0
    %p45 = por %p43, %p44
    %s47 = sadd.s32 %s46, 1
    %p50 = scmp.eq.s32.totalorder %s12, 1
    %p51 = scmp.ne.s32.totalorder %s46, %s48
    %p52 = scmp.eq.s32.totalorder %s12, 0
    %p53 = por %p51, %p52
    %p54 = scmp.ne.s32.totalorder %s46, %s48
    %p55 = scmp.eq.s32.totalorder %s17, 1
    %p56 = por %p54, %p55
    %p57 = scmp.ne.s32.totalorder %s48, %s49
    %p58 = scmp.eq.s32.totalorder %s17, 0
    %p59 = por %p57, %p58
    %p60 = scmp.ne.s32.totalorder %s48, %s49
    %p61 = scmp.eq.s32.totalorder %s18, 1
    %p62 = por %p60, %p61
    %p64 = scmp.ne.s32.totalorder %s49, %s63
    %p65 = scmp.eq.s32.totalorder %s18, 0
    %p66 = por %p64, %p65
    %s68 = sadd.s32 %s67, 1
    %p71 = scmp.eq.s32.totalorder %s12, 1
    %p72 = scmp.ne.s32.totalorder %s67, %s69
    %p73 = scmp.eq.s32.totalorder %s12, 0
    %p74 = por %p72, %p73
    %p75 = scmp.ne.s32.totalorder %s67, %s69
    %p76 = scmp.eq.s32.totalorder %s17, 1
    %p77 = por %p75, %p76
    %p78 = scmp.ne.s32.totalorder %s69, %s70
    %p79 = scmp.eq.s32.totalorder %s17, 0
    %p80 = por %p78, %p79
    %p81 = scmp.ne.s32.totalorder %s69, %s70
    %p82 = scmp.eq.s32.totalorder %s18, 1
    %p83 = por %p81, %p82
    %p85 = scmp.ne.s32.totalorder %s70, %s84
    %p86 = scmp.eq.s32.totalorder %s18, 0
    %p87 = por %p85, %p86
    %s89 = sadd.s32 %s88, 1
    %p92 = scmp.eq.s32.totalorder %s12, 1
    %p93 = scmp.ne.s32.totalorder %s88, %s90
    %p94 = scmp.eq.s32.totalorder %s12, 0
    %p95 = por %p93, %p94
    %p96 = scmp.ne.s32.totalorder %s88, %s90
    %p97 = scmp.eq.s32.totalorder %s17, 1
    %p98 = por %p96, %p97
    %p99 = scmp.ne.s32.totalorder %s90, %s91
    %p100 = scmp.eq.s32.totalorder %s17, 0
    %p101 = por %p99, %p100
    %p102 = scmp.ne.s32.totalorder %s90, %s91
    %p103 = scmp.eq.s32.totalorder %s18, 1
    %p104 = por %p102, %p103
    %p106 = scmp.ne.s32.totalorder %s91, %s105
    %p107 = scmp.eq.s32.totalorder %s18, 0
    %p108 = por %p106, %p107
    %s109 = ssub.s32 %s12, %s19
    %p110 = scmp.eq.s32.totalorder %s109, 0
    %s112 = sadd.s32 %s111, 1
    %s113 = scalar_select %p110, %s111, %s112
    %p116 = pneg %p110
    %p117 = scmp.eq.s32.totalorder %s12, 1
    %p118 = por %p116, %p117
    %p119 = scmp.ne.s32.totalorder %s111, %s114
    %p120 = scmp.eq.s32.totalorder %s12, 0
    %p121 = por %p119, %p120
    %p122 = scmp.ne.s32.totalorder %s111, %s114
    %p123 = scmp.eq.s32.totalorder %s17, 1
    %p124 = por %p122, %p123
    %p125 = scmp.ne.s32.totalorder %s114, %s115
    %p126 = scmp.eq.s32.totalorder %s17, 0
    %p127 = por %p125, %p126
    %p128 = scmp.ne.s32.totalorder %s114, %s115
    %p129 = scmp.eq.s32.totalorder %s18, 1
    %p130 = por %p128, %p129
    %p132 = scmp.ne.s32.totalorder %s115, %s131
    %p133 = scmp.eq.s32.totalorder %s18, 0
    %p134 = por %p132, %p133
    %s135 = ssub.s32 %s12, %s19
    %p136 = scmp.eq.s32.totalorder %s135, 0
    %s138 = sadd.s32 %s137, 1
    %s139 = scalar_select %p136, %s137, %s138
    %p142 = pneg %p136
    %p143 = scmp.eq.s32.totalorder %s12, 1
    %p144 = por %p142, %p143
    %p145 = scmp.ne.s32.totalorder %s137, %s140
    %p146 = scmp.eq.s32.totalorder %s12, 0
    %p147 = por %p145, %p146
    %p148 = scmp.ne.s32.totalorder %s137, %s140
    %p149 = scmp.eq.s32.totalorder %s17, 1
    %p150 = por %p148, %p149
    %p151 = scmp.ne.s32.totalorder %s140, %s141
    %p152 = scmp.eq.s32.totalorder %s17, 0
    %p153 = por %p151, %p152
    %p154 = scmp.ne.s32.totalorder %s140, %s141
    %p155 = scmp.eq.s32.totalorder %s18, 1
    %p156 = por %p154, %p155
    %p158 = scmp.ne.s32.totalorder %s141, %s157
    %p159 = scmp.eq.s32.totalorder %s18, 0
    %p160 = por %p158, %p159
    %p161 = scmp.le.s32.totalorder 1, %s12
    %p162 = scmp.lt.s32.totalorder %s12, 3
    %p163 = pnand %p161, %p162
    %p164 = pneg %p163
    // Predicated region
    $region9: #{_forward_impl.1} parent=5 // pred_check
      _
    $region10: #{_forward_impl.1} parent=5 // pred_check_branch
      %166 = sbr.rel (%p163) target = $region12
    $region11: #{_forward_impl.1} parent=5 // pred_region
      %s167 = ssub.s32 %s12, 1
      // Predicated region
      $region13: #{_forward_impl.1} parent=11 // pred_check
        %p168 = pneg %p59
      $region14: #{_forward_impl.1} parent=11 // pred_check_branch
        %170 = sbr.rel (%p168) target = $region16
      $region15: #{_forward_impl.1} parent=11 // pred_region
        _
      $region16: #{_forward_impl.1} parent=11 // pred_fallthru
        _
      // Predicated region
      $region17: #{_forward_impl.1} parent=11 // pred_check
        %p171 = pneg %p80
      $region18: #{_forward_impl.1} parent=11 // pred_check_branch
        %173 = sbr.rel (%p171) target = $region20
      $region19: #{_forward_impl.1} parent=11 // pred_region
        _
      $region20: #{_forward_impl.1} parent=11 // pred_fallthru
        _
      // Predicated region
      $region21: #{_forward_impl.1} parent=11 // pred_check
        %p174 = pneg %p101
      $region22: #{_forward_impl.1} parent=11 // pred_check_branch
        %176 = sbr.rel (%p174) target = $region24
      $region23: #{_forward_impl.1} parent=11 // pred_region
        _
      $region24: #{_forward_impl.1} parent=11 // pred_fallthru
        _
    $region12: #{_forward_impl.1} parent=5 // pred_fallthru
      _
    %p177 = scmp.lt.s32.totalorder %s12, 2
    // Predicated region
    $region25: #{_forward_impl.1} parent=5 // pred_check
      %p178 = pneg %p177
    $region26: #{_forward_impl.1} parent=5 // pred_check_branch
      %180 = sbr.rel (%p178) target = $region28
    $region27: #{_forward_impl.1} parent=5 // pred_region
      // Predicated region
      $region29: #{_forward_impl.1} parent=27 // pred_check
        %p181 = pneg %p32
      $region30: #{_forward_impl.1} parent=27 // pred_check_branch
        %183 = sbr.rel (%p181) target = $region32
      $region31: #{_forward_impl.1} parent=27 // pred_region
        %p184 = scmp.lt.s32.totalorder %s12, 1
        %s185 = scalar_select %p184, %s12, 1
        %s186 = smul.addr %s185, 162
        %s187 = smul.addr %s186, 4
        %s188 = scalar_lea.vmem %s0, %s187
      $region32: #{_forward_impl.1} parent=27 // pred_fallthru
        _
    $region28: #{_forward_impl.1} parent=5 // pred_fallthru
      _
    %p189 = scmp.le.s32.totalorder 1, %s12
    %p190 = scmp.lt.s32.totalorder %s12, 3
    %p191 = pnand %p189, %p190
    %p192 = pneg %p191
    // Predicated region
    $region33: #{_forward_impl.1} parent=5 // pred_check
      _
    $region34: #{_forward_impl.1} parent=5 // pred_check_branch
      %194 = sbr.rel (%p191) target = $region36
    $region35: #{_forward_impl.1} parent=5 // pred_region
      %s195 = ssub.s32 %s12, 1
      %p196 = scmp.lt.s32.totalorder %s17, 1
      %s197 = scalar_select %p196, %s17, 1
      %s198 = smul.addr %s197, 162
      %s199 = smul.addr %s198, 4
      %s200 = scalar_lea.vmem %s0, %s199
      %p201 = pneg %p38
      %p202 = pneg %p35
      %p203 = pneg %p59
      %p204 = pneg %p56
      %p205 = pneg %p80
      %p206 = pneg %p77
      %p207 = pneg %p101
      %p208 = pneg %p98
      %p209 = pneg %p127
      %p210 = pneg %p124
      %p211 = scmp.lt.s32.totalorder %s17, 1
      %s212 = scalar_select %p211, %s17, 1
      %s213 = smul.addr %s212, 16
      %s214 = smul.addr %s213, 4
      %s215 = scalar_lea.vmem %s4, %s214
      %p216 = pneg %p153
      %p217 = pneg %p150
      %p218 = scmp.lt.s32.totalorder %s17, 1
      %s219 = scalar_select %p218, %s17, 1
      %s220 = smul.addr %s219, 8
      %s221 = smul.addr %s220, 4
      %s222 = scalar_lea.vmem %s5, %s221
      %p223 = scmp.lt.s32.totalorder %s17, 1
      %s224 = scalar_select %p223, %s17, 1
      %s225 = smul.addr %s224, 162
      %s226 = smul.addr %s225, 4
      %s227 = scalar_lea.vmem %s0, %s226
      %p228 = scmp.lt.s32.totalorder %s17, 1
      %s229 = scalar_select %p228, %s17, 1
      %s230 = smul.addr %s229, 16
      %s231 = smul.addr %s230, 4
      %s232 = scalar_lea.vmem %s4, %s231
      %p233 = scmp.lt.s32.totalorder %s17, 1
      %s234 = scalar_select %p233, %s17, 1
      %s235 = smul.addr %s234, 8
      %s236 = smul.addr %s235, 4
      %s237 = scalar_lea.vmem %s5, %s236
      %v239 = vld [vmem:[%s227] sm:$0xff]
      %v240 = vld [vmem:[%s227 + $0x8] sm:$0xff]
      %v241 = vld [vmem:[%s227 + $0x10] sm:$0xff]
      %v242 = vld [vmem:[%s227 + $0x18] sm:$0xff]
      %v243 = vld [vmem:[%s227 + $0x20] sm:$0xf]
      %v244 = vld [vmem:[%s227 + $0x24] sm:$0xff]
      %v245 = vld [vmem:[%s227 + $0x2c] sm:$0xff]
      %v246 = vld [vmem:[%s227 + $0x34] sm:$0xff]
      %v247 = vld [vmem:[%s227 + $0x3c] sm:$0xff]
      %v248 = vld [vmem:[%s227 + $0x44] sm:$0xf]
      %v249 = vld [vmem:[%s227 + $0x48] sm:$0xff]
      %v250 = vld [vmem:[%s227 + $0x50] sm:$0xff]
      %v251 = vld [vmem:[%s227 + $0x58] sm:$0xff]
      %v252 = vld [vmem:[%s227 + $0x60] sm:$0xff]
      %v253 = vld [vmem:[%s227 + $0x68] sm:$0xf]
      %v254 = vld [vmem:[%s227 + $0x6c] sm:$0xff]
      %v255 = vld [vmem:[%s227 + $0x74] sm:$0xff]
      %v256 = vld [vmem:[%s227 + $0x7c] sm:$0xff]
      %v257 = vld [vmem:[%s227 + $0x84] sm:$0xff]
      %v258 = vld [vmem:[%s227 + $0x8c] sm:$0xf]
      %v259 = vld [vmem:[%s227 + $0x90] sm:$0xff]
      %v260 = vld [vmem:[%s227 + $0x98] sm:$0xff]
      %v261 = vld [vmem:[%s227 + $0xa0] sm:$0xff]
      %v262 = vld [vmem:[%s227 + $0xa8] sm:$0xff]
      %v263 = vld [vmem:[%s227 + $0xb0] sm:$0xf]
      %v264 = vld [vmem:[%s227 + $0xb4] sm:$0xff]
      %v265 = vld [vmem:[%s227 + $0xbc] sm:$0xff]
      %v266 = vld [vmem:[%s227 + $0xc4] sm:$0xff]
      %v267 = vld [vmem:[%s227 + $0xcc] sm:$0xff]
      %v268 = vld [vmem:[%s227 + $0xd4] sm:$0xf]
      %v269 = vld [vmem:[%s227 + $0xd8] sm:$0xff]
      %v270 = vld [vmem:[%s227 + $0xe0] sm:$0xff]
      %v271 = vld [vmem:[%s227 + $0xe8] sm:$0xff]
      %v272 = vld [vmem:[%s227 + $0xf0] sm:$0xff]
      %v273 = vld [vmem:[%s227 + $0xf8] sm:$0xf]
      %v274 = vld [vmem:[%s227 + $0xfc] sm:$0xff]
      %v275 = vld [vmem:[%s227 + $0x104] sm:$0xff]
      %v276 = vld [vmem:[%s227 + $0x10c] sm:$0xff]
      %v277 = vld [vmem:[%s227 + $0x114] sm:$0xff]
      %v278 = vld [vmem:[%s227 + $0x11c] sm:$0xf]
      %v279 = vld [vmem:[%s227 + $0x120] sm:$0xff]
      %v280 = vld [vmem:[%s227 + $0x128] sm:$0xff]
      %v281 = vld [vmem:[%s227 + $0x130] sm:$0xff]
      %v282 = vld [vmem:[%s227 + $0x138] sm:$0xff]
      %v283 = vld [vmem:[%s227 + $0x140] sm:$0xf]
      %v284 = vld [vmem:[%s227 + $0x144] sm:$0xff]
      %v285 = vld [vmem:[%s227 + $0x14c] sm:$0xff]
      %v286 = vld [vmem:[%s227 + $0x154] sm:$0xff]
      %v287 = vld [vmem:[%s227 + $0x15c] sm:$0xff]
      %v288 = vld [vmem:[%s227 + $0x164] sm:$0xf]
      %v289 = vld [vmem:[%s227 + $0x168] sm:$0xff]
      %v290 = vld [vmem:[%s227 + $0x170] sm:$0xff]
      %v291 = vld [vmem:[%s227 + $0x178] sm:$0xff]
      %v292 = vld [vmem:[%s227 + $0x180] sm:$0xff]
      %v293 = vld [vmem:[%s227 + $0x188] sm:$0xf]
      %v294 = vld [vmem:[%s227 + $0x18c] sm:$0xff]
      %v295 = vld [vmem:[%s227 + $0x194] sm:$0xff]
      %v296 = vld [vmem:[%s227 + $0x19c] sm:$0xff]
      %v297 = vld [vmem:[%s227 + $0x1a4] sm:$0xff]
      %v298 = vld [vmem:[%s227 + $0x1ac] sm:$0xf]
      %v299 = vld [vmem:[%s227 + $0x1b0] sm:$0xff]
      %v300 = vld [vmem:[%s227 + $0x1b8] sm:$0xff]
      %v301 = vld [vmem:[%s227 + $0x1c0] sm:$0xff]
      %v302 = vld [vmem:[%s227 + $0x1c8] sm:$0xff]
      %v303 = vld [vmem:[%s227 + $0x1d0] sm:$0xf]
      %v304 = vld [vmem:[%s227 + $0x1d4] sm:$0xff]
      %v305 = vld [vmem:[%s227 + $0x1dc] sm:$0xff]
      %v306 = vld [vmem:[%s227 + $0x1e4] sm:$0xff]
      %v307 = vld [vmem:[%s227 + $0x1ec] sm:$0xff]
      %v308 = vld [vmem:[%s227 + $0x1f4] sm:$0xf]
      %v309 = vld [vmem:[%s227 + $0x1f8] sm:$0xff]
      %v310 = vld [vmem:[%s227 + $0x200] sm:$0xff]
      %v311 = vld [vmem:[%s227 + $0x208] sm:$0xff]
      %v312 = vld [vmem:[%s227 + $0x210] sm:$0xff]
      %v313 = vld [vmem:[%s227 + $0x218] sm:$0xf]
      %v314 = vld [vmem:[%s227 + $0x21c] sm:$0xff]
      %v315 = vld [vmem:[%s227 + $0x224] sm:$0xff]
      %v316 = vld [vmem:[%s227 + $0x22c] sm:$0xff]
      %v317 = vld [vmem:[%s227 + $0x234] sm:$0xff]
      %v318 = vld [vmem:[%s227 + $0x23c] sm:$0xf]
      %v319 = vld [vmem:[%s1] sm:$0xf]
      %v320 = vld [vmem:[%s1 + $0x4] sm:$0xf]
      %v321 = vld [vmem:[%s1 + $0x8] sm:$0xf]
      %v322 = vld [vmem:[%s1 + $0xc] sm:$0xf]
      %v323 = vld [vmem:[%s1 + $0x10] sm:$0xf]
      %v324 = vld [vmem:[%s1 + $0x14] sm:$0xf]
      %v325 = vld [vmem:[%s1 + $0x18] sm:$0xf]
      %v326 = vld [vmem:[%s1 + $0x1c] sm:$0xf]
      %v327 = vld [vmem:[%s1 + $0x20] sm:$0xf]
      %v328 = vld [vmem:[%s1 + $0x24] sm:$0xf]
      %v329 = vld [vmem:[%s1 + $0x28] sm:$0xf]
      %v330 = vld [vmem:[%s1 + $0x2c] sm:$0xf]
      %v331 = vld [vmem:[%s1 + $0x30] sm:$0xf]
      %v332 = vld [vmem:[%s1 + $0x34] sm:$0xf]
      %v333 = vld [vmem:[%s1 + $0x38] sm:$0xf]
      %v334 = vld [vmem:[%s1 + $0x3c] sm:$0xf]
      %v335 = vld [vmem:[%s1 + $0x40] sm:$0xf]
      %v336 = vld [vmem:[%s1 + $0x44] sm:$0xf]
      %v337 = vld [vmem:[%s1 + $0x48] sm:$0xf]
      %v338 = vld [vmem:[%s1 + $0x4c] sm:$0xf]
      %v339 = vld [vmem:[%s1 + $0x50] sm:$0xf]
      %v340 = vld [vmem:[%s1 + $0x54] sm:$0xf]
      %v341 = vld [vmem:[%s1 + $0x58] sm:$0xf]
      %v342 = vld [vmem:[%s1 + $0x5c] sm:$0xf]
      %v343 = vld [vmem:[%s1 + $0x60] sm:$0xf]
      %v344 = vld [vmem:[%s1 + $0x64] sm:$0xf]
      %v345 = vld [vmem:[%s1 + $0x68] sm:$0xf]
      %v346 = vld [vmem:[%s1 + $0x6c] sm:$0xf]
      %v347 = vld [vmem:[%s1 + $0x70] sm:$0xf]
      %v348 = vld [vmem:[%s1 + $0x74] sm:$0xf]
      %v349 = vld [vmem:[%s1 + $0x78] sm:$0xf]
      %v350 = vld [vmem:[%s1 + $0x7c] sm:$0xf]
      %v351 = vld [vmem:[%s1 + $0x80] sm:$0xf]
      %v352 = vld [vmem:[%s1 + $0x84] sm:$0xf]
      %v353 = vld [vmem:[%s1 + $0x88] sm:$0xf]
      %v354 = vld [vmem:[%s1 + $0x8c] sm:$0xf]
      %v355 = vld [vmem:[%s1 + $0x90] sm:$0xf]
      %v356 = vld [vmem:[%s1 + $0x94] sm:$0xf]
      %v357 = vld [vmem:[%s1 + $0x98] sm:$0xf]
      %v358 = vld [vmem:[%s1 + $0x9c] sm:$0xf]
      %v359 = vld [vmem:[%s1 + $0xa0] sm:$0xf]
      %v360 = vld [vmem:[%s1 + $0xa4] sm:$0xf]
      %v361 = vld [vmem:[%s1 + $0xa8] sm:$0xf]
      %v362 = vld [vmem:[%s1 + $0xac] sm:$0xf]
      %v363 = vld [vmem:[%s1 + $0xb0] sm:$0xf]
      %v364 = vld [vmem:[%s1 + $0xb4] sm:$0xf]
      %v365 = vld [vmem:[%s1 + $0xb8] sm:$0xf]
      %v366 = vld [vmem:[%s1 + $0xbc] sm:$0xf]
      %v367 = vld [vmem:[%s1 + $0xc0] sm:$0xf]
      %v368 = vld [vmem:[%s1 + $0xc4] sm:$0xf]
      %v369 = vld [vmem:[%s1 + $0xc8] sm:$0xf]
      %v370 = vld [vmem:[%s1 + $0xcc] sm:$0xf]
      %v371 = vld [vmem:[%s1 + $0xd0] sm:$0xf]
      %v372 = vld [vmem:[%s1 + $0xd4] sm:$0xf]
      %v373 = vld [vmem:[%s1 + $0xd8] sm:$0xf]
      %v374 = vld [vmem:[%s1 + $0xdc] sm:$0xf]
      %v375 = vld [vmem:[%s1 + $0xe0] sm:$0xf]
      %v376 = vld [vmem:[%s1 + $0xe4] sm:$0xf]
      %v377 = vld [vmem:[%s1 + $0xe8] sm:$0xf]
      %v378 = vld [vmem:[%s1 + $0xec] sm:$0xf]
      %v379 = vld [vmem:[%s1 + $0xf0] sm:$0xf]
      %v380 = vld [vmem:[%s1 + $0xf4] sm:$0xf]
      %v381 = vld [vmem:[%s1 + $0xf8] sm:$0xf]
      %v382 = vld [vmem:[%s1 + $0xfc] sm:$0xf]
      %v383 = vld [vmem:[%s1 + $0x100] sm:$0xf]
      %v384 = vld [vmem:[%s1 + $0x104] sm:$0xf]
      %v385 = vld [vmem:[%s1 + $0x108] sm:$0xf]
      %v386 = vld [vmem:[%s1 + $0x10c] sm:$0xf]
      %v387 = vld [vmem:[%s1 + $0x110] sm:$0xf]
      %v388 = vld [vmem:[%s1 + $0x114] sm:$0xf]
      %v389 = vld [vmem:[%s1 + $0x118] sm:$0xf]
      %v390 = vld [vmem:[%s1 + $0x11c] sm:$0xf]
      %v391 = vld [vmem:[%s1 + $0x120] sm:$0xf]
      %v392 = vld [vmem:[%s1 + $0x124] sm:$0xf]
      %v393 = vld [vmem:[%s1 + $0x128] sm:$0xf]
      %v394 = vld [vmem:[%s1 + $0x12c] sm:$0xf]
      %v395 = vld [vmem:[%s1 + $0x130] sm:$0xf]
      %v396 = vld [vmem:[%s1 + $0x134] sm:$0xf]
      %v397 = vld [vmem:[%s1 + $0x138] sm:$0xf]
      %v398 = vld [vmem:[%s1 + $0x13c] sm:$0xf]
      %v399 = vld [vmem:[%s1 + $0x140] sm:$0xf]
      %v400 = vld [vmem:[%s1 + $0x144] sm:$0xf]
      %v401 = vld [vmem:[%s1 + $0x148] sm:$0xf]
      %v402 = vld [vmem:[%s1 + $0x14c] sm:$0xf]
      %v403 = vld [vmem:[%s1 + $0x150] sm:$0xf]
      %v404 = vld [vmem:[%s1 + $0x154] sm:$0xf]
      %v405 = vld [vmem:[%s1 + $0x158] sm:$0xf]
      %v406 = vld [vmem:[%s1 + $0x15c] sm:$0xf]
      %v407 = vld [vmem:[%s1 + $0x160] sm:$0xf]
      %v408 = vld [vmem:[%s1 + $0x164] sm:$0xf]
      %v409 = vld [vmem:[%s1 + $0x168] sm:$0xf]
      %v410 = vld [vmem:[%s1 + $0x16c] sm:$0xf]
      %v411 = vld [vmem:[%s1 + $0x170] sm:$0xf]
      %v412 = vld [vmem:[%s1 + $0x174] sm:$0xf]
      %v413 = vld [vmem:[%s1 + $0x178] sm:$0xf]
      %v414 = vld [vmem:[%s1 + $0x17c] sm:$0xf]
      %v415 = vld [vmem:[%s1 + $0x180] sm:$0xf]
      %v416 = vld [vmem:[%s1 + $0x184] sm:$0xf]
      %v417 = vld [vmem:[%s1 + $0x188] sm:$0xf]
      %v418 = vld [vmem:[%s1 + $0x18c] sm:$0xf]
      %v419 = vld [vmem:[%s1 + $0x190] sm:$0xf]
      %v420 = vld [vmem:[%s1 + $0x194] sm:$0xf]
      %v421 = vld [vmem:[%s1 + $0x198] sm:$0xf]
      %v422 = vld [vmem:[%s1 + $0x19c] sm:$0xf]
      %v423 = vld [vmem:[%s1 + $0x1a0] sm:$0xf]
      %v424 = vld [vmem:[%s1 + $0x1a4] sm:$0xf]
      %v425 = vld [vmem:[%s1 + $0x1a8] sm:$0xf]
      %v426 = vld [vmem:[%s1 + $0x1ac] sm:$0xf]
      %v427 = vld [vmem:[%s1 + $0x1b0] sm:$0xf]
      %v428 = vld [vmem:[%s1 + $0x1b4] sm:$0xf]
      %v429 = vld [vmem:[%s1 + $0x1b8] sm:$0xf]
      %v430 = vld [vmem:[%s1 + $0x1bc] sm:$0xf]
      %v431 = vld [vmem:[%s1 + $0x1c0] sm:$0xf]
      %v432 = vld [vmem:[%s1 + $0x1c4] sm:$0xf]
      %v433 = vld [vmem:[%s1 + $0x1c8] sm:$0xf]
      %v434 = vld [vmem:[%s1 + $0x1cc] sm:$0xf]
      %v435 = vld [vmem:[%s1 + $0x1d0] sm:$0xf]
      %v436 = vld [vmem:[%s1 + $0x1d4] sm:$0xf]
      %v437 = vld [vmem:[%s1 + $0x1d8] sm:$0xf]
      %v438 = vld [vmem:[%s1 + $0x1dc] sm:$0xf]
      %v439 = vld [vmem:[%s1 + $0x1e0] sm:$0xf]
      %v440 = vld [vmem:[%s1 + $0x1e4] sm:$0xf]
      %v441 = vld [vmem:[%s1 + $0x1e8] sm:$0xf]
      %v442 = vld [vmem:[%s1 + $0x1ec] sm:$0xf]
      %v443 = vld [vmem:[%s1 + $0x1f0] sm:$0xf]
      %v444 = vld [vmem:[%s1 + $0x1f4] sm:$0xf]
      %v445 = vld [vmem:[%s1 + $0x1f8] sm:$0xf]
      %v446 = vld [vmem:[%s1 + $0x1fc] sm:$0xf]
      %v447 = vld [vmem:[%s1 + $0x200] sm:$0xf]
      %v448 = vld [vmem:[%s1 + $0x204] sm:$0xf]
      %v449 = vld [vmem:[%s1 + $0x208] sm:$0xf]
      %v450 = vld [vmem:[%s1 + $0x20c] sm:$0xf]
      %v451 = vld [vmem:[%s1 + $0x210] sm:$0xf]
      %v452 = vld [vmem:[%s1 + $0x214] sm:$0xf]
      %v453 = vld [vmem:[%s1 + $0x218] sm:$0xf]
      %v454 = vld [vmem:[%s1 + $0x21c] sm:$0xf]
      %v455 = vld [vmem:[%s1 + $0x220] sm:$0xf]
      %v456 = vld [vmem:[%s1 + $0x224] sm:$0xf]
      %v457 = vld [vmem:[%s1 + $0x228] sm:$0xf]
      %v458 = vld [vmem:[%s1 + $0x22c] sm:$0xf]
      %v459 = vld [vmem:[%s1 + $0x230] sm:$0xf]
      %v460 = vld [vmem:[%s1 + $0x234] sm:$0xf]
      %v461 = vld [vmem:[%s1 + $0x238] sm:$0xf]
      %v462 = vld [vmem:[%s1 + $0x23c] sm:$0xf]
      %v463 = vld [vmem:[%s227 + $0x48] sm:$0xff]
      %v464 = vld [vmem:[%s227 + $0x50] sm:$0xff]
      %v465 = vld [vmem:[%s227 + $0x58] sm:$0xff]
      %v466 = vld [vmem:[%s227 + $0x60] sm:$0xff]
      %v467 = vld [vmem:[%s227 + $0x68] sm:$0xf]
      %v468 = vld [vmem:[%s227 + $0x6c] sm:$0xff]
      %v469 = vld [vmem:[%s227 + $0x74] sm:$0xff]
      %v470 = vld [vmem:[%s227 + $0x7c] sm:$0xff]
      %v471 = vld [vmem:[%s227 + $0x84] sm:$0xff]
      %v472 = vld [vmem:[%s227 + $0x8c] sm:$0xf]
      %v473 = vld [vmem:[%s227 + $0x90] sm:$0xff]
      %v474 = vld [vmem:[%s227 + $0x98] sm:$0xff]
      %v475 = vld [vmem:[%s227 + $0xa0] sm:$0xff]
      %v476 = vld [vmem:[%s227 + $0xa8] sm:$0xff]
      %v477 = vld [vmem:[%s227 + $0xb0] sm:$0xf]
      %v478 = vld [vmem:[%s227 + $0xb4] sm:$0xff]
      %v479 = vld [vmem:[%s227 + $0xbc] sm:$0xff]
      %v480 = vld [vmem:[%s227 + $0xc4] sm:$0xff]
      %v481 = vld [vmem:[%s227 + $0xcc] sm:$0xff]
      %v482 = vld [vmem:[%s227 + $0xd4] sm:$0xf]
      %v483 = vld [vmem:[%s227 + $0xd8] sm:$0xff]
      %v484 = vld [vmem:[%s227 + $0xe0] sm:$0xff]
      %v485 = vld [vmem:[%s227 + $0xe8] sm:$0xff]
      %v486 = vld [vmem:[%s227 + $0xf0] sm:$0xff]
      %v487 = vld [vmem:[%s227 + $0xf8] sm:$0xf]
      %v488 = vld [vmem:[%s227 + $0xfc] sm:$0xff]
      %v489 = vld [vmem:[%s227 + $0x104] sm:$0xff]
      %v490 = vld [vmem:[%s227 + $0x10c] sm:$0xff]
      %v491 = vld [vmem:[%s227 + $0x114] sm:$0xff]
      %v492 = vld [vmem:[%s227 + $0x11c] sm:$0xf]
      %v493 = vld [vmem:[%s227 + $0x120] sm:$0xff]
      %v494 = vld [vmem:[%s227 + $0x128] sm:$0xff]
      %v495 = vld [vmem:[%s227 + $0x130] sm:$0xff]
      %v496 = vld [vmem:[%s227 + $0x138] sm:$0xff]
      %v497 = vld [vmem:[%s227 + $0x140] sm:$0xf]
      %v498 = vld [vmem:[%s227 + $0x144] sm:$0xff]
      %v499 = vld [vmem:[%s227 + $0x14c] sm:$0xff]
      %v500 = vld [vmem:[%s227 + $0x154] sm:$0xff]
      %v501 = vld [vmem:[%s227 + $0x15c] sm:$0xff]
      %v502 = vld [vmem:[%s227 + $0x164] sm:$0xf]
      %v503 = vld [vmem:[%s227 + $0x168] sm:$0xff]
      %v504 = vld [vmem:[%s227 + $0x170] sm:$0xff]
      %v505 = vld [vmem:[%s227 + $0x178] sm:$0xff]
      %v506 = vld [vmem:[%s227 + $0x180] sm:$0xff]
      %v507 = vld [vmem:[%s227 + $0x188] sm:$0xf]
      %v508 = vld [vmem:[%s227 + $0x18c] sm:$0xff]
      %v509 = vld [vmem:[%s227 + $0x194] sm:$0xff]
      %v510 = vld [vmem:[%s227 + $0x19c] sm:$0xff]
      %v511 = vld [vmem:[%s227 + $0x1a4] sm:$0xff]
      %v512 = vld [vmem:[%s227 + $0x1ac] sm:$0xf]
      %v513 = vld [vmem:[%s227 + $0x1b0] sm:$0xff]
      %v514 = vld [vmem:[%s227 + $0x1b8] sm:$0xff]
      %v515 = vld [vmem:[%s227 + $0x1c0] sm:$0xff]
      %v516 = vld [vmem:[%s227 + $0x1c8] sm:$0xff]
      %v517 = vld [vmem:[%s227 + $0x1d0] sm:$0xf]
      %v518 = vld [vmem:[%s227 + $0x1d4] sm:$0xff]
      %v519 = vld [vmem:[%s227 + $0x1dc] sm:$0xff]
      %v520 = vld [vmem:[%s227 + $0x1e4] sm:$0xff]
      %v521 = vld [vmem:[%s227 + $0x1ec] sm:$0xff]
      %v522 = vld [vmem:[%s227 + $0x1f4] sm:$0xf]
      %v523 = vld [vmem:[%s227 + $0x1f8] sm:$0xff]
      %v524 = vld [vmem:[%s227 + $0x200] sm:$0xff]
      %v525 = vld [vmem:[%s227 + $0x208] sm:$0xff]
      %v526 = vld [vmem:[%s227 + $0x210] sm:$0xff]
      %v527 = vld [vmem:[%s227 + $0x218] sm:$0xf]
      %v528 = vld [vmem:[%s227 + $0x21c] sm:$0xff]
      %v529 = vld [vmem:[%s227 + $0x224] sm:$0xff]
      %v530 = vld [vmem:[%s227 + $0x22c] sm:$0xff]
      %v531 = vld [vmem:[%s227 + $0x234] sm:$0xff]
      %v532 = vld [vmem:[%s227 + $0x23c] sm:$0xf]
      %v533 = vld [vmem:[%s227 + $0x240] sm:$0xff]
      %v534 = vld [vmem:[%s227 + $0x248] sm:$0xff]
      %v535 = vld [vmem:[%s227 + $0x250] sm:$0xff]
      %v536 = vld [vmem:[%s227 + $0x258] sm:$0xff]
      %v537 = vld [vmem:[%s227 + $0x260] sm:$0xf]
      %v538 = vld [vmem:[%s227 + $0x264] sm:$0xff]
      %v539 = vld [vmem:[%s227 + $0x26c] sm:$0xff]
      %v540 = vld [vmem:[%s227 + $0x274] sm:$0xff]
      %v541 = vld [vmem:[%s227 + $0x27c] sm:$0xff]
      %v542 = vld [vmem:[%s227 + $0x284] sm:$0xf]
      %s543 = scalar_lea.vmem %s1, 576
      %v544 = vld [vmem:[%s543] sm:$0xf]
      %v545 = vld [vmem:[%s543 + $0x4] sm:$0xf]
      %v546 = vld [vmem:[%s543 + $0x8] sm:$0xf]
      %v547 = vld [vmem:[%s543 + $0xc] sm:$0xf]
      %v548 = vld [vmem:[%s543 + $0x10] sm:$0xf]
      %v549 = vld [vmem:[%s543 + $0x14] sm:$0xf]
      %v550 = vld [vmem:[%s543 + $0x18] sm:$0xf]
      %v551 = vld [vmem:[%s543 + $0x1c] sm:$0xf]
      %v552 = vld [vmem:[%s543 + $0x20] sm:$0xf]
      %v553 = vld [vmem:[%s543 + $0x24] sm:$0xf]
      %v554 = vld [vmem:[%s543 + $0x28] sm:$0xf]
      %v555 = vld [vmem:[%s543 + $0x2c] sm:$0xf]
      %v556 = vld [vmem:[%s543 + $0x30] sm:$0xf]
      %v557 = vld [vmem:[%s543 + $0x34] sm:$0xf]
      %v558 = vld [vmem:[%s543 + $0x38] sm:$0xf]
      %v559 = vld [vmem:[%s543 + $0x3c] sm:$0xf]
      %v560 = vld [vmem:[%s543 + $0x40] sm:$0xf]
      %v561 = vld [vmem:[%s543 + $0x44] sm:$0xf]
      %v562 = vld [vmem:[%s543 + $0x48] sm:$0xf]
      %v563 = vld [vmem:[%s543 + $0x4c] sm:$0xf]
      %v564 = vld [vmem:[%s543 + $0x50] sm:$0xf]
      %v565 = vld [vmem:[%s543 + $0x54] sm:$0xf]
      %v566 = vld [vmem:[%s543 + $0x58] sm:$0xf]
      %v567 = vld [vmem:[%s543 + $0x5c] sm:$0xf]
      %v568 = vld [vmem:[%s543 + $0x60] sm:$0xf]
      %v569 = vld [vmem:[%s543 + $0x64] sm:$0xf]
      %v570 = vld [vmem:[%s543 + $0x68] sm:$0xf]
      %v571 = vld [vmem:[%s543 + $0x6c] sm:$0xf]
      %v572 = vld [vmem:[%s543 + $0x70] sm:$0xf]
      %v573 = vld [vmem:[%s543 + $0x74] sm:$0xf]
      %v574 = vld [vmem:[%s543 + $0x78] sm:$0xf]
      %v575 = vld [vmem:[%s543 + $0x7c] sm:$0xf]
      %v576 = vld [vmem:[%s543 + $0x80] sm:$0xf]
      %v577 = vld [vmem:[%s543 + $0x84] sm:$0xf]
      %v578 = vld [vmem:[%s543 + $0x88] sm:$0xf]
      %v579 = vld [vmem:[%s543 + $0x8c] sm:$0xf]
      %v580 = vld [vmem:[%s543 + $0x90] sm:$0xf]
      %v581 = vld [vmem:[%s543 + $0x94] sm:$0xf]
      %v582 = vld [vmem:[%s543 + $0x98] sm:$0xf]
      %v583 = vld [vmem:[%s543 + $0x9c] sm:$0xf]
      %v584 = vld [vmem:[%s543 + $0xa0] sm:$0xf]
      %v585 = vld [vmem:[%s543 + $0xa4] sm:$0xf]
      %v586 = vld [vmem:[%s543 + $0xa8] sm:$0xf]
      %v587 = vld [vmem:[%s543 + $0xac] sm:$0xf]
      %v588 = vld [vmem:[%s543 + $0xb0] sm:$0xf]
      %v589 = vld [vmem:[%s543 + $0xb4] sm:$0xf]
      %v590 = vld [vmem:[%s543 + $0xb8] sm:$0xf]
      %v591 = vld [vmem:[%s543 + $0xbc] sm:$0xf]
      %v592 = vld [vmem:[%s543 + $0xc0] sm:$0xf]
      %v593 = vld [vmem:[%s543 + $0xc4] sm:$0xf]
      %v594 = vld [vmem:[%s543 + $0xc8] sm:$0xf]
      %v595 = vld [vmem:[%s543 + $0xcc] sm:$0xf]
      %v596 = vld [vmem:[%s543 + $0xd0] sm:$0xf]
      %v597 = vld [vmem:[%s543 + $0xd4] sm:$0xf]
      %v598 = vld [vmem:[%s543 + $0xd8] sm:$0xf]
      %v599 = vld [vmem:[%s543 + $0xdc] sm:$0xf]
      %v600 = vld [vmem:[%s543 + $0xe0] sm:$0xf]
      %v601 = vld [vmem:[%s543 + $0xe4] sm:$0xf]
      %v602 = vld [vmem:[%s543 + $0xe8] sm:$0xf]
      %v603 = vld [vmem:[%s543 + $0xec] sm:$0xf]
      %v604 = vld [vmem:[%s543 + $0xf0] sm:$0xf]
      %v605 = vld [vmem:[%s543 + $0xf4] sm:$0xf]
      %v606 = vld [vmem:[%s543 + $0xf8] sm:$0xf]
      %v607 = vld [vmem:[%s543 + $0xfc] sm:$0xf]
      %v608 = vld [vmem:[%s543 + $0x100] sm:$0xf]
      %v609 = vld [vmem:[%s543 + $0x104] sm:$0xf]
      %v610 = vld [vmem:[%s543 + $0x108] sm:$0xf]
      %v611 = vld [vmem:[%s543 + $0x10c] sm:$0xf]
      %v612 = vld [vmem:[%s543 + $0x110] sm:$0xf]
      %v613 = vld [vmem:[%s543 + $0x114] sm:$0xf]
      %v614 = vld [vmem:[%s543 + $0x118] sm:$0xf]
      %v615 = vld [vmem:[%s543 + $0x11c] sm:$0xf]
      %v616 = vld [vmem:[%s543 + $0x120] sm:$0xf]
      %v617 = vld [vmem:[%s543 + $0x124] sm:$0xf]
      %v618 = vld [vmem:[%s543 + $0x128] sm:$0xf]
      %v619 = vld [vmem:[%s543 + $0x12c] sm:$0xf]
      %v620 = vld [vmem:[%s543 + $0x130] sm:$0xf]
      %v621 = vld [vmem:[%s543 + $0x134] sm:$0xf]
      %v622 = vld [vmem:[%s543 + $0x138] sm:$0xf]
      %v623 = vld [vmem:[%s543 + $0x13c] sm:$0xf]
      %v624 = vld [vmem:[%s543 + $0x140] sm:$0xf]
      %v625 = vld [vmem:[%s543 + $0x144] sm:$0xf]
      %v626 = vld [vmem:[%s543 + $0x148] sm:$0xf]
      %v627 = vld [vmem:[%s543 + $0x14c] sm:$0xf]
      %v628 = vld [vmem:[%s543 + $0x150] sm:$0xf]
      %v629 = vld [vmem:[%s543 + $0x154] sm:$0xf]
      %v630 = vld [vmem:[%s543 + $0x158] sm:$0xf]
      %v631 = vld [vmem:[%s543 + $0x15c] sm:$0xf]
      %v632 = vld [vmem:[%s543 + $0x160] sm:$0xf]
      %v633 = vld [vmem:[%s543 + $0x164] sm:$0xf]
      %v634 = vld [vmem:[%s543 + $0x168] sm:$0xf]
      %v635 = vld [vmem:[%s543 + $0x16c] sm:$0xf]
      %v636 = vld [vmem:[%s543 + $0x170] sm:$0xf]
      %v637 = vld [vmem:[%s543 + $0x174] sm:$0xf]
      %v638 = vld [vmem:[%s543 + $0x178] sm:$0xf]
      %v639 = vld [vmem:[%s543 + $0x17c] sm:$0xf]
      %v640 = vld [vmem:[%s543 + $0x180] sm:$0xf]
      %v641 = vld [vmem:[%s543 + $0x184] sm:$0xf]
      %v642 = vld [vmem:[%s543 + $0x188] sm:$0xf]
      %v643 = vld [vmem:[%s543 + $0x18c] sm:$0xf]
      %v644 = vld [vmem:[%s543 + $0x190] sm:$0xf]
      %v645 = vld [vmem:[%s543 + $0x194] sm:$0xf]
      %v646 = vld [vmem:[%s543 + $0x198] sm:$0xf]
      %v647 = vld [vmem:[%s543 + $0x19c] sm:$0xf]
      %v648 = vld [vmem:[%s543 + $0x1a0] sm:$0xf]
      %v649 = vld [vmem:[%s543 + $0x1a4] sm:$0xf]
      %v650 = vld [vmem:[%s543 + $0x1a8] sm:$0xf]
      %v651 = vld [vmem:[%s543 + $0x1ac] sm:$0xf]
      %v652 = vld [vmem:[%s543 + $0x1b0] sm:$0xf]
      %v653 = vld [vmem:[%s543 + $0x1b4] sm:$0xf]
      %v654 = vld [vmem:[%s543 + $0x1b8] sm:$0xf]
      %v655 = vld [vmem:[%s543 + $0x1bc] sm:$0xf]
      %v656 = vld [vmem:[%s543 + $0x1c0] sm:$0xf]
      %v657 = vld [vmem:[%s543 + $0x1c4] sm:$0xf]
      %v658 = vld [vmem:[%s543 + $0x1c8] sm:$0xf]
      %v659 = vld [vmem:[%s543 + $0x1cc] sm:$0xf]
      %v660 = vld [vmem:[%s543 + $0x1d0] sm:$0xf]
      %v661 = vld [vmem:[%s543 + $0x1d4] sm:$0xf]
      %v662 = vld [vmem:[%s543 + $0x1d8] sm:$0xf]
      %v663 = vld [vmem:[%s543 + $0x1dc] sm:$0xf]
      %v664 = vld [vmem:[%s543 + $0x1e0] sm:$0xf]
      %v665 = vld [vmem:[%s543 + $0x1e4] sm:$0xf]
      %v666 = vld [vmem:[%s543 + $0x1e8] sm:$0xf]
      %v667 = vld [vmem:[%s543 + $0x1ec] sm:$0xf]
      %v668 = vld [vmem:[%s543 + $0x1f0] sm:$0xf]
      %v669 = vld [vmem:[%s543 + $0x1f4] sm:$0xf]
      %v670 = vld [vmem:[%s543 + $0x1f8] sm:$0xf]
      %v671 = vld [vmem:[%s543 + $0x1fc] sm:$0xf]
      %v672 = vld [vmem:[%s543 + $0x200] sm:$0xf]
      %v673 = vld [vmem:[%s543 + $0x204] sm:$0xf]
      %v674 = vld [vmem:[%s543 + $0x208] sm:$0xf]
      %v675 = vld [vmem:[%s543 + $0x20c] sm:$0xf]
      %v676 = vld [vmem:[%s543 + $0x210] sm:$0xf]
      %v677 = vld [vmem:[%s543 + $0x214] sm:$0xf]
      %v678 = vld [vmem:[%s543 + $0x218] sm:$0xf]
      %v679 = vld [vmem:[%s543 + $0x21c] sm:$0xf]
      %v680 = vld [vmem:[%s543 + $0x220] sm:$0xf]
      %v681 = vld [vmem:[%s543 + $0x224] sm:$0xf]
      %v682 = vld [vmem:[%s543 + $0x228] sm:$0xf]
      %v683 = vld [vmem:[%s543 + $0x22c] sm:$0xf]
      %v684 = vld [vmem:[%s543 + $0x230] sm:$0xf]
      %v685 = vld [vmem:[%s543 + $0x234] sm:$0xf]
      %v686 = vld [vmem:[%s543 + $0x238] sm:$0xf]
      %v687 = vld [vmem:[%s543 + $0x23c] sm:$0xf]
      %v768 = vunpack.c.l.b16 %v463
      %v769 = vunpack.c.h.b16 %v463
      %v770 = vunpack.c.l.b16 %v464
      %v771 = vunpack.c.h.b16 %v464
      %v772 = vunpack.c.l.b16 %v465
      %v773 = vunpack.c.h.b16 %v465
      %v774 = vunpack.c.l.b16 %v466
      %v775 = vunpack.c.h.b16 %v466
      %v776 = vunpack.c.l.b16 %v467
      %v777 = vunpack.c.l.b16 %v468
      %v778 = vunpack.c.h.b16 %v468
      %v779 = vunpack.c.l.b16 %v469
      %v780 = vunpack.c.h.b16 %v469
      %v781 = vunpack.c.l.b16 %v470
      %v782 = vunpack.c.h.b16 %v470
      %v783 = vunpack.c.l.b16 %v471
      %v784 = vunpack.c.h.b16 %v471
      %v785 = vunpack.c.l.b16 %v472
      %v786 = vunpack.c.l.b16 %v473
      %v787 = vunpack.c.h.b16 %v473
      %v788 = vunpack.c.l.b16 %v474
      %v789 = vunpack.c.h.b16 %v474
      %v790 = vunpack.c.l.b16 %v475
      %v791 = vunpack.c.h.b16 %v475
      %v792 = vunpack.c.l.b16 %v476
      %v793 = vunpack.c.h.b16 %v476
      %v794 = vunpack.c.l.b16 %v477
      %v795 = vunpack.c.l.b16 %v478
      %v796 = vunpack.c.h.b16 %v478
      %v797 = vunpack.c.l.b16 %v479
      %v798 = vunpack.c.h.b16 %v479
      %v799 = vunpack.c.l.b16 %v480
      %v800 = vunpack.c.h.b16 %v480
      %v801 = vunpack.c.l.b16 %v481
      %v802 = vunpack.c.h.b16 %v481
      %v803 = vunpack.c.l.b16 %v482
      %v804 = vunpack.c.l.b16 %v483
      %v805 = vunpack.c.h.b16 %v483
      %v806 = vunpack.c.l.b16 %v484
      %v807 = vunpack.c.h.b16 %v484
      %v808 = vunpack.c.l.b16 %v485
      %v809 = vunpack.c.h.b16 %v485
      %v810 = vunpack.c.l.b16 %v486
      %v811 = vunpack.c.h.b16 %v486
      %v812 = vunpack.c.l.b16 %v487
      %v813 = vunpack.c.l.b16 %v488
      %v814 = vunpack.c.h.b16 %v488
      %v815 = vunpack.c.l.b16 %v489
      %v816 = vunpack.c.h.b16 %v489
      %v817 = vunpack.c.l.b16 %v490
      %v818 = vunpack.c.h.b16 %v490
      %v819 = vunpack.c.l.b16 %v491
      %v820 = vunpack.c.h.b16 %v491
      %v821 = vunpack.c.l.b16 %v492
      %v822 = vunpack.c.l.b16 %v493
      %v823 = vunpack.c.h.b16 %v493
      %v824 = vunpack.c.l.b16 %v494
      %v825 = vunpack.c.h.b16 %v494
      %v826 = vunpack.c.l.b16 %v495
      %v827 = vunpack.c.h.b16 %v495
      %v828 = vunpack.c.l.b16 %v496
      %v829 = vunpack.c.h.b16 %v496
      %v830 = vunpack.c.l.b16 %v497
      %v831 = vunpack.c.l.b16 %v498
      %v832 = vunpack.c.h.b16 %v498
      %v833 = vunpack.c.l.b16 %v499
      %v834 = vunpack.c.h.b16 %v499
      %v835 = vunpack.c.l.b16 %v500
      %v836 = vunpack.c.h.b16 %v500
      %v837 = vunpack.c.l.b16 %v501
      %v838 = vunpack.c.h.b16 %v501
      %v839 = vunpack.c.l.b16 %v502
      %v840 = vunpack.c.l.b16 %v503
      %v841 = vunpack.c.h.b16 %v503
      %v842 = vunpack.c.l.b16 %v504
      %v843 = vunpack.c.h.b16 %v504
      %v844 = vunpack.c.l.b16 %v505
      %v845 = vunpack.c.h.b16 %v505
      %v846 = vunpack.c.l.b16 %v506
      %v847 = vunpack.c.h.b16 %v506
      %v848 = vunpack.c.l.b16 %v507
      %v849 = vunpack.c.l.b16 %v508
      %v850 = vunpack.c.h.b16 %v508
      %v851 = vunpack.c.l.b16 %v509
      %v852 = vunpack.c.h.b16 %v509
      %v853 = vunpack.c.l.b16 %v510
      %v854 = vunpack.c.h.b16 %v510
      %v855 = vunpack.c.l.b16 %v511
      %v856 = vunpack.c.h.b16 %v511
      %v857 = vunpack.c.l.b16 %v512
      %v858 = vunpack.c.l.b16 %v513
      %v859 = vunpack.c.h.b16 %v513
      %v860 = vunpack.c.l.b16 %v514
      %v861 = vunpack.c.h.b16 %v514
      %v862 = vunpack.c.l.b16 %v515
      %v863 = vunpack.c.h.b16 %v515
      %v864 = vunpack.c.l.b16 %v516
      %v865 = vunpack.c.h.b16 %v516
      %v866 = vunpack.c.l.b16 %v517
      %v867 = vunpack.c.l.b16 %v518
      %v868 = vunpack.c.h.b16 %v518
      %v869 = vunpack.c.l.b16 %v519
      %v870 = vunpack.c.h.b16 %v519
      %v871 = vunpack.c.l.b16 %v520
      %v872 = vunpack.c.h.b16 %v520
      %v873 = vunpack.c.l.b16 %v521
      %v874 = vunpack.c.h.b16 %v521
      %v875 = vunpack.c.l.b16 %v522
      %v876 = vunpack.c.l.b16 %v523
      %v877 = vunpack.c.h.b16 %v523
      %v878 = vunpack.c.l.b16 %v524
      %v879 = vunpack.c.h.b16 %v524
      %v880 = vunpack.c.l.b16 %v525
      %v881 = vunpack.c.h.b16 %v525
      %v882 = vunpack.c.l.b16 %v526
      %v883 = vunpack.c.h.b16 %v526
      %v884 = vunpack.c.l.b16 %v527
      %v885 = vunpack.c.l.b16 %v528
      %v886 = vunpack.c.h.b16 %v528
      %v887 = vunpack.c.l.b16 %v529
      %v888 = vunpack.c.h.b16 %v529
      %v889 = vunpack.c.l.b16 %v530
      %v890 = vunpack.c.h.b16 %v530
      %v891 = vunpack.c.l.b16 %v531
      %v892 = vunpack.c.h.b16 %v531
      %v893 = vunpack.c.l.b16 %v532
      %v894 = vunpack.c.l.b16 %v533
      %v895 = vunpack.c.h.b16 %v533
      %v896 = vunpack.c.l.b16 %v534
      %v897 = vunpack.c.h.b16 %v534
      %v898 = vunpack.c.l.b16 %v535
      %v899 = vunpack.c.h.b16 %v535
      %v900 = vunpack.c.l.b16 %v536
      %v901 = vunpack.c.h.b16 %v536
      %v902 = vunpack.c.l.b16 %v537
      %v903 = vunpack.c.l.b16 %v538
      %v904 = vunpack.c.h.b16 %v538
      %v905 = vunpack.c.l.b16 %v539
      %v906 = vunpack.c.h.b16 %v539
      %v907 = vunpack.c.l.b16 %v540
      %v908 = vunpack.c.h.b16 %v540
      %v909 = vunpack.c.l.b16 %v541
      %v910 = vunpack.c.h.b16 %v541
      %v911 = vunpack.c.l.b16 %v542
      %v912 = vpack.c.b16 %v777, %v768
      %v913 = vpack.c.b16 %v778, %v769
      %v914 = vpack.c.b16 %v779, %v770
      %v915 = vpack.c.b16 %v780, %v771
      %v916 = vpack.c.b16 %v781, %v772
      %v917 = vpack.c.b16 %v782, %v773
      %v918 = vpack.c.b16 %v783, %v774
      %v919 = vpack.c.b16 %v784, %v775
      %v920 = vpack.c.b16 %v785, %v776
      %v921 = vpack.c.b16 %v795, %v786
      %v922 = vpack.c.b16 %v796, %v787
      %v923 = vpack.c.b16 %v797, %v788
      %v924 = vpack.c.b16 %v798, %v789
      %v925 = vpack.c.b16 %v799, %v790
      %v926 = vpack.c.b16 %v800, %v791
      %v927 = vpack.c.b16 %v801, %v792
      %v928 = vpack.c.b16 %v802, %v793
      %v929 = vpack.c.b16 %v803, %v794
      %v930 = vpack.c.b16 %v813, %v804
      %v931 = vpack.c.b16 %v814, %v805
      %v932 = vpack.c.b16 %v815, %v806
      %v933 = vpack.c.b16 %v816, %v807
      %v934 = vpack.c.b16 %v817, %v808
      %v935 = vpack.c.b16 %v818, %v809
      %v936 = vpack.c.b16 %v819, %v810
      %v937 = vpack.c.b16 %v820, %v811
      %v938 = vpack.c.b16 %v821, %v812
      %v939 = vpack.c.b16 %v831, %v822
      %v940 = vpack.c.b16 %v832, %v823
      %v941 = vpack.c.b16 %v833, %v824
      %v942 = vpack.c.b16 %v834, %v825
      %v943 = vpack.c.b16 %v835, %v826
      %v944 = vpack.c.b16 %v836, %v827
      %v945 = vpack.c.b16 %v837, %v828
      %v946 = vpack.c.b16 %v838, %v829
      %v947 = vpack.c.b16 %v839, %v830
      %v948 = vpack.c.b16 %v849, %v840
      %v949 = vpack.c.b16 %v850, %v841
      %v950 = vpack.c.b16 %v851, %v842
      %v951 = vpack.c.b16 %v852, %v843
      %v952 = vpack.c.b16 %v853, %v844
      %v953 = vpack.c.b16 %v854, %v845
      %v954 = vpack.c.b16 %v855, %v846
      %v955 = vpack.c.b16 %v856, %v847
      %v956 = vpack.c.b16 %v857, %v848
      %v957 = vpack.c.b16 %v867, %v858
      %v958 = vpack.c.b16 %v868, %v859
      %v959 = vpack.c.b16 %v869, %v860
      %v960 = vpack.c.b16 %v870, %v861
      %v961 = vpack.c.b16 %v871, %v862
      %v962 = vpack.c.b16 %v872, %v863
      %v963 = vpack.c.b16 %v873, %v864
      %v964 = vpack.c.b16 %v874, %v865
      %v965 = vpack.c.b16 %v875, %v866
      %v966 = vpack.c.b16 %v885, %v876
      %v967 = vpack.c.b16 %v886, %v877
      %v968 = vpack.c.b16 %v887, %v878
      %v969 = vpack.c.b16 %v888, %v879
      %v970 = vpack.c.b16 %v889, %v880
      %v971 = vpack.c.b16 %v890, %v881
      %v972 = vpack.c.b16 %v891, %v882
      %v973 = vpack.c.b16 %v892, %v883
      %v974 = vpack.c.b16 %v893, %v884
      %v975 = vpack.c.b16 %v903, %v894
      %v976 = vpack.c.b16 %v904, %v895
      %v977 = vpack.c.b16 %v905, %v896
      %v978 = vpack.c.b16 %v906, %v897
      %v979 = vpack.c.b16 %v907, %v898
      %v980 = vpack.c.b16 %v908, %v899
      %v981 = vpack.c.b16 %v909, %v900
      %v982 = vpack.c.b16 %v910, %v901
      %v983 = vpack.c.b16 %v911, %v902
      %v1200 = vunpack.c.l.b16 %v544
      %v1201 = vunpack.c.l.b16 %v545
      %v1202 = vunpack.c.l.b16 %v546
      %v1203 = vunpack.c.l.b16 %v547
      %v1204 = vunpack.c.l.b16 %v548
      %v1205 = vunpack.c.l.b16 %v549
      %v1206 = vunpack.c.l.b16 %v550
      %v1207 = vunpack.c.l.b16 %v551
      %v1208 = vunpack.c.l.b16 %v552
      %v1209 = vunpack.c.l.b16 %v553
      %v1210 = vunpack.c.l.b16 %v554
      %v1211 = vunpack.c.l.b16 %v555
      %v1212 = vunpack.c.l.b16 %v556
      %v1213 = vunpack.c.l.b16 %v557
      %v1214 = vunpack.c.l.b16 %v558
      %v1215 = vunpack.c.l.b16 %v559
      %v1216 = vunpack.c.l.b16 %v560
      %v1217 = vunpack.c.l.b16 %v561
      %v1218 = vunpack.c.l.b16 %v562
      %v1219 = vunpack.c.l.b16 %v563
      %v1220 = vunpack.c.l.b16 %v564
      %v1221 = vunpack.c.l.b16 %v565
      %v1222 = vunpack.c.l.b16 %v566
      %v1223 = vunpack.c.l.b16 %v567
      %v1224 = vunpack.c.l.b16 %v568
      %v1225 = vunpack.c.l.b16 %v569
      %v1226 = vunpack.c.l.b16 %v570
      %v1227 = vunpack.c.l.b16 %v571
      %v1228 = vunpack.c.l.b16 %v572
      %v1229 = vunpack.c.l.b16 %v573
      %v1230 = vunpack.c.l.b16 %v574
      %v1231 = vunpack.c.l.b16 %v575
      %v1232 = vunpack.c.l.b16 %v576
      %v1233 = vunpack.c.l.b16 %v577
      %v1234 = vunpack.c.l.b16 %v578
      %v1235 = vunpack.c.l.b16 %v579
      %v1236 = vunpack.c.l.b16 %v580
      %v1237 = vunpack.c.l.b16 %v581
      %v1238 = vunpack.c.l.b16 %v582
      %v1239 = vunpack.c.l.b16 %v583
      %v1240 = vunpack.c.l.b16 %v584
      %v1241 = vunpack.c.l.b16 %v585
      %v1242 = vunpack.c.l.b16 %v586
      %v1243 = vunpack.c.l.b16 %v587
      %v1244 = vunpack.c.l.b16 %v588
      %v1245 = vunpack.c.l.b16 %v589
      %v1246 = vunpack.c.l.b16 %v590
      %v1247 = vunpack.c.l.b16 %v591
      %v1248 = vunpack.c.l.b16 %v592
      %v1249 = vunpack.c.l.b16 %v593
      %v1250 = vunpack.c.l.b16 %v594
      %v1251 = vunpack.c.l.b16 %v595
      %v1252 = vunpack.c.l.b16 %v596
      %v1253 = vunpack.c.l.b16 %v597
      %v1254 = vunpack.c.l.b16 %v598
      %v1255 = vunpack.c.l.b16 %v599
      %v1256 = vunpack.c.l.b16 %v600
      %v1257 = vunpack.c.l.b16 %v601
      %v1258 = vunpack.c.l.b16 %v602
      %v1259 = vunpack.c.l.b16 %v603
      %v1260 = vunpack.c.l.b16 %v604
      %v1261 = vunpack.c.l.b16 %v605
      %v1262 = vunpack.c.l.b16 %v606
      %v1263 = vunpack.c.l.b16 %v607
      %v1264 = vunpack.c.l.b16 %v608
      %v1265 = vunpack.c.l.b16 %v609
      %v1266 = vunpack.c.l.b16 %v610
      %v1267 = vunpack.c.l.b16 %v611
      %v1268 = vunpack.c.l.b16 %v612
      %v1269 = vunpack.c.l.b16 %v613
      %v1270 = vunpack.c.l.b16 %v614
      %v1271 = vunpack.c.l.b16 %v615
      %v1272 = vunpack.c.l.b16 %v616
      %v1273 = vunpack.c.l.b16 %v617
      %v1274 = vunpack.c.l.b16 %v618
      %v1275 = vunpack.c.l.b16 %v619
      %v1276 = vunpack.c.l.b16 %v620
      %v1277 = vunpack.c.l.b16 %v621
      %v1278 = vunpack.c.l.b16 %v622
      %v1279 = vunpack.c.l.b16 %v623
      %v1280 = vunpack.c.l.b16 %v624
      %v1281 = vunpack.c.l.b16 %v625
      %v1282 = vunpack.c.l.b16 %v626
      %v1283 = vunpack.c.l.b16 %v627
      %v1284 = vunpack.c.l.b16 %v628
      %v1285 = vunpack.c.l.b16 %v629
      %v1286 = vunpack.c.l.b16 %v630
      %v1287 = vunpack.c.l.b16 %v631
      %v1288 = vunpack.c.l.b16 %v632
      %v1289 = vunpack.c.l.b16 %v633
      %v1290 = vunpack.c.l.b16 %v634
      %v1291 = vunpack.c.l.b16 %v635
      %v1292 = vunpack.c.l.b16 %v636
      %v1293 = vunpack.c.l.b16 %v637
      %v1294 = vunpack.c.l.b16 %v638
      %v1295 = vunpack.c.l.b16 %v639
      %v1296 = vunpack.c.l.b16 %v640
      %v1297 = vunpack.c.l.b16 %v641
      %v1298 = vunpack.c.l.b16 %v642
      %v1299 = vunpack.c.l.b16 %v643
      %v1300 = vunpack.c.l.b16 %v644
      %v1301 = vunpack.c.l.b16 %v645
      %v1302 = vunpack.c.l.b16 %v646
      %v1303 = vunpack.c.l.b16 %v647
      %v1304 = vunpack.c.l.b16 %v648
      %v1305 = vunpack.c.l.b16 %v649
      %v1306 = vunpack.c.l.b16 %v650
      %v1307 = vunpack.c.l.b16 %v651
      %v1308 = vunpack.c.l.b16 %v652
      %v1309 = vunpack.c.l.b16 %v653
      %v1310 = vunpack.c.l.b16 %v654
      %v1311 = vunpack.c.l.b16 %v655
      %v1312 = vunpack.c.l.b16 %v656
      %v1313 = vunpack.c.l.b16 %v657
      %v1314 = vunpack.c.l.b16 %v658
      %v1315 = vunpack.c.l.b16 %v659
      %v1316 = vunpack.c.l.b16 %v660
      %v1317 = vunpack.c.l.b16 %v661
      %v1318 = vunpack.c.l.b16 %v662
      %v1319 = vunpack.c.l.b16 %v663
      %v1320 = vunpack.c.l.b16 %v664
      %v1321 = vunpack.c.l.b16 %v665
      %v1322 = vunpack.c.l.b16 %v666
      %v1323 = vunpack.c.l.b16 %v667
      %v1324 = vunpack.c.l.b16 %v668
      %v1325 = vunpack.c.l.b16 %v669
      %v1326 = vunpack.c.l.b16 %v670
      %v1327 = vunpack.c.l.b16 %v671
      %v1328 = vunpack.c.l.b16 %v672
      %v1329 = vunpack.c.l.b16 %v673
      %v1330 = vunpack.c.l.b16 %v674
      %v1331 = vunpack.c.l.b16 %v675
      %v1332 = vunpack.c.l.b16 %v676
      %v1333 = vunpack.c.l.b16 %v677
      %v1334 = vunpack.c.l.b16 %v678
      %v1335 = vunpack.c.l.b16 %v679
      %v1336 = vunpack.c.l.b16 %v680
      %v1337 = vunpack.c.l.b16 %v681
      %v1338 = vunpack.c.l.b16 %v682
      %v1339 = vunpack.c.l.b16 %v683
      %v1340 = vunpack.c.l.b16 %v684
      %v1341 = vunpack.c.l.b16 %v685
      %v1342 = vunpack.c.l.b16 %v686
      %v1343 = vunpack.c.l.b16 %v687
      %v1344 = vpack.c.b16 %v1201, %v1200
      %v1345 = vpack.c.b16 %v1203, %v1202
      %v1346 = vpack.c.b16 %v1205, %v1204
      %v1347 = vpack.c.b16 %v1207, %v1206
      %v1348 = vpack.c.b16 %v1209, %v1208
      %v1349 = vpack.c.b16 %v1211, %v1210
      %v1350 = vpack.c.b16 %v1213, %v1212
      %v1351 = vpack.c.b16 %v1215, %v1214
      %v1352 = vpack.c.b16 %v1217, %v1216
      %v1353 = vpack.c.b16 %v1219, %v1218
      %v1354 = vpack.c.b16 %v1221, %v1220
      %v1355 = vpack.c.b16 %v1223, %v1222
      %v1356 = vpack.c.b16 %v1225, %v1224
      %v1357 = vpack.c.b16 %v1227, %v1226
      %v1358 = vpack.c.b16 %v1229, %v1228
      %v1359 = vpack.c.b16 %v1231, %v1230
      %v1360 = vpack.c.b16 %v1233, %v1232
      %v1361 = vpack.c.b16 %v1235, %v1234
      %v1362 = vpack.c.b16 %v1237, %v1236
      %v1363 = vpack.c.b16 %v1239, %v1238
      %v1364 = vpack.c.b16 %v1241, %v1240
      %v1365 = vpack.c.b16 %v1243, %v1242
      %v1366 = vpack.c.b16 %v1245, %v1244
      %v1367 = vpack.c.b16 %v1247, %v1246
      %v1368 = vpack.c.b16 %v1249, %v1248
      %v1369 = vpack.c.b16 %v1251, %v1250
      %v1370 = vpack.c.b16 %v1253, %v1252
      %v1371 = vpack.c.b16 %v1255, %v1254
      %v1372 = vpack.c.b16 %v1257, %v1256
      %v1373 = vpack.c.b16 %v1259, %v1258
      %v1374 = vpack.c.b16 %v1261, %v1260
      %v1375 = vpack.c.b16 %v1263, %v1262
      %v1376 = vpack.c.b16 %v1265, %v1264
      %v1377 = vpack.c.b16 %v1267, %v1266
      %v1378 = vpack.c.b16 %v1269, %v1268
      %v1379 = vpack.c.b16 %v1271, %v1270
      %v1380 = vpack.c.b16 %v1273, %v1272
      %v1381 = vpack.c.b16 %v1275, %v1274
      %v1382 = vpack.c.b16 %v1277, %v1276
      %v1383 = vpack.c.b16 %v1279, %v1278
      %v1384 = vpack.c.b16 %v1281, %v1280
      %v1385 = vpack.c.b16 %v1283, %v1282
      %v1386 = vpack.c.b16 %v1285, %v1284
      %v1387 = vpack.c.b16 %v1287, %v1286
      %v1388 = vpack.c.b16 %v1289, %v1288
      %v1389 = vpack.c.b16 %v1291, %v1290
      %v1390 = vpack.c.b16 %v1293, %v1292
      %v1391 = vpack.c.b16 %v1295, %v1294
      %v1392 = vpack.c.b16 %v1297, %v1296
      %v1393 = vpack.c.b16 %v1299, %v1298
      %v1394 = vpack.c.b16 %v1301, %v1300
      %v1395 = vpack.c.b16 %v1303, %v1302
      %v1396 = vpack.c.b16 %v1305, %v1304
      %v1397 = vpack.c.b16 %v1307, %v1306
      %v1398 = vpack.c.b16 %v1309, %v1308
      %v1399 = vpack.c.b16 %v1311, %v1310
      %v1400 = vpack.c.b16 %v1313, %v1312
      %v1401 = vpack.c.b16 %v1315, %v1314
      %v1402 = vpack.c.b16 %v1317, %v1316
      %v1403 = vpack.c.b16 %v1319, %v1318
      %v1404 = vpack.c.b16 %v1321, %v1320
      %v1405 = vpack.c.b16 %v1323, %v1322
      %v1406 = vpack.c.b16 %v1325, %v1324
      %v1407 = vpack.c.b16 %v1327, %v1326
      %v1408 = vpack.c.b16 %v1329, %v1328
      %v1409 = vpack.c.b16 %v1331, %v1330
      %v1410 = vpack.c.b16 %v1333, %v1332
      %v1411 = vpack.c.b16 %v1335, %v1334
      %v1412 = vpack.c.b16 %v1337, %v1336
      %v1413 = vpack.c.b16 %v1339, %v1338
      %v1414 = vpack.c.b16 %v1341, %v1340
      %v1415 = vpack.c.b16 %v1343, %v1342
      %1488 = vmatprep.subr.bf16.mxu0 0
      %1489 = vmatpush1.bf16.msra.mxu0 %v1351
      %1490 = vmatprep.subr.bf16.mxu0 0
      %1491 = vmatpush1.bf16.msra.mxu0 %v1350
      %1492 = vmatprep.subr.bf16.mxu0 0
      %1493 = vmatpush1.bf16.msra.mxu0 %v1349
      %1494 = vmatprep.subr.bf16.mxu0 0
      %1495 = vmatpush1.bf16.msra.mxu0 %v1348
      %1496 = vmatprep.subr.bf16.mxu0 0
      %1497 = vmatpush1.bf16.msra.mxu0 %v1347
      %1498 = vmatprep.subr.bf16.mxu0 0
      %1499 = vmatpush1.bf16.msra.mxu0 %v1346
      %1500 = vmatprep.subr.bf16.mxu0 0
      %1501 = vmatpush1.bf16.msra.mxu0 %v1345
      %1502 = vmatprep.subr.bf16.mxu0 0
      %1503 = vmatpush1.bf16.msra.mxu0 %v1344
      %1504 = vmatprep.subr.bf16.mxu0 0
      %1505 = vmatpush2.bf16.msra.mxu0 %v1359
      %1506 = vmatprep.subr.bf16.mxu0 0
      %1507 = vmatpush2.bf16.msra.mxu0 %v1358
      %1508 = vmatprep.subr.bf16.mxu0 0
      %1509 = vmatpush2.bf16.msra.mxu0 %v1357
      %1510 = vmatprep.subr.bf16.mxu0 0
      %1511 = vmatpush2.bf16.msra.mxu0 %v1356
      %1512 = vmatprep.subr.bf16.mxu0 0
      %1513 = vmatpush2.bf16.msra.mxu0 %v1355
      %1514 = vmatprep.subr.bf16.mxu0 0
      %1515 = vmatpush2.bf16.msra.mxu0 %v1354
      %1516 = vmatprep.subr.bf16.mxu0 0
      %1517 = vmatpush2.bf16.msra.mxu0 %v1353
      %1518 = vmatprep.subr.bf16.mxu0 0
      %1519 = vmatpush2.bf16.msra.mxu0 %v1352
      %1520 = vmatprep.mubr.bf16.mxu0 %v913
      %1521 = vmatmul.mubr.bf16.gmra.mxu0 %v912
      %v1522 = vpop.f32.mrf.mxu0
      %v1523 = vadd.f32 0.0, %v1522
      %v1524 = vpop.f32.mrf.mxu0
      %v1525 = vpop.f32.mrf.mxu0
      %v1526 = vadd.f32 0.0, %v1525
      %v1527 = vpop.f32.mrf.mxu0
      %1528 = vmatprep.mubr.bf16.mxu0 %v922
      %1529 = vmatmul.mubr.bf16.gmra.mxu0 %v921
      %v1530 = vpop.f32.mrf.mxu0
      %v1531 = vadd.f32 0.0, %v1530
      %v1532 = vpop.f32.mrf.mxu0
      %v1533 = vpop.f32.mrf.mxu0
      %v1534 = vadd.f32 0.0, %v1533
      %v1535 = vpop.f32.mrf.mxu0
      %1536 = vmatprep.mubr.bf16.mxu0 %v931
      %1537 = vmatmul.mubr.bf16.gmra.mxu0 %v930
      %v1538 = vpop.f32.mrf.mxu0
      %v1539 = vadd.f32 0.0, %v1538
      %v1540 = vpop.f32.mrf.mxu0
      %v1541 = vpop.f32.mrf.mxu0
      %v1542 = vadd.f32 0.0, %v1541
      %v1543 = vpop.f32.mrf.mxu0
      %1544 = vmatprep.mubr.bf16.mxu0 %v940
      %1545 = vmatmul.mubr.bf16.gmra.mxu0 %v939
      %v1546 = vpop.f32.mrf.mxu0
      %v1547 = vadd.f32 0.0, %v1546
      %v1548 = vpop.f32.mrf.mxu0
      %v1549 = vpop.f32.mrf.mxu0
      %v1550 = vadd.f32 0.0, %v1549
      %v1551 = vpop.f32.mrf.mxu0
      %1552 = vmatprep.mubr.bf16.mxu0 %v949
      %1553 = vmatmul.mubr.bf16.gmra.mxu0 %v948
      %v1554 = vpop.f32.mrf.mxu0
      %v1555 = vadd.f32 0.0, %v1554
      %v1556 = vpop.f32.mrf.mxu0
      %v1557 = vpop.f32.mrf.mxu0
      %v1558 = vadd.f32 0.0, %v1557
      %v1559 = vpop.f32.mrf.mxu0
      %1560 = vmatprep.mubr.bf16.mxu0 %v958
      %1561 = vmatmul.mubr.bf16.gmra.mxu0 %v957
      %v1562 = vpop.f32.mrf.mxu0
      %v1563 = vadd.f32 0.0, %v1562
      %v1564 = vpop.f32.mrf.mxu0
      %v1565 = vpop.f32.mrf.mxu0
      %v1566 = vadd.f32 0.0, %v1565
      %v1567 = vpop.f32.mrf.mxu0
      %1568 = vmatprep.mubr.bf16.mxu0 %v967
      %1569 = vmatmul.mubr.bf16.gmra.mxu0 %v966
      %v1570 = vpop.f32.mrf.mxu0
      %v1571 = vadd.f32 0.0, %v1570
      %v1572 = vpop.f32.mrf.mxu0
      %v1573 = vpop.f32.mrf.mxu0
      %v1574 = vadd.f32 0.0, %v1573
      %v1575 = vpop.f32.mrf.mxu0
      %1576 = vmatprep.mubr.bf16.mxu0 %v976
      %1577 = vmatmul.mubr.bf16.gmra.mxu0 %v975
      %v1578 = vpop.f32.mrf.mxu0
      %v1579 = vadd.f32 0.0, %v1578
      %v1580 = vpop.f32.mrf.mxu0
      %v1581 = vpop.f32.mrf.mxu0
      %v1582 = vadd.f32 0.0, %v1581
      %v1583 = vpop.f32.mrf.mxu0
      %1584 = vdwg.mxu0
      %1585 = vmatprep.subr.bf16.mxu0 0
      %1586 = vmatpush1.bf16.msra.mxu0 %v1367
      %1587 = vmatprep.subr.bf16.mxu0 0
      %1588 = vmatpush1.bf16.msra.mxu0 %v1366
      %1589 = vmatprep.subr.bf16.mxu0 0
      %1590 = vmatpush1.bf16.msra.mxu0 %v1365
      %1591 = vmatprep.subr.bf16.mxu0 0
      %1592 = vmatpush1.bf16.msra.mxu0 %v1364
      %1593 = vmatprep.subr.bf16.mxu0 0
      %1594 = vmatpush1.bf16.msra.mxu0 %v1363
      %1595 = vmatprep.subr.bf16.mxu0 0
      %1596 = vmatpush1.bf16.msra.mxu0 %v1362
      %1597 = vmatprep.subr.bf16.mxu0 0
      %1598 = vmatpush1.bf16.msra.mxu0 %v1361
      %1599 = vmatprep.subr.bf16.mxu0 0
      %1600 = vmatpush1.bf16.msra.mxu0 %v1360
      %1601 = vmatprep.subr.bf16.mxu0 0
      %1602 = vmatpush2.bf16.msra.mxu0 %v1375
      %1603 = vmatprep.subr.bf16.mxu0 0
      %1604 = vmatpush2.bf16.msra.mxu0 %v1374
      %1605 = vmatprep.subr.bf16.mxu0 0
      %1606 = vmatpush2.bf16.msra.mxu0 %v1373
      %1607 = vmatprep.subr.bf16.mxu0 0
      %1608 = vmatpush2.bf16.msra.mxu0 %v1372
      %1609 = vmatprep.subr.bf16.mxu0 0
      %1610 = vmatpush2.bf16.msra.mxu0 %v1371
      %1611 = vmatprep.subr.bf16.mxu0 0
      %1612 = vmatpush2.bf16.msra.mxu0 %v1370
      %1613 = vmatprep.subr.bf16.mxu0 0
      %1614 = vmatpush2.bf16.msra.mxu0 %v1369
      %1615 = vmatprep.subr.bf16.mxu0 0
      %1616 = vmatpush2.bf16.msra.mxu0 %v1368
      %1617 = vmatprep.mubr.bf16.mxu0 %v915
      %1618 = vmatmul.mubr.bf16.gmra.mxu0 %v914
      %v1619 = vpop.f32.mrf.mxu0
      %v1620 = vadd.f32 %v1523, %v1619
      %v1621 = vpop.f32.mrf.mxu0
      %v1622 = vpop.f32.mrf.mxu0
      %v1623 = vadd.f32 %v1526, %v1622
      %v1624 = vpop.f32.mrf.mxu0
      %1625 = vmatprep.mubr.bf16.mxu0 %v924
      %1626 = vmatmul.mubr.bf16.gmra.mxu0 %v923
      %v1627 = vpop.f32.mrf.mxu0
      %v1628 = vadd.f32 %v1531, %v1627
      %v1629 = vpop.f32.mrf.mxu0
      %v1630 = vpop.f32.mrf.mxu0
      %v1631 = vadd.f32 %v1534, %v1630
      %v1632 = vpop.f32.mrf.mxu0
      %1633 = vmatprep.mubr.bf16.mxu0 %v933
      %1634 = vmatmul.mubr.bf16.gmra.mxu0 %v932
      %v1635 = vpop.f32.mrf.mxu0
      %v1636 = vadd.f32 %v1539, %v1635
      %v1637 = vpop.f32.mrf.mxu0
      %v1638 = vpop.f32.mrf.mxu0
      %v1639 = vadd.f32 %v1542, %v1638
      %v1640 = vpop.f32.mrf.mxu0
      %1641 = vmatprep.mubr.bf16.mxu0 %v942
      %1642 = vmatmul.mubr.bf16.gmra.mxu0 %v941
      %v1643 = vpop.f32.mrf.mxu0
      %v1644 = vadd.f32 %v1547, %v1643
      %v1645 = vpop.f32.mrf.mxu0
      %v1646 = vpop.f32.mrf.mxu0
      %v1647 = vadd.f32 %v1550, %v1646
      %v1648 = vpop.f32.mrf.mxu0
      %1649 = vmatprep.mubr.bf16.mxu0 %v951
      %1650 = vmatmul.mubr.bf16.gmra.mxu0 %v950
      %v1651 = vpop.f32.mrf.mxu0
      %v1652 = vadd.f32 %v1555, %v1651
      %v1653 = vpop.f32.mrf.mxu0
      %v1654 = vpop.f32.mrf.mxu0
      %v1655 = vadd.f32 %v1558, %v1654
      %v1656 = vpop.f32.mrf.mxu0
      %1657 = vmatprep.mubr.bf16.mxu0 %v960
      %1658 = vmatmul.mubr.bf16.gmra.mxu0 %v959
      %v1659 = vpop.f32.mrf.mxu0
      %v1660 = vadd.f32 %v1563, %v1659
      %v1661 = vpop.f32.mrf.mxu0
      %v1662 = vpop.f32.mrf.mxu0
      %v1663 = vadd.f32 %v1566, %v1662
      %v1664 = vpop.f32.mrf.mxu0
      %1665 = vmatprep.mubr.bf16.mxu0 %v969
      %1666 = vmatmul.mubr.bf16.gmra.mxu0 %v968
      %v1667 = vpop.f32.mrf.mxu0
      %v1668 = vadd.f32 %v1571, %v1667
      %v1669 = vpop.f32.mrf.mxu0
      %v1670 = vpop.f32.mrf.mxu0
      %v1671 = vadd.f32 %v1574, %v1670
      %v1672 = vpop.f32.mrf.mxu0
      %1673 = vmatprep.mubr.bf16.mxu0 %v978
      %1674 = vmatmul.mubr.bf16.gmra.mxu0 %v977
      %v1675 = vpop.f32.mrf.mxu0
      %v1676 = vadd.f32 %v1579, %v1675
      %v1677 = vpop.f32.mrf.mxu0
      %v1678 = vpop.f32.mrf.mxu0
      %v1679 = vadd.f32 %v1582, %v1678
      %v1680 = vpop.f32.mrf.mxu0
      %1681 = vdwg.mxu0
      %1682 = vmatprep.subr.bf16.mxu0 0
      %1683 = vmatpush1.bf16.msra.mxu0 %v1383
      %1684 = vmatprep.subr.bf16.mxu0 0
      %1685 = vmatpush1.bf16.msra.mxu0 %v1382
      %1686 = vmatprep.subr.bf16.mxu0 0
      %1687 = vmatpush1.bf16.msra.mxu0 %v1381
      %1688 = vmatprep.subr.bf16.mxu0 0
      %1689 = vmatpush1.bf16.msra.mxu0 %v1380
      %1690 = vmatprep.subr.bf16.mxu0 0
      %1691 = vmatpush1.bf16.msra.mxu0 %v1379
      %1692 = vmatprep.subr.bf16.mxu0 0
      %1693 = vmatpush1.bf16.msra.mxu0 %v1378
      %1694 = vmatprep.subr.bf16.mxu0 0
      %1695 = vmatpush1.bf16.msra.mxu0 %v1377
      %1696 = vmatprep.subr.bf16.mxu0 0
      %1697 = vmatpush1.bf16.msra.mxu0 %v1376
      %1698 = vmatprep.subr.bf16.mxu0 0
      %1699 = vmatpush2.bf16.msra.mxu0 %v1391
      %1700 = vmatprep.subr.bf16.mxu0 0
      %1701 = vmatpush2.bf16.msra.mxu0 %v1390
      %1702 = vmatprep.subr.bf16.mxu0 0
      %1703 = vmatpush2.bf16.msra.mxu0 %v1389
      %1704 = vmatprep.subr.bf16.mxu0 0
      %1705 = vmatpush2.bf16.msra.mxu0 %v1388
      %1706 = vmatprep.subr.bf16.mxu0 0
      %1707 = vmatpush2.bf16.msra.mxu0 %v1387
      %1708 = vmatprep.subr.bf16.mxu0 0
      %1709 = vmatpush2.bf16.msra.mxu0 %v1386
      %1710 = vmatprep.subr.bf16.mxu0 0
      %1711 = vmatpush2.bf16.msra.mxu0 %v1385
      %1712 = vmatprep.subr.bf16.mxu0 0
      %1713 = vmatpush2.bf16.msra.mxu0 %v1384
      %1714 = vmatprep.mubr.bf16.mxu0 %v917
      %1715 = vmatmul.mubr.bf16.gmra.mxu0 %v916
      %v1716 = vpop.f32.mrf.mxu0
      %v1717 = vadd.f32 %v1620, %v1716
      %v1718 = vpop.f32.mrf.mxu0
      %v1719 = vpop.f32.mrf.mxu0
      %v1720 = vadd.f32 %v1623, %v1719
      %v1721 = vpop.f32.mrf.mxu0
      %1722 = vmatprep.mubr.bf16.mxu0 %v926
      %1723 = vmatmul.mubr.bf16.gmra.mxu0 %v925
      %v1724 = vpop.f32.mrf.mxu0
      %v1725 = vadd.f32 %v1628, %v1724
      %v1726 = vpop.f32.mrf.mxu0
      %v1727 = vpop.f32.mrf.mxu0
      %v1728 = vadd.f32 %v1631, %v1727
      %v1729 = vpop.f32.mrf.mxu0
      %1730 = vmatprep.mubr.bf16.mxu0 %v935
      %1731 = vmatmul.mubr.bf16.gmra.mxu0 %v934
      %v1732 = vpop.f32.mrf.mxu0
      %v1733 = vadd.f32 %v1636, %v1732
      %v1734 = vpop.f32.mrf.mxu0
      %v1735 = vpop.f32.mrf.mxu0
      %v1736 = vadd.f32 %v1639, %v1735
      %v1737 = vpop.f32.mrf.mxu0
      %1738 = vmatprep.mubr.bf16.mxu0 %v944
      %1739 = vmatmul.mubr.bf16.gmra.mxu0 %v943
      %v1740 = vpop.f32.mrf.mxu0
      %v1741 = vadd.f32 %v1644, %v1740
      %v1742 = vpop.f32.mrf.mxu0
      %v1743 = vpop.f32.mrf.mxu0
      %v1744 = vadd.f32 %v1647, %v1743
      %v1745 = vpop.f32.mrf.mxu0
      %1746 = vmatprep.mubr.bf16.mxu0 %v953
      %1747 = vmatmul.mubr.bf16.gmra.mxu0 %v952
      %v1748 = vpop.f32.mrf.mxu0
      %v1749 = vadd.f32 %v1652, %v1748
      %v1750 = vpop.f32.mrf.mxu0
      %v1751 = vpop.f32.mrf.mxu0
      %v1752 = vadd.f32 %v1655, %v1751
      %v1753 = vpop.f32.mrf.mxu0
      %1754 = vmatprep.mubr.bf16.mxu0 %v962
      %1755 = vmatmul.mubr.bf16.gmra.mxu0 %v961
      %v1756 = vpop.f32.mrf.mxu0
      %v1757 = vadd.f32 %v1660, %v1756
      %v1758 = vpop.f32.mrf.mxu0
      %v1759 = vpop.f32.mrf.mxu0
      %v1760 = vadd.f32 %v1663, %v1759
      %v1761 = vpop.f32.mrf.mxu0
      %1762 = vmatprep.mubr.bf16.mxu0 %v971
      %1763 = vmatmul.mubr.bf16.gmra.mxu0 %v970
      %v1764 = vpop.f32.mrf.mxu0
      %v1765 = vadd.f32 %v1668, %v1764
      %v1766 = vpop.f32.mrf.mxu0
      %v1767 = vpop.f32.mrf.mxu0
      %v1768 = vadd.f32 %v1671, %v1767
      %v1769 = vpop.f32.mrf.mxu0
      %1770 = vmatprep.mubr.bf16.mxu0 %v980
      %1771 = vmatmul.mubr.bf16.gmra.mxu0 %v979
      %v1772 = vpop.f32.mrf.mxu0
      %v1773 = vadd.f32 %v1676, %v1772
      %v1774 = vpop.f32.mrf.mxu0
      %v1775 = vpop.f32.mrf.mxu0
      %v1776 = vadd.f32 %v1679, %v1775
      %v1777 = vpop.f32.mrf.mxu0
      %1778 = vdwg.mxu0
      %1779 = vmatprep.subr.bf16.mxu0 0
      %1780 = vmatpush1.bf16.msra.mxu0 %v1399
      %1781 = vmatprep.subr.bf16.mxu0 0
      %1782 = vmatpush1.bf16.msra.mxu0 %v1398
      %1783 = vmatprep.subr.bf16.mxu0 0
      %1784 = vmatpush1.bf16.msra.mxu0 %v1397
      %1785 = vmatprep.subr.bf16.mxu0 0
      %1786 = vmatpush1.bf16.msra.mxu0 %v1396
      %1787 = vmatprep.subr.bf16.mxu0 0
      %1788 = vmatpush1.bf16.msra.mxu0 %v1395
      %1789 = vmatprep.subr.bf16.mxu0 0
      %1790 = vmatpush1.bf16.msra.mxu0 %v1394
      %1791 = vmatprep.subr.bf16.mxu0 0
      %1792 = vmatpush1.bf16.msra.mxu0 %v1393
      %1793 = vmatprep.subr.bf16.mxu0 0
      %1794 = vmatpush1.bf16.msra.mxu0 %v1392
      %1795 = vmatprep.subr.bf16.mxu0 0
      %1796 = vmatpush2.bf16.msra.mxu0 %v1407
      %1797 = vmatprep.subr.bf16.mxu0 0
      %1798 = vmatpush2.bf16.msra.mxu0 %v1406
      %1799 = vmatprep.subr.bf16.mxu0 0
      %1800 = vmatpush2.bf16.msra.mxu0 %v1405
      %1801 = vmatprep.subr.bf16.mxu0 0
      %1802 = vmatpush2.bf16.msra.mxu0 %v1404
      %1803 = vmatprep.subr.bf16.mxu0 0
      %1804 = vmatpush2.bf16.msra.mxu0 %v1403
      %1805 = vmatprep.subr.bf16.mxu0 0
      %1806 = vmatpush2.bf16.msra.mxu0 %v1402
      %1807 = vmatprep.subr.bf16.mxu0 0
      %1808 = vmatpush2.bf16.msra.mxu0 %v1401
      %1809 = vmatprep.subr.bf16.mxu0 0
      %1810 = vmatpush2.bf16.msra.mxu0 %v1400
      %1811 = vmatprep.mubr.bf16.mxu0 %v919
      %1812 = vmatmul.mubr.bf16.gmra.mxu0 %v918
      %v1813 = vpop.f32.mrf.mxu0
      %v1814 = vadd.f32 %v1717, %v1813
      %v1815 = vpop.f32.mrf.mxu0
      %v1816 = vpop.f32.mrf.mxu0
      %v1817 = vadd.f32 %v1720, %v1816
      %v1818 = vpop.f32.mrf.mxu0
      %1819 = vmatprep.mubr.bf16.mxu0 %v928
      %1820 = vmatmul.mubr.bf16.gmra.mxu0 %v927
      %v1821 = vpop.f32.mrf.mxu0
      %v1822 = vadd.f32 %v1725, %v1821
      %v1823 = vpop.f32.mrf.mxu0
      %v1824 = vpop.f32.mrf.mxu0
      %v1825 = vadd.f32 %v1728, %v1824
      %v1826 = vpop.f32.mrf.mxu0
      %1827 = vmatprep.mubr.bf16.mxu0 %v937
      %1828 = vmatmul.mubr.bf16.gmra.mxu0 %v936
      %v1829 = vpop.f32.mrf.mxu0
      %v1830 = vadd.f32 %v1733, %v1829
      %v1831 = vpop.f32.mrf.mxu0
      %v1832 = vpop.f32.mrf.mxu0
      %v1833 = vadd.f32 %v1736, %v1832
      %v1834 = vpop.f32.mrf.mxu0
      %1835 = vmatprep.mubr.bf16.mxu0 %v946
      %1836 = vmatmul.mubr.bf16.gmra.mxu0 %v945
      %v1837 = vpop.f32.mrf.mxu0
      %v1838 = vadd.f32 %v1741, %v1837
      %v1839 = vpop.f32.mrf.mxu0
      %v1840 = vpop.f32.mrf.mxu0
      %v1841 = vadd.f32 %v1744, %v1840
      %v1842 = vpop.f32.mrf.mxu0
      %1843 = vmatprep.mubr.bf16.mxu0 %v955
      %1844 = vmatmul.mubr.bf16.gmra.mxu0 %v954
      %v1845 = vpop.f32.mrf.mxu0
      %v1846 = vadd.f32 %v1749, %v1845
      %v1847 = vpop.f32.mrf.mxu0
      %v1848 = vpop.f32.mrf.mxu0
      %v1849 = vadd.f32 %v1752, %v1848
      %v1850 = vpop.f32.mrf.mxu0
      %1851 = vmatprep.mubr.bf16.mxu0 %v964
      %1852 = vmatmul.mubr.bf16.gmra.mxu0 %v963
      %v1853 = vpop.f32.mrf.mxu0
      %v1854 = vadd.f32 %v1757, %v1853
      %v1855 = vpop.f32.mrf.mxu0
      %v1856 = vpop.f32.mrf.mxu0
      %v1857 = vadd.f32 %v1760, %v1856
      %v1858 = vpop.f32.mrf.mxu0
      %1859 = vmatprep.mubr.bf16.mxu0 %v973
      %1860 = vmatmul.mubr.bf16.gmra.mxu0 %v972
      %v1861 = vpop.f32.mrf.mxu0
      %v1862 = vadd.f32 %v1765, %v1861
      %v1863 = vpop.f32.mrf.mxu0
      %v1864 = vpop.f32.mrf.mxu0
      %v1865 = vadd.f32 %v1768, %v1864
      %v1866 = vpop.f32.mrf.mxu0
      %1867 = vmatprep.mubr.bf16.mxu0 %v982
      %1868 = vmatmul.mubr.bf16.gmra.mxu0 %v981
      %v1869 = vpop.f32.mrf.mxu0
      %v1870 = vadd.f32 %v1773, %v1869
      %v1871 = vpop.f32.mrf.mxu0
      %v1872 = vpop.f32.mrf.mxu0
      %v1873 = vadd.f32 %v1776, %v1872
      %v1874 = vpop.f32.mrf.mxu0
      %1875 = vdwg.mxu0
      %1876 = vmatprep.subr.bf16.mxu0 0
      %1877 = vmatpush1.bf16.msra.mxu0 %v1415
      %1878 = vmatprep.subr.bf16.mxu0 0
      %1879 = vmatpush1.bf16.msra.mxu0 %v1414
      %1880 = vmatprep.subr.bf16.mxu0 0
      %1881 = vmatpush1.bf16.msra.mxu0 %v1413
      %1882 = vmatprep.subr.bf16.mxu0 0
      %1883 = vmatpush1.bf16.msra.mxu0 %v1412
      %1884 = vmatprep.subr.bf16.mxu0 0
      %1885 = vmatpush1.bf16.msra.mxu0 %v1411
      %1886 = vmatprep.subr.bf16.mxu0 0
      %1887 = vmatpush1.bf16.msra.mxu0 %v1410
      %1888 = vmatprep.subr.bf16.mxu0 0
      %1889 = vmatpush1.bf16.msra.mxu0 %v1409
      %1890 = vmatprep.subr.bf16.mxu0 0
      %1891 = vmatpush1.bf16.msra.mxu0 %v1408
      %1892 = vmatprep.subr.bf16.mxu0 0
      %1893 = vmatpush2.bf16.msra.mxu0 0
      %1894 = vmatprep.subr.bf16.mxu0 0
      %1895 = vmatpush2.bf16.msra.mxu0 0
      %1896 = vmatprep.subr.bf16.mxu0 0
      %1897 = vmatpush2.bf16.msra.mxu0 0
      %1898 = vmatprep.subr.bf16.mxu0 0
      %1899 = vmatpush2.bf16.msra.mxu0 0
      %1900 = vmatprep.subr.bf16.mxu0 0
      %1901 = vmatpush2.bf16.msra.mxu0 0
      %1902 = vmatprep.subr.bf16.mxu0 0
      %1903 = vmatpush2.bf16.msra.mxu0 0
      %1904 = vmatprep.subr.bf16.mxu0 0
      %1905 = vmatpush2.bf16.msra.mxu0 0
      %1906 = vmatprep.subr.bf16.mxu0 0
      %1907 = vmatpush2.bf16.msra.mxu0 0
      %1908 = vmatprep.mubr.bf16.mxu0 0
      %1909 = vmatmul.mubr.bf16.gmra.mxu0 %v920
      %v1910 = vpop.f32.mrf.mxu0
      %v1911 = vadd.f32 %v1814, %v1910
      %v1912 = vpop.f32.mrf.mxu0
      %v1913 = vpop.f32.mrf.mxu0
      %v1914 = vadd.f32 %v1817, %v1913
      %v1915 = vpop.f32.mrf.mxu0
      %1916 = vmatprep.mubr.bf16.mxu0 0
      %1917 = vmatmul.mubr.bf16.gmra.mxu0 %v929
      %v1918 = vpop.f32.mrf.mxu0
      %v1919 = vadd.f32 %v1822, %v1918
      %v1920 = vpop.f32.mrf.mxu0
      %v1921 = vpop.f32.mrf.mxu0
      %v1922 = vadd.f32 %v1825, %v1921
      %v1923 = vpop.f32.mrf.mxu0
      %1924 = vmatprep.mubr.bf16.mxu0 0
      %1925 = vmatmul.mubr.bf16.gmra.mxu0 %v938
      %v1926 = vpop.f32.mrf.mxu0
      %v1927 = vadd.f32 %v1830, %v1926
      %v1928 = vpop.f32.mrf.mxu0
      %v1929 = vpop.f32.mrf.mxu0
      %v1930 = vadd.f32 %v1833, %v1929
      %v1931 = vpop.f32.mrf.mxu0
      %1932 = vmatprep.mubr.bf16.mxu0 0
      %1933 = vmatmul.mubr.bf16.gmra.mxu0 %v947
      %v1934 = vpop.f32.mrf.mxu0
      %v1935 = vadd.f32 %v1838, %v1934
      %v1936 = vpop.f32.mrf.mxu0
      %v1937 = vpop.f32.mrf.mxu0
      %v1938 = vadd.f32 %v1841, %v1937
      %v1939 = vpop.f32.mrf.mxu0
      %1940 = vmatprep.mubr.bf16.mxu0 0
      %1941 = vmatmul.mubr.bf16.gmra.mxu0 %v956
      %v1942 = vpop.f32.mrf.mxu0
      %v1943 = vadd.f32 %v1846, %v1942
      %v1944 = vpop.f32.mrf.mxu0
      %v1945 = vpop.f32.mrf.mxu0
      %v1946 = vadd.f32 %v1849, %v1945
      %v1947 = vpop.f32.mrf.mxu0
      %1948 = vmatprep.mubr.bf16.mxu0 0
      %1949 = vmatmul.mubr.bf16.gmra.mxu0 %v965
      %v1950 = vpop.f32.mrf.mxu0
      %v1951 = vadd.f32 %v1854, %v1950
      %v1952 = vpop.f32.mrf.mxu0
      %v1953 = vpop.f32.mrf.mxu0
      %v1954 = vadd.f32 %v1857, %v1953
      %v1955 = vpop.f32.mrf.mxu0
      %1956 = vmatprep.mubr.bf16.mxu0 0
      %1957 = vmatmul.mubr.bf16.gmra.mxu0 %v974
      %v1958 = vpop.f32.mrf.mxu0
      %v1959 = vadd.f32 %v1862, %v1958
      %v1960 = vpop.f32.mrf.mxu0
      %v1961 = vpop.f32.mrf.mxu0
      %v1962 = vadd.f32 %v1865, %v1961
      %v1963 = vpop.f32.mrf.mxu0
      %1964 = vmatprep.mubr.bf16.mxu0 0
      %1965 = vmatmul.mubr.bf16.gmra.mxu0 %v983
      %v1966 = vpop.f32.mrf.mxu0
      %v1967 = vadd.f32 %v1870, %v1966
      %v1968 = vpop.f32.mrf.mxu0
      %v1969 = vpop.f32.mrf.mxu0
      %v1970 = vadd.f32 %v1873, %v1969
      %v1971 = vpop.f32.mrf.mxu0
      %1972 = vdwg.mxu0
      %v2053 = vunpack.c.l.b16 %v239
      %v2054 = vunpack.c.h.b16 %v239
      %v2055 = vunpack.c.l.b16 %v240
      %v2056 = vunpack.c.h.b16 %v240
      %v2057 = vunpack.c.l.b16 %v241
      %v2058 = vunpack.c.h.b16 %v241
      %v2059 = vunpack.c.l.b16 %v242
      %v2060 = vunpack.c.h.b16 %v242
      %v2061 = vunpack.c.l.b16 %v243
      %v2062 = vunpack.c.l.b16 %v244
      %v2063 = vunpack.c.h.b16 %v244
      %v2064 = vunpack.c.l.b16 %v245
      %v2065 = vunpack.c.h.b16 %v245
      %v2066 = vunpack.c.l.b16 %v246
      %v2067 = vunpack.c.h.b16 %v246
      %v2068 = vunpack.c.l.b16 %v247
      %v2069 = vunpack.c.h.b16 %v247
      %v2070 = vunpack.c.l.b16 %v248
      %v2071 = vunpack.c.l.b16 %v249
      %v2072 = vunpack.c.h.b16 %v249
      %v2073 = vunpack.c.l.b16 %v250
      %v2074 = vunpack.c.h.b16 %v250
      %v2075 = vunpack.c.l.b16 %v251
      %v2076 = vunpack.c.h.b16 %v251
      %v2077 = vunpack.c.l.b16 %v252
      %v2078 = vunpack.c.h.b16 %v252
      %v2079 = vunpack.c.l.b16 %v253
      %v2080 = vunpack.c.l.b16 %v254
      %v2081 = vunpack.c.h.b16 %v254
      %v2082 = vunpack.c.l.b16 %v255
      %v2083 = vunpack.c.h.b16 %v255
      %v2084 = vunpack.c.l.b16 %v256
      %v2085 = vunpack.c.h.b16 %v256
      %v2086 = vunpack.c.l.b16 %v257
      %v2087 = vunpack.c.h.b16 %v257
      %v2088 = vunpack.c.l.b16 %v258
      %v2089 = vunpack.c.l.b16 %v259
      %v2090 = vunpack.c.h.b16 %v259
      %v2091 = vunpack.c.l.b16 %v260
      %v2092 = vunpack.c.h.b16 %v260
      %v2093 = vunpack.c.l.b16 %v261
      %v2094 = vunpack.c.h.b16 %v261
      %v2095 = vunpack.c.l.b16 %v262
      %v2096 = vunpack.c.h.b16 %v262
      %v2097 = vunpack.c.l.b16 %v263
      %v2098 = vunpack.c.l.b16 %v264
      %v2099 = vunpack.c.h.b16 %v264
      %v2100 = vunpack.c.l.b16 %v265
      %v2101 = vunpack.c.h.b16 %v265
      %v2102 = vunpack.c.l.b16 %v266
      %v2103 = vunpack.c.h.b16 %v266
      %v2104 = vunpack.c.l.b16 %v267
      %v2105 = vunpack.c.h.b16 %v267
      %v2106 = vunpack.c.l.b16 %v268
      %v2107 = vunpack.c.l.b16 %v269
      %v2108 = vunpack.c.h.b16 %v269
      %v2109 = vunpack.c.l.b16 %v270
      %v2110 = vunpack.c.h.b16 %v270
      %v2111 = vunpack.c.l.b16 %v271
      %v2112 = vunpack.c.h.b16 %v271
      %v2113 = vunpack.c.l.b16 %v272
      %v2114 = vunpack.c.h.b16 %v272
      %v2115 = vunpack.c.l.b16 %v273
      %v2116 = vunpack.c.l.b16 %v274
      %v2117 = vunpack.c.h.b16 %v274
      %v2118 = vunpack.c.l.b16 %v275
      %v2119 = vunpack.c.h.b16 %v275
      %v2120 = vunpack.c.l.b16 %v276
      %v2121 = vunpack.c.h.b16 %v276
      %v2122 = vunpack.c.l.b16 %v277
      %v2123 = vunpack.c.h.b16 %v277
      %v2124 = vunpack.c.l.b16 %v278
      %v2125 = vunpack.c.l.b16 %v279
      %v2126 = vunpack.c.h.b16 %v279
      %v2127 = vunpack.c.l.b16 %v280
      %v2128 = vunpack.c.h.b16 %v280
      %v2129 = vunpack.c.l.b16 %v281
      %v2130 = vunpack.c.h.b16 %v281
      %v2131 = vunpack.c.l.b16 %v282
      %v2132 = vunpack.c.h.b16 %v282
      %v2133 = vunpack.c.l.b16 %v283
      %v2134 = vunpack.c.l.b16 %v284
      %v2135 = vunpack.c.h.b16 %v284
      %v2136 = vunpack.c.l.b16 %v285
      %v2137 = vunpack.c.h.b16 %v285
      %v2138 = vunpack.c.l.b16 %v286
      %v2139 = vunpack.c.h.b16 %v286
      %v2140 = vunpack.c.l.b16 %v287
      %v2141 = vunpack.c.h.b16 %v287
      %v2142 = vunpack.c.l.b16 %v288
      %v2143 = vunpack.c.l.b16 %v289
      %v2144 = vunpack.c.h.b16 %v289
      %v2145 = vunpack.c.l.b16 %v290
      %v2146 = vunpack.c.h.b16 %v290
      %v2147 = vunpack.c.l.b16 %v291
      %v2148 = vunpack.c.h.b16 %v291
      %v2149 = vunpack.c.l.b16 %v292
      %v2150 = vunpack.c.h.b16 %v292
      %v2151 = vunpack.c.l.b16 %v293
      %v2152 = vunpack.c.l.b16 %v294
      %v2153 = vunpack.c.h.b16 %v294
      %v2154 = vunpack.c.l.b16 %v295
      %v2155 = vunpack.c.h.b16 %v295
      %v2156 = vunpack.c.l.b16 %v296
      %v2157 = vunpack.c.h.b16 %v296
      %v2158 = vunpack.c.l.b16 %v297
      %v2159 = vunpack.c.h.b16 %v297
      %v2160 = vunpack.c.l.b16 %v298
      %v2161 = vunpack.c.l.b16 %v299
      %v2162 = vunpack.c.h.b16 %v299
      %v2163 = vunpack.c.l.b16 %v300
      %v2164 = vunpack.c.h.b16 %v300
      %v2165 = vunpack.c.l.b16 %v301
      %v2166 = vunpack.c.h.b16 %v301
      %v2167 = vunpack.c.l.b16 %v302
      %v2168 = vunpack.c.h.b16 %v302
      %v2169 = vunpack.c.l.b16 %v303
      %v2170 = vunpack.c.l.b16 %v304
      %v2171 = vunpack.c.h.b16 %v304
      %v2172 = vunpack.c.l.b16 %v305
      %v2173 = vunpack.c.h.b16 %v305
      %v2174 = vunpack.c.l.b16 %v306
      %v2175 = vunpack.c.h.b16 %v306
      %v2176 = vunpack.c.l.b16 %v307
      %v2177 = vunpack.c.h.b16 %v307
      %v2178 = vunpack.c.l.b16 %v308
      %v2179 = vunpack.c.l.b16 %v309
      %v2180 = vunpack.c.h.b16 %v309
      %v2181 = vunpack.c.l.b16 %v310
      %v2182 = vunpack.c.h.b16 %v310
      %v2183 = vunpack.c.l.b16 %v311
      %v2184 = vunpack.c.h.b16 %v311
      %v2185 = vunpack.c.l.b16 %v312
      %v2186 = vunpack.c.h.b16 %v312
      %v2187 = vunpack.c.l.b16 %v313
      %v2188 = vunpack.c.l.b16 %v314
      %v2189 = vunpack.c.h.b16 %v314
      %v2190 = vunpack.c.l.b16 %v315
      %v2191 = vunpack.c.h.b16 %v315
      %v2192 = vunpack.c.l.b16 %v316
      %v2193 = vunpack.c.h.b16 %v316
      %v2194 = vunpack.c.l.b16 %v317
      %v2195 = vunpack.c.h.b16 %v317
      %v2196 = vunpack.c.l.b16 %v318
      %v2197 = vpack.c.b16 %v2062, %v2053
      %v2198 = vpack.c.b16 %v2063, %v2054
      %v2199 = vpack.c.b16 %v2064, %v2055
      %v2200 = vpack.c.b16 %v2065, %v2056
      %v2201 = vpack.c.b16 %v2066, %v2057
      %v2202 = vpack.c.b16 %v2067, %v2058
      %v2203 = vpack.c.b16 %v2068, %v2059
      %v2204 = vpack.c.b16 %v2069, %v2060
      %v2205 = vpack.c.b16 %v2070, %v2061
      %v2206 = vpack.c.b16 %v2080, %v2071
      %v2207 = vpack.c.b16 %v2081, %v2072
      %v2208 = vpack.c.b16 %v2082, %v2073
      %v2209 = vpack.c.b16 %v2083, %v2074
      %v2210 = vpack.c.b16 %v2084, %v2075
      %v2211 = vpack.c.b16 %v2085, %v2076
      %v2212 = vpack.c.b16 %v2086, %v2077
      %v2213 = vpack.c.b16 %v2087, %v2078
      %v2214 = vpack.c.b16 %v2088, %v2079
      %v2215 = vpack.c.b16 %v2098, %v2089
      %v2216 = vpack.c.b16 %v2099, %v2090
      %v2217 = vpack.c.b16 %v2100, %v2091
      %v2218 = vpack.c.b16 %v2101, %v2092
      %v2219 = vpack.c.b16 %v2102, %v2093
      %v2220 = vpack.c.b16 %v2103, %v2094
      %v2221 = vpack.c.b16 %v2104, %v2095
      %v2222 = vpack.c.b16 %v2105, %v2096
      %v2223 = vpack.c.b16 %v2106, %v2097
      %v2224 = vpack.c.b16 %v2116, %v2107
      %v2225 = vpack.c.b16 %v2117, %v2108
      %v2226 = vpack.c.b16 %v2118, %v2109
      %v2227 = vpack.c.b16 %v2119, %v2110
      %v2228 = vpack.c.b16 %v2120, %v2111
      %v2229 = vpack.c.b16 %v2121, %v2112
      %v2230 = vpack.c.b16 %v2122, %v2113
      %v2231 = vpack.c.b16 %v2123, %v2114
      %v2232 = vpack.c.b16 %v2124, %v2115
      %v2233 = vpack.c.b16 %v2134, %v2125
      %v2234 = vpack.c.b16 %v2135, %v2126
      %v2235 = vpack.c.b16 %v2136, %v2127
      %v2236 = vpack.c.b16 %v2137, %v2128
      %v2237 = vpack.c.b16 %v2138, %v2129
      %v2238 = vpack.c.b16 %v2139, %v2130
      %v2239 = vpack.c.b16 %v2140, %v2131
      %v2240 = vpack.c.b16 %v2141, %v2132
      %v2241 = vpack.c.b16 %v2142, %v2133
      %v2242 = vpack.c.b16 %v2152, %v2143
      %v2243 = vpack.c.b16 %v2153, %v2144
      %v2244 = vpack.c.b16 %v2154, %v2145
      %v2245 = vpack.c.b16 %v2155, %v2146
      %v2246 = vpack.c.b16 %v2156, %v2147
      %v2247 = vpack.c.b16 %v2157, %v2148
      %v2248 = vpack.c.b16 %v2158, %v2149
      %v2249 = vpack.c.b16 %v2159, %v2150
      %v2250 = vpack.c.b16 %v2160, %v2151
      %v2251 = vpack.c.b16 %v2170, %v2161
      %v2252 = vpack.c.b16 %v2171, %v2162
      %v2253 = vpack.c.b16 %v2172, %v2163
      %v2254 = vpack.c.b16 %v2173, %v2164
      %v2255 = vpack.c.b16 %v2174, %v2165
      %v2256 = vpack.c.b16 %v2175, %v2166
      %v2257 = vpack.c.b16 %v2176, %v2167
      %v2258 = vpack.c.b16 %v2177, %v2168
      %v2259 = vpack.c.b16 %v2178, %v2169
      %v2260 = vpack.c.b16 %v2188, %v2179
      %v2261 = vpack.c.b16 %v2189, %v2180
      %v2262 = vpack.c.b16 %v2190, %v2181
      %v2263 = vpack.c.b16 %v2191, %v2182
      %v2264 = vpack.c.b16 %v2192, %v2183
      %v2265 = vpack.c.b16 %v2193, %v2184
      %v2266 = vpack.c.b16 %v2194, %v2185
      %v2267 = vpack.c.b16 %v2195, %v2186
      %v2268 = vpack.c.b16 %v2196, %v2187
      %v2485 = vunpack.c.l.b16 %v319
      %v2486 = vunpack.c.l.b16 %v320
      %v2487 = vunpack.c.l.b16 %v321
      %v2488 = vunpack.c.l.b16 %v322
      %v2489 = vunpack.c.l.b16 %v323
      %v2490 = vunpack.c.l.b16 %v324
      %v2491 = vunpack.c.l.b16 %v325
      %v2492 = vunpack.c.l.b16 %v326
      %v2493 = vunpack.c.l.b16 %v327
      %v2494 = vunpack.c.l.b16 %v328
      %v2495 = vunpack.c.l.b16 %v329
      %v2496 = vunpack.c.l.b16 %v330
      %v2497 = vunpack.c.l.b16 %v331
      %v2498 = vunpack.c.l.b16 %v332
      %v2499 = vunpack.c.l.b16 %v333
      %v2500 = vunpack.c.l.b16 %v334
      %v2501 = vunpack.c.l.b16 %v335
      %v2502 = vunpack.c.l.b16 %v336
      %v2503 = vunpack.c.l.b16 %v337
      %v2504 = vunpack.c.l.b16 %v338
      %v2505 = vunpack.c.l.b16 %v339
      %v2506 = vunpack.c.l.b16 %v340
      %v2507 = vunpack.c.l.b16 %v341
      %v2508 = vunpack.c.l.b16 %v342
      %v2509 = vunpack.c.l.b16 %v343
      %v2510 = vunpack.c.l.b16 %v344
      %v2511 = vunpack.c.l.b16 %v345
      %v2512 = vunpack.c.l.b16 %v346
      %v2513 = vunpack.c.l.b16 %v347
      %v2514 = vunpack.c.l.b16 %v348
      %v2515 = vunpack.c.l.b16 %v349
      %v2516 = vunpack.c.l.b16 %v350
      %v2517 = vunpack.c.l.b16 %v351
      %v2518 = vunpack.c.l.b16 %v352
      %v2519 = vunpack.c.l.b16 %v353
      %v2520 = vunpack.c.l.b16 %v354
      %v2521 = vunpack.c.l.b16 %v355
      %v2522 = vunpack.c.l.b16 %v356
      %v2523 = vunpack.c.l.b16 %v357
      %v2524 = vunpack.c.l.b16 %v358
      %v2525 = vunpack.c.l.b16 %v359
      %v2526 = vunpack.c.l.b16 %v360
      %v2527 = vunpack.c.l.b16 %v361
      %v2528 = vunpack.c.l.b16 %v362
      %v2529 = vunpack.c.l.b16 %v363
      %v2530 = vunpack.c.l.b16 %v364
      %v2531 = vunpack.c.l.b16 %v365
      %v2532 = vunpack.c.l.b16 %v366
      %v2533 = vunpack.c.l.b16 %v367
      %v2534 = vunpack.c.l.b16 %v368
      %v2535 = vunpack.c.l.b16 %v369
      %v2536 = vunpack.c.l.b16 %v370
      %v2537 = vunpack.c.l.b16 %v371
      %v2538 = vunpack.c.l.b16 %v372
      %v2539 = vunpack.c.l.b16 %v373
      %v2540 = vunpack.c.l.b16 %v374
      %v2541 = vunpack.c.l.b16 %v375
      %v2542 = vunpack.c.l.b16 %v376
      %v2543 = vunpack.c.l.b16 %v377
      %v2544 = vunpack.c.l.b16 %v378
      %v2545 = vunpack.c.l.b16 %v379
      %v2546 = vunpack.c.l.b16 %v380
      %v2547 = vunpack.c.l.b16 %v381
      %v2548 = vunpack.c.l.b16 %v382
      %v2549 = vunpack.c.l.b16 %v383
      %v2550 = vunpack.c.l.b16 %v384
      %v2551 = vunpack.c.l.b16 %v385
      %v2552 = vunpack.c.l.b16 %v386
      %v2553 = vunpack.c.l.b16 %v387
      %v2554 = vunpack.c.l.b16 %v388
      %v2555 = vunpack.c.l.b16 %v389
      %v2556 = vunpack.c.l.b16 %v390
      %v2557 = vunpack.c.l.b16 %v391
      %v2558 = vunpack.c.l.b16 %v392
      %v2559 = vunpack.c.l.b16 %v393
      %v2560 = vunpack.c.l.b16 %v394
      %v2561 = vunpack.c.l.b16 %v395
      %v2562 = vunpack.c.l.b16 %v396
      %v2563 = vunpack.c.l.b16 %v397
      %v2564 = vunpack.c.l.b16 %v398
      %v2565 = vunpack.c.l.b16 %v399
      %v2566 = vunpack.c.l.b16 %v400
      %v2567 = vunpack.c.l.b16 %v401
      %v2568 = vunpack.c.l.b16 %v402
      %v2569 = vunpack.c.l.b16 %v403
      %v2570 = vunpack.c.l.b16 %v404
      %v2571 = vunpack.c.l.b16 %v405
      %v2572 = vunpack.c.l.b16 %v406
      %v2573 = vunpack.c.l.b16 %v407
      %v2574 = vunpack.c.l.b16 %v408
      %v2575 = vunpack.c.l.b16 %v409
      %v2576 = vunpack.c.l.b16 %v410
      %v2577 = vunpack.c.l.b16 %v411
      %v2578 = vunpack.c.l.b16 %v412
      %v2579 = vunpack.c.l.b16 %v413
      %v2580 = vunpack.c.l.b16 %v414
      %v2581 = vunpack.c.l.b16 %v415
      %v2582 = vunpack.c.l.b16 %v416
      %v2583 = vunpack.c.l.b16 %v417
      %v2584 = vunpack.c.l.b16 %v418
      %v2585 = vunpack.c.l.b16 %v419
      %v2586 = vunpack.c.l.b16 %v420
      %v2587 = vunpack.c.l.b16 %v421
      %v2588 = vunpack.c.l.b16 %v422
      %v2589 = vunpack.c.l.b16 %v423
      %v2590 = vunpack.c.l.b16 %v424
      %v2591 = vunpack.c.l.b16 %v425
      %v2592 = vunpack.c.l.b16 %v426
      %v2593 = vunpack.c.l.b16 %v427
      %v2594 = vunpack.c.l.b16 %v428
      %v2595 = vunpack.c.l.b16 %v429
      %v2596 = vunpack.c.l.b16 %v430
      %v2597 = vunpack.c.l.b16 %v431
      %v2598 = vunpack.c.l.b16 %v432
      %v2599 = vunpack.c.l.b16 %v433
      %v2600 = vunpack.c.l.b16 %v434
      %v2601 = vunpack.c.l.b16 %v435
      %v2602 = vunpack.c.l.b16 %v436
      %v2603 = vunpack.c.l.b16 %v437
      %v2604 = vunpack.c.l.b16 %v438
      %v2605 = vunpack.c.l.b16 %v439
      %v2606 = vunpack.c.l.b16 %v440
      %v2607 = vunpack.c.l.b16 %v441
      %v2608 = vunpack.c.l.b16 %v442
      %v2609 = vunpack.c.l.b16 %v443
      %v2610 = vunpack.c.l.b16 %v444
      %v2611 = vunpack.c.l.b16 %v445
      %v2612 = vunpack.c.l.b16 %v446
      %v2613 = vunpack.c.l.b16 %v447
      %v2614 = vunpack.c.l.b16 %v448
      %v2615 = vunpack.c.l.b16 %v449
      %v2616 = vunpack.c.l.b16 %v450
      %v2617 = vunpack.c.l.b16 %v451
      %v2618 = vunpack.c.l.b16 %v452
      %v2619 = vunpack.c.l.b16 %v453
      %v2620 = vunpack.c.l.b16 %v454
      %v2621 = vunpack.c.l.b16 %v455
      %v2622 = vunpack.c.l.b16 %v456
      %v2623 = vunpack.c.l.b16 %v457
      %v2624 = vunpack.c.l.b16 %v458
      %v2625 = vunpack.c.l.b16 %v459
      %v2626 = vunpack.c.l.b16 %v460
      %v2627 = vunpack.c.l.b16 %v461
      %v2628 = vunpack.c.l.b16 %v462
      %v2629 = vpack.c.b16 %v2486, %v2485
      %v2630 = vpack.c.b16 %v2488, %v2487
      %v2631 = vpack.c.b16 %v2490, %v2489
      %v2632 = vpack.c.b16 %v2492, %v2491
      %v2633 = vpack.c.b16 %v2494, %v2493
      %v2634 = vpack.c.b16 %v2496, %v2495
      %v2635 = vpack.c.b16 %v2498, %v2497
      %v2636 = vpack.c.b16 %v2500, %v2499
      %v2637 = vpack.c.b16 %v2502, %v2501
      %v2638 = vpack.c.b16 %v2504, %v2503
      %v2639 = vpack.c.b16 %v2506, %v2505
      %v2640 = vpack.c.b16 %v2508, %v2507
      %v2641 = vpack.c.b16 %v2510, %v2509
      %v2642 = vpack.c.b16 %v2512, %v2511
      %v2643 = vpack.c.b16 %v2514, %v2513
      %v2644 = vpack.c.b16 %v2516, %v2515
      %v2645 = vpack.c.b16 %v2518, %v2517
      %v2646 = vpack.c.b16 %v2520, %v2519
      %v2647 = vpack.c.b16 %v2522, %v2521
      %v2648 = vpack.c.b16 %v2524, %v2523
      %v2649 = vpack.c.b16 %v2526, %v2525
      %v2650 = vpack.c.b16 %v2528, %v2527
      %v2651 = vpack.c.b16 %v2530, %v2529
      %v2652 = vpack.c.b16 %v2532, %v2531
      %v2653 = vpack.c.b16 %v2534, %v2533
      %v2654 = vpack.c.b16 %v2536, %v2535
      %v2655 = vpack.c.b16 %v2538, %v2537
      %v2656 = vpack.c.b16 %v2540, %v2539
      %v2657 = vpack.c.b16 %v2542, %v2541
      %v2658 = vpack.c.b16 %v2544, %v2543
      %v2659 = vpack.c.b16 %v2546, %v2545
      %v2660 = vpack.c.b16 %v2548, %v2547
      %v2661 = vpack.c.b16 %v2550, %v2549
      %v2662 = vpack.c.b16 %v2552, %v2551
      %v2663 = vpack.c.b16 %v2554, %v2553
      %v2664 = vpack.c.b16 %v2556, %v2555
      %v2665 = vpack.c.b16 %v2558, %v2557
      %v2666 = vpack.c.b16 %v2560, %v2559
      %v2667 = vpack.c.b16 %v2562, %v2561
      %v2668 = vpack.c.b16 %v2564, %v2563
      %v2669 = vpack.c.b16 %v2566, %v2565
      %v2670 = vpack.c.b16 %v2568, %v2567
      %v2671 = vpack.c.b16 %v2570, %v2569
      %v2672 = vpack.c.b16 %v2572, %v2571
      %v2673 = vpack.c.b16 %v2574, %v2573
      %v2674 = vpack.c.b16 %v2576, %v2575
      %v2675 = vpack.c.b16 %v2578, %v2577
      %v2676 = vpack.c.b16 %v2580, %v2579
      %v2677 = vpack.c.b16 %v2582, %v2581
      %v2678 = vpack.c.b16 %v2584, %v2583
      %v2679 = vpack.c.b16 %v2586, %v2585
      %v2680 = vpack.c.b16 %v2588, %v2587
      %v2681 = vpack.c.b16 %v2590, %v2589
      %v2682 = vpack.c.b16 %v2592, %v2591
      %v2683 = vpack.c.b16 %v2594, %v2593
      %v2684 = vpack.c.b16 %v2596, %v2595
      %v2685 = vpack.c.b16 %v2598, %v2597
      %v2686 = vpack.c.b16 %v2600, %v2599
      %v2687 = vpack.c.b16 %v2602, %v2601
      %v2688 = vpack.c.b16 %v2604, %v2603
      %v2689 = vpack.c.b16 %v2606, %v2605
      %v2690 = vpack.c.b16 %v2608, %v2607
      %v2691 = vpack.c.b16 %v2610, %v2609
      %v2692 = vpack.c.b16 %v2612, %v2611
      %v2693 = vpack.c.b16 %v2614, %v2613
      %v2694 = vpack.c.b16 %v2616, %v2615
      %v2695 = vpack.c.b16 %v2618, %v2617
      %v2696 = vpack.c.b16 %v2620, %v2619
      %v2697 = vpack.c.b16 %v2622, %v2621
      %v2698 = vpack.c.b16 %v2624, %v2623
      %v2699 = vpack.c.b16 %v2626, %v2625
      %v2700 = vpack.c.b16 %v2628, %v2627
      %2773 = vmatprep.subr.bf16.mxu0 0
      %2774 = vmatpush1.bf16.msra.mxu0 %v2636
      %2775 = vmatprep.subr.bf16.mxu0 0
      %2776 = vmatpush1.bf16.msra.mxu0 %v2635
      %2777 = vmatprep.subr.bf16.mxu0 0
      %2778 = vmatpush1.bf16.msra.mxu0 %v2634
      %2779 = vmatprep.subr.bf16.mxu0 0
      %2780 = vmatpush1.bf16.msra.mxu0 %v2633
      %2781 = vmatprep.subr.bf16.mxu0 0
      %2782 = vmatpush1.bf16.msra.mxu0 %v2632
      %2783 = vmatprep.subr.bf16.mxu0 0
      %2784 = vmatpush1.bf16.msra.mxu0 %v2631
      %2785 = vmatprep.subr.bf16.mxu0 0
      %2786 = vmatpush1.bf16.msra.mxu0 %v2630
      %2787 = vmatprep.subr.bf16.mxu0 0
      %2788 = vmatpush1.bf16.msra.mxu0 %v2629
      %2789 = vmatprep.subr.bf16.mxu0 0
      %2790 = vmatpush2.bf16.msra.mxu0 %v2644
      %2791 = vmatprep.subr.bf16.mxu0 0
      %2792 = vmatpush2.bf16.msra.mxu0 %v2643
      %2793 = vmatprep.subr.bf16.mxu0 0
      %2794 = vmatpush2.bf16.msra.mxu0 %v2642
      %2795 = vmatprep.subr.bf16.mxu0 0
      %2796 = vmatpush2.bf16.msra.mxu0 %v2641
      %2797 = vmatprep.subr.bf16.mxu0 0
      %2798 = vmatpush2.bf16.msra.mxu0 %v2640
      %2799 = vmatprep.subr.bf16.mxu0 0
      %2800 = vmatpush2.bf16.msra.mxu0 %v2639
      %2801 = vmatprep.subr.bf16.mxu0 0
      %2802 = vmatpush2.bf16.msra.mxu0 %v2638
      %2803 = vmatprep.subr.bf16.mxu0 0
      %2804 = vmatpush2.bf16.msra.mxu0 %v2637
      %2805 = vmatprep.mubr.bf16.mxu0 %v2198
      %2806 = vmatmul.mubr.bf16.gmra.mxu0 %v2197
      %v2807 = vpop.f32.mrf.mxu0
      %v2808 = vadd.f32 %v1911, %v2807
      %v2809 = vpop.f32.mrf.mxu0
      %v2810 = vpop.f32.mrf.mxu0
      %v2811 = vadd.f32 %v1914, %v2810
      %v2812 = vpop.f32.mrf.mxu0
      %2813 = vmatprep.mubr.bf16.mxu0 %v2207
      %2814 = vmatmul.mubr.bf16.gmra.mxu0 %v2206
      %v2815 = vpop.f32.mrf.mxu0
      %v2816 = vadd.f32 %v1919, %v2815
      %v2817 = vpop.f32.mrf.mxu0
      %v2818 = vpop.f32.mrf.mxu0
      %v2819 = vadd.f32 %v1922, %v2818
      %v2820 = vpop.f32.mrf.mxu0
      %2821 = vmatprep.mubr.bf16.mxu0 %v2216
      %2822 = vmatmul.mubr.bf16.gmra.mxu0 %v2215
      %v2823 = vpop.f32.mrf.mxu0
      %v2824 = vadd.f32 %v1927, %v2823
      %v2825 = vpop.f32.mrf.mxu0
      %v2826 = vpop.f32.mrf.mxu0
      %v2827 = vadd.f32 %v1930, %v2826
      %v2828 = vpop.f32.mrf.mxu0
      %2829 = vmatprep.mubr.bf16.mxu0 %v2225
      %2830 = vmatmul.mubr.bf16.gmra.mxu0 %v2224
      %v2831 = vpop.f32.mrf.mxu0
      %v2832 = vadd.f32 %v1935, %v2831
      %v2833 = vpop.f32.mrf.mxu0
      %v2834 = vpop.f32.mrf.mxu0
      %v2835 = vadd.f32 %v1938, %v2834
      %v2836 = vpop.f32.mrf.mxu0
      %2837 = vmatprep.mubr.bf16.mxu0 %v2234
      %2838 = vmatmul.mubr.bf16.gmra.mxu0 %v2233
      %v2839 = vpop.f32.mrf.mxu0
      %v2840 = vadd.f32 %v1943, %v2839
      %v2841 = vpop.f32.mrf.mxu0
      %v2842 = vpop.f32.mrf.mxu0
      %v2843 = vadd.f32 %v1946, %v2842
      %v2844 = vpop.f32.mrf.mxu0
      %2845 = vmatprep.mubr.bf16.mxu0 %v2243
      %2846 = vmatmul.mubr.bf16.gmra.mxu0 %v2242
      %v2847 = vpop.f32.mrf.mxu0
      %v2848 = vadd.f32 %v1951, %v2847
      %v2849 = vpop.f32.mrf.mxu0
      %v2850 = vpop.f32.mrf.mxu0
      %v2851 = vadd.f32 %v1954, %v2850
      %v2852 = vpop.f32.mrf.mxu0
      %2853 = vmatprep.mubr.bf16.mxu0 %v2252
      %2854 = vmatmul.mubr.bf16.gmra.mxu0 %v2251
      %v2855 = vpop.f32.mrf.mxu0
      %v2856 = vadd.f32 %v1959, %v2855
      %v2857 = vpop.f32.mrf.mxu0
      %v2858 = vpop.f32.mrf.mxu0
      %v2859 = vadd.f32 %v1962, %v2858
      %v2860 = vpop.f32.mrf.mxu0
      %2861 = vmatprep.mubr.bf16.mxu0 %v2261
      %2862 = vmatmul.mubr.bf16.gmra.mxu0 %v2260
      %v2863 = vpop.f32.mrf.mxu0
      %v2864 = vadd.f32 %v1967, %v2863
      %v2865 = vpop.f32.mrf.mxu0
      %v2866 = vpop.f32.mrf.mxu0
      %v2867 = vadd.f32 %v1970, %v2866
      %v2868 = vpop.f32.mrf.mxu0
      %2869 = vdwg.mxu0
      %2870 = vmatprep.subr.bf16.mxu0 0
      %2871 = vmatpush1.bf16.msra.mxu0 %v2652
      %2872 = vmatprep.subr.bf16.mxu0 0
      %2873 = vmatpush1.bf16.msra.mxu0 %v2651
      %2874 = vmatprep.subr.bf16.mxu0 0
      %2875 = vmatpush1.bf16.msra.mxu0 %v2650
      %2876 = vmatprep.subr.bf16.mxu0 0
      %2877 = vmatpush1.bf16.msra.mxu0 %v2649
      %2878 = vmatprep.subr.bf16.mxu0 0
      %2879 = vmatpush1.bf16.msra.mxu0 %v2648
      %2880 = vmatprep.subr.bf16.mxu0 0
      %2881 = vmatpush1.bf16.msra.mxu0 %v2647
      %2882 = vmatprep.subr.bf16.mxu0 0
      %2883 = vmatpush1.bf16.msra.mxu0 %v2646
      %2884 = vmatprep.subr.bf16.mxu0 0
      %2885 = vmatpush1.bf16.msra.mxu0 %v2645
      %2886 = vmatprep.subr.bf16.mxu0 0
      %2887 = vmatpush2.bf16.msra.mxu0 %v2660
      %2888 = vmatprep.subr.bf16.mxu0 0
      %2889 = vmatpush2.bf16.msra.mxu0 %v2659
      %2890 = vmatprep.subr.bf16.mxu0 0
      %2891 = vmatpush2.bf16.msra.mxu0 %v2658
      %2892 = vmatprep.subr.bf16.mxu0 0
      %2893 = vmatpush2.bf16.msra.mxu0 %v2657
      %2894 = vmatprep.subr.bf16.mxu0 0
      %2895 = vmatpush2.bf16.msra.mxu0 %v2656
      %2896 = vmatprep.subr.bf16.mxu0 0
      %2897 = vmatpush2.bf16.msra.mxu0 %v2655
      %2898 = vmatprep.subr.bf16.mxu0 0
      %2899 = vmatpush2.bf16.msra.mxu0 %v2654
      %2900 = vmatprep.subr.bf16.mxu0 0
      %2901 = vmatpush2.bf16.msra.mxu0 %v2653
      %2902 = vmatprep.mubr.bf16.mxu0 %v2200
      %2903 = vmatmul.mubr.bf16.gmra.mxu0 %v2199
      %v2904 = vpop.f32.mrf.mxu0
      %v2905 = vadd.f32 %v2808, %v2904
      %v2906 = vpop.f32.mrf.mxu0
      %v2907 = vpop.f32.mrf.mxu0
      %v2908 = vadd.f32 %v2811, %v2907
      %v2909 = vpop.f32.mrf.mxu0
      %2910 = vmatprep.mubr.bf16.mxu0 %v2209
      %2911 = vmatmul.mubr.bf16.gmra.mxu0 %v2208
      %v2912 = vpop.f32.mrf.mxu0
      %v2913 = vadd.f32 %v2816, %v2912
      %v2914 = vpop.f32.mrf.mxu0
      %v2915 = vpop.f32.mrf.mxu0
      %v2916 = vadd.f32 %v2819, %v2915
      %v2917 = vpop.f32.mrf.mxu0
      %2918 = vmatprep.mubr.bf16.mxu0 %v2218
      %2919 = vmatmul.mubr.bf16.gmra.mxu0 %v2217
      %v2920 = vpop.f32.mrf.mxu0
      %v2921 = vadd.f32 %v2824, %v2920
      %v2922 = vpop.f32.mrf.mxu0
      %v2923 = vpop.f32.mrf.mxu0
      %v2924 = vadd.f32 %v2827, %v2923
      %v2925 = vpop.f32.mrf.mxu0
      %2926 = vmatprep.mubr.bf16.mxu0 %v2227
      %2927 = vmatmul.mubr.bf16.gmra.mxu0 %v2226
      %v2928 = vpop.f32.mrf.mxu0
      %v2929 = vadd.f32 %v2832, %v2928
      %v2930 = vpop.f32.mrf.mxu0
      %v2931 = vpop.f32.mrf.mxu0
      %v2932 = vadd.f32 %v2835, %v2931
      %v2933 = vpop.f32.mrf.mxu0
      %2934 = vmatprep.mubr.bf16.mxu0 %v2236
      %2935 = vmatmul.mubr.bf16.gmra.mxu0 %v2235
      %v2936 = vpop.f32.mrf.mxu0
      %v2937 = vadd.f32 %v2840, %v2936
      %v2938 = vpop.f32.mrf.mxu0
      %v2939 = vpop.f32.mrf.mxu0
      %v2940 = vadd.f32 %v2843, %v2939
      %v2941 = vpop.f32.mrf.mxu0
      %2942 = vmatprep.mubr.bf16.mxu0 %v2245
      %2943 = vmatmul.mubr.bf16.gmra.mxu0 %v2244
      %v2944 = vpop.f32.mrf.mxu0
      %v2945 = vadd.f32 %v2848, %v2944
      %v2946 = vpop.f32.mrf.mxu0
      %v2947 = vpop.f32.mrf.mxu0
      %v2948 = vadd.f32 %v2851, %v2947
      %v2949 = vpop.f32.mrf.mxu0
      %2950 = vmatprep.mubr.bf16.mxu0 %v2254
      %2951 = vmatmul.mubr.bf16.gmra.mxu0 %v2253
      %v2952 = vpop.f32.mrf.mxu0
      %v2953 = vadd.f32 %v2856, %v2952
      %v2954 = vpop.f32.mrf.mxu0
      %v2955 = vpop.f32.mrf.mxu0
      %v2956 = vadd.f32 %v2859, %v2955
      %v2957 = vpop.f32.mrf.mxu0
      %2958 = vmatprep.mubr.bf16.mxu0 %v2263
      %2959 = vmatmul.mubr.bf16.gmra.mxu0 %v2262
      %v2960 = vpop.f32.mrf.mxu0
      %v2961 = vadd.f32 %v2864, %v2960
      %v2962 = vpop.f32.mrf.mxu0
      %v2963 = vpop.f32.mrf.mxu0
      %v2964 = vadd.f32 %v2867, %v2963
      %v2965 = vpop.f32.mrf.mxu0
      %2966 = vdwg.mxu0
      %2967 = vmatprep.subr.bf16.mxu0 0
      %2968 = vmatpush1.bf16.msra.mxu0 %v2668
      %2969 = vmatprep.subr.bf16.mxu0 0
      %2970 = vmatpush1.bf16.msra.mxu0 %v2667
      %2971 = vmatprep.subr.bf16.mxu0 0
      %2972 = vmatpush1.bf16.msra.mxu0 %v2666
      %2973 = vmatprep.subr.bf16.mxu0 0
      %2974 = vmatpush1.bf16.msra.mxu0 %v2665
      %2975 = vmatprep.subr.bf16.mxu0 0
      %2976 = vmatpush1.bf16.msra.mxu0 %v2664
      %2977 = vmatprep.subr.bf16.mxu0 0
      %2978 = vmatpush1.bf16.msra.mxu0 %v2663
      %2979 = vmatprep.subr.bf16.mxu0 0
      %2980 = vmatpush1.bf16.msra.mxu0 %v2662
      %2981 = vmatprep.subr.bf16.mxu0 0
      %2982 = vmatpush1.bf16.msra.mxu0 %v2661
      %2983 = vmatprep.subr.bf16.mxu0 0
      %2984 = vmatpush2.bf16.msra.mxu0 %v2676
      %2985 = vmatprep.subr.bf16.mxu0 0
      %2986 = vmatpush2.bf16.msra.mxu0 %v2675
      %2987 = vmatprep.subr.bf16.mxu0 0
      %2988 = vmatpush2.bf16.msra.mxu0 %v2674
      %2989 = vmatprep.subr.bf16.mxu0 0
      %2990 = vmatpush2.bf16.msra.mxu0 %v2673
      %2991 = vmatprep.subr.bf16.mxu0 0
      %2992 = vmatpush2.bf16.msra.mxu0 %v2672
      %2993 = vmatprep.subr.bf16.mxu0 0
      %2994 = vmatpush2.bf16.msra.mxu0 %v2671
      %2995 = vmatprep.subr.bf16.mxu0 0
      %2996 = vmatpush2.bf16.msra.mxu0 %v2670
      %2997 = vmatprep.subr.bf16.mxu0 0
      %2998 = vmatpush2.bf16.msra.mxu0 %v2669
      %2999 = vmatprep.mubr.bf16.mxu0 %v2202
      %3000 = vmatmul.mubr.bf16.gmra.mxu0 %v2201
      %v3001 = vpop.f32.mrf.mxu0
      %v3002 = vadd.f32 %v2905, %v3001
      %v3003 = vpop.f32.mrf.mxu0
      %v3004 = vpop.f32.mrf.mxu0
      %v3005 = vadd.f32 %v2908, %v3004
      %v3006 = vpop.f32.mrf.mxu0
      %3007 = vmatprep.mubr.bf16.mxu0 %v2211
      %3008 = vmatmul.mubr.bf16.gmra.mxu0 %v2210
      %v3009 = vpop.f32.mrf.mxu0
      %v3010 = vadd.f32 %v2913, %v3009
      %v3011 = vpop.f32.mrf.mxu0
      %v3012 = vpop.f32.mrf.mxu0
      %v3013 = vadd.f32 %v2916, %v3012
      %v3014 = vpop.f32.mrf.mxu0
      %3015 = vmatprep.mubr.bf16.mxu0 %v2220
      %3016 = vmatmul.mubr.bf16.gmra.mxu0 %v2219
      %v3017 = vpop.f32.mrf.mxu0
      %v3018 = vadd.f32 %v2921, %v3017
      %v3019 = vpop.f32.mrf.mxu0
      %v3020 = vpop.f32.mrf.mxu0
      %v3021 = vadd.f32 %v2924, %v3020
      %v3022 = vpop.f32.mrf.mxu0
      %3023 = vmatprep.mubr.bf16.mxu0 %v2229
      %3024 = vmatmul.mubr.bf16.gmra.mxu0 %v2228
      %v3025 = vpop.f32.mrf.mxu0
      %v3026 = vadd.f32 %v2929, %v3025
      %v3027 = vpop.f32.mrf.mxu0
      %v3028 = vpop.f32.mrf.mxu0
      %v3029 = vadd.f32 %v2932, %v3028
      %v3030 = vpop.f32.mrf.mxu0
      %3031 = vmatprep.mubr.bf16.mxu0 %v2238
      %3032 = vmatmul.mubr.bf16.gmra.mxu0 %v2237
      %v3033 = vpop.f32.mrf.mxu0
      %v3034 = vadd.f32 %v2937, %v3033
      %v3035 = vpop.f32.mrf.mxu0
      %v3036 = vpop.f32.mrf.mxu0
      %v3037 = vadd.f32 %v2940, %v3036
      %v3038 = vpop.f32.mrf.mxu0
      %3039 = vmatprep.mubr.bf16.mxu0 %v2247
      %3040 = vmatmul.mubr.bf16.gmra.mxu0 %v2246
      %v3041 = vpop.f32.mrf.mxu0
      %v3042 = vadd.f32 %v2945, %v3041
      %v3043 = vpop.f32.mrf.mxu0
      %v3044 = vpop.f32.mrf.mxu0
      %v3045 = vadd.f32 %v2948, %v3044
      %v3046 = vpop.f32.mrf.mxu0
      %3047 = vmatprep.mubr.bf16.mxu0 %v2256
      %3048 = vmatmul.mubr.bf16.gmra.mxu0 %v2255
      %v3049 = vpop.f32.mrf.mxu0
      %v3050 = vadd.f32 %v2953, %v3049
      %v3051 = vpop.f32.mrf.mxu0
      %v3052 = vpop.f32.mrf.mxu0
      %v3053 = vadd.f32 %v2956, %v3052
      %v3054 = vpop.f32.mrf.mxu0
      %3055 = vmatprep.mubr.bf16.mxu0 %v2265
      %3056 = vmatmul.mubr.bf16.gmra.mxu0 %v2264
      %v3057 = vpop.f32.mrf.mxu0
      %v3058 = vadd.f32 %v2961, %v3057
      %v3059 = vpop.f32.mrf.mxu0
      %v3060 = vpop.f32.mrf.mxu0
      %v3061 = vadd.f32 %v2964, %v3060
      %v3062 = vpop.f32.mrf.mxu0
      %3063 = vdwg.mxu0
      %3064 = vmatprep.subr.bf16.mxu0 0
      %3065 = vmatpush1.bf16.msra.mxu0 %v2684
      %3066 = vmatprep.subr.bf16.mxu0 0
      %3067 = vmatpush1.bf16.msra.mxu0 %v2683
      %3068 = vmatprep.subr.bf16.mxu0 0
      %3069 = vmatpush1.bf16.msra.mxu0 %v2682
      %3070 = vmatprep.subr.bf16.mxu0 0
      %3071 = vmatpush1.bf16.msra.mxu0 %v2681
      %3072 = vmatprep.subr.bf16.mxu0 0
      %3073 = vmatpush1.bf16.msra.mxu0 %v2680
      %3074 = vmatprep.subr.bf16.mxu0 0
      %3075 = vmatpush1.bf16.msra.mxu0 %v2679
      %3076 = vmatprep.subr.bf16.mxu0 0
      %3077 = vmatpush1.bf16.msra.mxu0 %v2678
      %3078 = vmatprep.subr.bf16.mxu0 0
      %3079 = vmatpush1.bf16.msra.mxu0 %v2677
      %3080 = vmatprep.subr.bf16.mxu0 0
      %3081 = vmatpush2.bf16.msra.mxu0 %v2692
      %3082 = vmatprep.subr.bf16.mxu0 0
      %3083 = vmatpush2.bf16.msra.mxu0 %v2691
      %3084 = vmatprep.subr.bf16.mxu0 0
      %3085 = vmatpush2.bf16.msra.mxu0 %v2690
      %3086 = vmatprep.subr.bf16.mxu0 0
      %3087 = vmatpush2.bf16.msra.mxu0 %v2689
      %3088 = vmatprep.subr.bf16.mxu0 0
      %3089 = vmatpush2.bf16.msra.mxu0 %v2688
      %3090 = vmatprep.subr.bf16.mxu0 0
      %3091 = vmatpush2.bf16.msra.mxu0 %v2687
      %3092 = vmatprep.subr.bf16.mxu0 0
      %3093 = vmatpush2.bf16.msra.mxu0 %v2686
      %3094 = vmatprep.subr.bf16.mxu0 0
      %3095 = vmatpush2.bf16.msra.mxu0 %v2685
      %3096 = vmatprep.mubr.bf16.mxu0 %v2204
      %3097 = vmatmul.mubr.bf16.gmra.mxu0 %v2203
      %v3098 = vpop.f32.mrf.mxu0
      %v3099 = vadd.f32 %v3002, %v3098
      %v3100 = vpop.f32.mrf.mxu0
      %v3101 = vpop.f32.mrf.mxu0
      %v3102 = vadd.f32 %v3005, %v3101
      %v3103 = vpop.f32.mrf.mxu0
      %3104 = vmatprep.mubr.bf16.mxu0 %v2213
      %3105 = vmatmul.mubr.bf16.gmra.mxu0 %v2212
      %v3106 = vpop.f32.mrf.mxu0
      %v3107 = vadd.f32 %v3010, %v3106
      %v3108 = vpop.f32.mrf.mxu0
      %v3109 = vpop.f32.mrf.mxu0
      %v3110 = vadd.f32 %v3013, %v3109
      %v3111 = vpop.f32.mrf.mxu0
      %3112 = vmatprep.mubr.bf16.mxu0 %v2222
      %3113 = vmatmul.mubr.bf16.gmra.mxu0 %v2221
      %v3114 = vpop.f32.mrf.mxu0
      %v3115 = vadd.f32 %v3018, %v3114
      %v3116 = vpop.f32.mrf.mxu0
      %v3117 = vpop.f32.mrf.mxu0
      %v3118 = vadd.f32 %v3021, %v3117
      %v3119 = vpop.f32.mrf.mxu0
      %3120 = vmatprep.mubr.bf16.mxu0 %v2231
      %3121 = vmatmul.mubr.bf16.gmra.mxu0 %v2230
      %v3122 = vpop.f32.mrf.mxu0
      %v3123 = vadd.f32 %v3026, %v3122
      %v3124 = vpop.f32.mrf.mxu0
      %v3125 = vpop.f32.mrf.mxu0
      %v3126 = vadd.f32 %v3029, %v3125
      %v3127 = vpop.f32.mrf.mxu0
      %3128 = vmatprep.mubr.bf16.mxu0 %v2240
      %3129 = vmatmul.mubr.bf16.gmra.mxu0 %v2239
      %v3130 = vpop.f32.mrf.mxu0
      %v3131 = vadd.f32 %v3034, %v3130
      %v3132 = vpop.f32.mrf.mxu0
      %v3133 = vpop.f32.mrf.mxu0
      %v3134 = vadd.f32 %v3037, %v3133
      %v3135 = vpop.f32.mrf.mxu0
      %3136 = vmatprep.mubr.bf16.mxu0 %v2249
      %3137 = vmatmul.mubr.bf16.gmra.mxu0 %v2248
      %v3138 = vpop.f32.mrf.mxu0
      %v3139 = vadd.f32 %v3042, %v3138
      %v3140 = vpop.f32.mrf.mxu0
      %v3141 = vpop.f32.mrf.mxu0
      %v3142 = vadd.f32 %v3045, %v3141
      %v3143 = vpop.f32.mrf.mxu0
      %3144 = vmatprep.mubr.bf16.mxu0 %v2258
      %3145 = vmatmul.mubr.bf16.gmra.mxu0 %v2257
      %v3146 = vpop.f32.mrf.mxu0
      %v3147 = vadd.f32 %v3050, %v3146
      %v3148 = vpop.f32.mrf.mxu0
      %v3149 = vpop.f32.mrf.mxu0
      %v3150 = vadd.f32 %v3053, %v3149
      %v3151 = vpop.f32.mrf.mxu0
      %3152 = vmatprep.mubr.bf16.mxu0 %v2267
      %3153 = vmatmul.mubr.bf16.gmra.mxu0 %v2266
      %v3154 = vpop.f32.mrf.mxu0
      %v3155 = vadd.f32 %v3058, %v3154
      %v3156 = vpop.f32.mrf.mxu0
      %v3157 = vpop.f32.mrf.mxu0
      %v3158 = vadd.f32 %v3061, %v3157
      %v3159 = vpop.f32.mrf.mxu0
      %3160 = vdwg.mxu0
      %3161 = vmatprep.subr.bf16.mxu0 0
      %3162 = vmatpush1.bf16.msra.mxu0 %v2700
      %3163 = vmatprep.subr.bf16.mxu0 0
      %3164 = vmatpush1.bf16.msra.mxu0 %v2699
      %3165 = vmatprep.subr.bf16.mxu0 0
      %3166 = vmatpush1.bf16.msra.mxu0 %v2698
      %3167 = vmatprep.subr.bf16.mxu0 0
      %3168 = vmatpush1.bf16.msra.mxu0 %v2697
      %3169 = vmatprep.subr.bf16.mxu0 0
      %3170 = vmatpush1.bf16.msra.mxu0 %v2696
      %3171 = vmatprep.subr.bf16.mxu0 0
      %3172 = vmatpush1.bf16.msra.mxu0 %v2695
      %3173 = vmatprep.subr.bf16.mxu0 0
      %3174 = vmatpush1.bf16.msra.mxu0 %v2694
      %3175 = vmatprep.subr.bf16.mxu0 0
      %3176 = vmatpush1.bf16.msra.mxu0 %v2693
      %3177 = vmatprep.subr.bf16.mxu0 0
      %3178 = vmatpush2.bf16.msra.mxu0 0
      %3179 = vmatprep.subr.bf16.mxu0 0
      %3180 = vmatpush2.bf16.msra.mxu0 0
      %3181 = vmatprep.subr.bf16.mxu0 0
      %3182 = vmatpush2.bf16.msra.mxu0 0
      %3183 = vmatprep.subr.bf16.mxu0 0
      %3184 = vmatpush2.bf16.msra.mxu0 0
      %3185 = vmatprep.subr.bf16.mxu0 0
      %3186 = vmatpush2.bf16.msra.mxu0 0
      %3187 = vmatprep.subr.bf16.mxu0 0
      %3188 = vmatpush2.bf16.msra.mxu0 0
      %3189 = vmatprep.subr.bf16.mxu0 0
      %3190 = vmatpush2.bf16.msra.mxu0 0
      %3191 = vmatprep.subr.bf16.mxu0 0
      %3192 = vmatpush2.bf16.msra.mxu0 0
      %3193 = vmatprep.mubr.bf16.mxu0 0
      %3194 = vmatmul.mubr.bf16.gmra.mxu0 %v2205
      %v3195 = vpop.f32.mrf.mxu0
      %v3196 = vadd.f32 %v3099, %v3195
      %v3197 = vpop.f32.mrf.mxu0
      %v3198 = vpop.f32.mrf.mxu0
      %v3199 = vadd.f32 %v3102, %v3198
      %v3200 = vpop.f32.mrf.mxu0
      %3201 = vmatprep.mubr.bf16.mxu0 0
      %3202 = vmatmul.mubr.bf16.gmra.mxu0 %v2214
      %v3203 = vpop.f32.mrf.mxu0
      %v3204 = vadd.f32 %v3107, %v3203
      %v3205 = vpop.f32.mrf.mxu0
      %v3206 = vpop.f32.mrf.mxu0
      %v3207 = vadd.f32 %v3110, %v3206
      %v3208 = vpop.f32.mrf.mxu0
      %3209 = vmatprep.mubr.bf16.mxu0 0
      %3210 = vmatmul.mubr.bf16.gmra.mxu0 %v2223
      %v3211 = vpop.f32.mrf.mxu0
      %v3212 = vadd.f32 %v3115, %v3211
      %v3213 = vpop.f32.mrf.mxu0
      %v3214 = vpop.f32.mrf.mxu0
      %v3215 = vadd.f32 %v3118, %v3214
      %v3216 = vpop.f32.mrf.mxu0
      %3217 = vmatprep.mubr.bf16.mxu0 0
      %3218 = vmatmul.mubr.bf16.gmra.mxu0 %v2232
      %v3219 = vpop.f32.mrf.mxu0
      %v3220 = vadd.f32 %v3123, %v3219
      %v3221 = vpop.f32.mrf.mxu0
      %v3222 = vpop.f32.mrf.mxu0
      %v3223 = vadd.f32 %v3126, %v3222
      %v3224 = vpop.f32.mrf.mxu0
      %3225 = vmatprep.mubr.bf16.mxu0 0
      %3226 = vmatmul.mubr.bf16.gmra.mxu0 %v2241
      %v3227 = vpop.f32.mrf.mxu0
      %v3228 = vadd.f32 %v3131, %v3227
      %v3229 = vpop.f32.mrf.mxu0
      %v3230 = vpop.f32.mrf.mxu0
      %v3231 = vadd.f32 %v3134, %v3230
      %v3232 = vpop.f32.mrf.mxu0
      %3233 = vmatprep.mubr.bf16.mxu0 0
      %3234 = vmatmul.mubr.bf16.gmra.mxu0 %v2250
      %v3235 = vpop.f32.mrf.mxu0
      %v3236 = vadd.f32 %v3139, %v3235
      %v3237 = vpop.f32.mrf.mxu0
      %v3238 = vpop.f32.mrf.mxu0
      %v3239 = vadd.f32 %v3142, %v3238
      %v3240 = vpop.f32.mrf.mxu0
      %3241 = vmatprep.mubr.bf16.mxu0 0
      %3242 = vmatmul.mubr.bf16.gmra.mxu0 %v2259
      %v3243 = vpop.f32.mrf.mxu0
      %v3244 = vadd.f32 %v3147, %v3243
      %v3245 = vpop.f32.mrf.mxu0
      %v3246 = vpop.f32.mrf.mxu0
      %v3247 = vadd.f32 %v3150, %v3246
      %v3248 = vpop.f32.mrf.mxu0
      %3249 = vmatprep.mubr.bf16.mxu0 0
      %3250 = vmatmul.mubr.bf16.gmra.mxu0 %v2268
      %v3251 = vpop.f32.mrf.mxu0
      %v3252 = vadd.f32 %v3155, %v3251
      %v3253 = vpop.f32.mrf.mxu0
      %v3254 = vpop.f32.mrf.mxu0
      %v3255 = vadd.f32 %v3158, %v3254
      %v3256 = vpop.f32.mrf.mxu0
      %3257 = vdwg.mxu0
      %v3258 = vpack.c.bf16 %v3199, %v3196
      %v3259 = vpack.c.bf16 %v3207, %v3204
      %v3260 = vpack.c.bf16 %v3215, %v3212
      %v3261 = vpack.c.bf16 %v3223, %v3220
      %v3262 = vpack.c.bf16 %v3231, %v3228
      %v3263 = vpack.c.bf16 %v3239, %v3236
      %v3264 = vpack.c.bf16 %v3247, %v3244
      %v3265 = vpack.c.bf16 %v3255, %v3252
      %v3274 = vunpack.c.l.b16 %v3258
      %v3275 = vunpack.c.h.b16 %v3258
      %v3276 = vunpack.c.l.b16 %v3259
      %v3277 = vunpack.c.h.b16 %v3259
      %v3278 = vunpack.c.l.b16 %v3260
      %v3279 = vunpack.c.h.b16 %v3260
      %v3280 = vunpack.c.l.b16 %v3261
      %v3281 = vunpack.c.h.b16 %v3261
      %v3282 = vunpack.c.l.b16 %v3262
      %v3283 = vunpack.c.h.b16 %v3262
      %v3284 = vunpack.c.l.b16 %v3263
      %v3285 = vunpack.c.h.b16 %v3263
      %v3286 = vunpack.c.l.b16 %v3264
      %v3287 = vunpack.c.h.b16 %v3264
      %v3288 = vunpack.c.l.b16 %v3265
      %v3289 = vunpack.c.h.b16 %v3265
      %v3290 = vpack.c.b16 %v3274, %v3274
      %v3291 = vpack.c.b16 %v3275, %v3275
      %v3292 = vpack.c.b16 %v3276, %v3276
      %v3293 = vpack.c.b16 %v3277, %v3277
      %v3294 = vpack.c.b16 %v3278, %v3278
      %v3295 = vpack.c.b16 %v3279, %v3279
      %v3296 = vpack.c.b16 %v3280, %v3280
      %v3297 = vpack.c.b16 %v3281, %v3281
      %v3298 = vpack.c.b16 %v3282, %v3282
      %v3299 = vpack.c.b16 %v3283, %v3283
      %v3300 = vpack.c.b16 %v3284, %v3284
      %v3301 = vpack.c.b16 %v3285, %v3285
      %v3302 = vpack.c.b16 %v3286, %v3286
      %v3303 = vpack.c.b16 %v3287, %v3287
      %v3304 = vpack.c.b16 %v3288, %v3288
      %v3305 = vpack.c.b16 %v3289, %v3289
      %3322 = vst [vmem:[%s232] sm:$0xf] %v3290
      %3323 = vst [vmem:[%s232 + $0x4] sm:$0xf] %v3291
      %3324 = vst [vmem:[%s232 + $0x8] sm:$0xf] %v3292
      %3325 = vst [vmem:[%s232 + $0xc] sm:$0xf] %v3293
      %3326 = vst [vmem:[%s232 + $0x10] sm:$0xf] %v3294
      %3327 = vst [vmem:[%s232 + $0x14] sm:$0xf] %v3295
      %3328 = vst [vmem:[%s232 + $0x18] sm:$0xf] %v3296
      %3329 = vst [vmem:[%s232 + $0x1c] sm:$0xf] %v3297
      %3330 = vst [vmem:[%s232 + $0x20] sm:$0xf] %v3298
      %3331 = vst [vmem:[%s232 + $0x24] sm:$0xf] %v3299
      %3332 = vst [vmem:[%s232 + $0x28] sm:$0xf] %v3300
      %3333 = vst [vmem:[%s232 + $0x2c] sm:$0xf] %v3301
      %3334 = vst [vmem:[%s232 + $0x30] sm:$0xf] %v3302
      %3335 = vst [vmem:[%s232 + $0x34] sm:$0xf] %v3303
      %3336 = vst [vmem:[%s232 + $0x38] sm:$0xf] %v3304
      %3337 = vst [vmem:[%s232 + $0x3c] sm:$0xf] %v3305
      %v3338 = vld [vmem:[%s2] sm:$0xf]
      %v3339 = vld [vmem:[%s2 + $0x4] sm:$0xf]
      %v3340 = vld [vmem:[%s2 + $0x8] sm:$0xf]
      %v3341 = vld [vmem:[%s2 + $0xc] sm:$0xf]
      %v3342 = vld [vmem:[%s2 + $0x10] sm:$0xf]
      %v3343 = vld [vmem:[%s2 + $0x14] sm:$0xf]
      %v3344 = vld [vmem:[%s2 + $0x18] sm:$0xf]
      %v3345 = vld [vmem:[%s2 + $0x1c] sm:$0xf]
      %v3346 = vld [vmem:[%s2 + $0x20] sm:$0xf]
      %v3347 = vld [vmem:[%s2 + $0x24] sm:$0xf]
      %v3348 = vld [vmem:[%s2 + $0x28] sm:$0xf]
      %v3349 = vld [vmem:[%s2 + $0x2c] sm:$0xf]
      %v3350 = vld [vmem:[%s2 + $0x30] sm:$0xf]
      %v3351 = vld [vmem:[%s2 + $0x34] sm:$0xf]
      %v3352 = vld [vmem:[%s2 + $0x38] sm:$0xf]
      %v3353 = vld [vmem:[%s2 + $0x3c] sm:$0xf]
      %v3354 = vld [vmem:[%s2 + $0x40] sm:$0xf]
      %v3355 = vld [vmem:[%s2 + $0x44] sm:$0xf]
      %v3356 = vld [vmem:[%s2 + $0x48] sm:$0xf]
      %v3357 = vld [vmem:[%s2 + $0x4c] sm:$0xf]
      %v3358 = vld [vmem:[%s2 + $0x50] sm:$0xf]
      %v3359 = vld [vmem:[%s2 + $0x54] sm:$0xf]
      %v3360 = vld [vmem:[%s2 + $0x58] sm:$0xf]
      %v3361 = vld [vmem:[%s2 + $0x5c] sm:$0xf]
      %v3362 = vld [vmem:[%s2 + $0x60] sm:$0xf]
      %v3363 = vld [vmem:[%s2 + $0x64] sm:$0xf]
      %v3364 = vld [vmem:[%s2 + $0x68] sm:$0xf]
      %v3365 = vld [vmem:[%s2 + $0x6c] sm:$0xf]
      %v3366 = vld [vmem:[%s2 + $0x70] sm:$0xf]
      %v3367 = vld [vmem:[%s2 + $0x74] sm:$0xf]
      %v3368 = vld [vmem:[%s2 + $0x78] sm:$0xf]
      %v3369 = vld [vmem:[%s2 + $0x7c] sm:$0xf]
      %v3370 = vld [vmem:[%s2 + $0x80] sm:$0xf]
      %v3371 = vld [vmem:[%s2 + $0x84] sm:$0xf]
      %v3372 = vld [vmem:[%s2 + $0x88] sm:$0xf]
      %v3373 = vld [vmem:[%s2 + $0x8c] sm:$0xf]
      %v3374 = vld [vmem:[%s2 + $0x90] sm:$0xf]
      %v3375 = vld [vmem:[%s2 + $0x94] sm:$0xf]
      %v3376 = vld [vmem:[%s2 + $0x98] sm:$0xf]
      %v3377 = vld [vmem:[%s2 + $0x9c] sm:$0xf]
      %v3378 = vld [vmem:[%s2 + $0xa0] sm:$0xf]
      %v3379 = vld [vmem:[%s2 + $0xa4] sm:$0xf]
      %v3380 = vld [vmem:[%s2 + $0xa8] sm:$0xf]
      %v3381 = vld [vmem:[%s2 + $0xac] sm:$0xf]
      %v3382 = vld [vmem:[%s2 + $0xb0] sm:$0xf]
      %v3383 = vld [vmem:[%s2 + $0xb4] sm:$0xf]
      %v3384 = vld [vmem:[%s2 + $0xb8] sm:$0xf]
      %v3385 = vld [vmem:[%s2 + $0xbc] sm:$0xf]
      %v3386 = vld [vmem:[%s2 + $0xc0] sm:$0xf]
      %v3387 = vld [vmem:[%s2 + $0xc4] sm:$0xf]
      %v3388 = vld [vmem:[%s2 + $0xc8] sm:$0xf]
      %v3389 = vld [vmem:[%s2 + $0xcc] sm:$0xf]
      %v3390 = vld [vmem:[%s2 + $0xd0] sm:$0xf]
      %v3391 = vld [vmem:[%s2 + $0xd4] sm:$0xf]
      %v3392 = vld [vmem:[%s2 + $0xd8] sm:$0xf]
      %v3393 = vld [vmem:[%s2 + $0xdc] sm:$0xf]
      %v3394 = vld [vmem:[%s2 + $0xe0] sm:$0xf]
      %v3395 = vld [vmem:[%s2 + $0xe4] sm:$0xf]
      %v3396 = vld [vmem:[%s2 + $0xe8] sm:$0xf]
      %v3397 = vld [vmem:[%s2 + $0xec] sm:$0xf]
      %v3398 = vld [vmem:[%s2 + $0xf0] sm:$0xf]
      %v3399 = vld [vmem:[%s2 + $0xf4] sm:$0xf]
      %v3400 = vld [vmem:[%s2 + $0xf8] sm:$0xf]
      %v3401 = vld [vmem:[%s2 + $0xfc] sm:$0xf]
      %v3402 = vld [vmem:[%s2 + $0x100] sm:$0xf]
      %v3403 = vld [vmem:[%s2 + $0x104] sm:$0xf]
      %v3404 = vld [vmem:[%s2 + $0x108] sm:$0xf]
      %v3405 = vld [vmem:[%s2 + $0x10c] sm:$0xf]
      %v3406 = vld [vmem:[%s2 + $0x110] sm:$0xf]
      %v3407 = vld [vmem:[%s2 + $0x114] sm:$0xf]
      %v3408 = vld [vmem:[%s2 + $0x118] sm:$0xf]
      %v3409 = vld [vmem:[%s2 + $0x11c] sm:$0xf]
      %v3482 = vunpack.c.l.b16 %v3338
      %v3483 = vunpack.c.l.b16 %v3339
      %v3484 = vunpack.c.l.b16 %v3340
      %v3485 = vunpack.c.l.b16 %v3341
      %v3486 = vunpack.c.l.b16 %v3342
      %v3487 = vunpack.c.l.b16 %v3343
      %v3488 = vunpack.c.l.b16 %v3344
      %v3489 = vunpack.c.l.b16 %v3345
      %v3490 = vunpack.c.l.b16 %v3346
      %v3491 = vunpack.c.l.b16 %v3347
      %v3492 = vunpack.c.l.b16 %v3348
      %v3493 = vunpack.c.l.b16 %v3349
      %v3494 = vunpack.c.l.b16 %v3350
      %v3495 = vunpack.c.l.b16 %v3351
      %v3496 = vunpack.c.l.b16 %v3352
      %v3497 = vunpack.c.l.b16 %v3353
      %v3498 = vunpack.c.l.b16 %v3354
      %v3499 = vunpack.c.l.b16 %v3355
      %v3500 = vunpack.c.l.b16 %v3356
      %v3501 = vunpack.c.l.b16 %v3357
      %v3502 = vunpack.c.l.b16 %v3358
      %v3503 = vunpack.c.l.b16 %v3359
      %v3504 = vunpack.c.l.b16 %v3360
      %v3505 = vunpack.c.l.b16 %v3361
      %v3506 = vunpack.c.l.b16 %v3362
      %v3507 = vunpack.c.l.b16 %v3363
      %v3508 = vunpack.c.l.b16 %v3364
      %v3509 = vunpack.c.l.b16 %v3365
      %v3510 = vunpack.c.l.b16 %v3366
      %v3511 = vunpack.c.l.b16 %v3367
      %v3512 = vunpack.c.l.b16 %v3368
      %v3513 = vunpack.c.l.b16 %v3369
      %v3514 = vunpack.c.l.b16 %v3370
      %v3515 = vunpack.c.l.b16 %v3371
      %v3516 = vunpack.c.l.b16 %v3372
      %v3517 = vunpack.c.l.b16 %v3373
      %v3518 = vunpack.c.l.b16 %v3374
      %v3519 = vunpack.c.l.b16 %v3375
      %v3520 = vunpack.c.l.b16 %v3376
      %v3521 = vunpack.c.l.b16 %v3377
      %v3522 = vunpack.c.l.b16 %v3378
      %v3523 = vunpack.c.l.b16 %v3379
      %v3524 = vunpack.c.l.b16 %v3380
      %v3525 = vunpack.c.l.b16 %v3381
      %v3526 = vunpack.c.l.b16 %v3382
      %v3527 = vunpack.c.l.b16 %v3383
      %v3528 = vunpack.c.l.b16 %v3384
      %v3529 = vunpack.c.l.b16 %v3385
      %v3530 = vunpack.c.l.b16 %v3386
      %v3531 = vunpack.c.l.b16 %v3387
      %v3532 = vunpack.c.l.b16 %v3388
      %v3533 = vunpack.c.l.b16 %v3389
      %v3534 = vunpack.c.l.b16 %v3390
      %v3535 = vunpack.c.l.b16 %v3391
      %v3536 = vunpack.c.l.b16 %v3392
      %v3537 = vunpack.c.l.b16 %v3393
      %v3538 = vunpack.c.l.b16 %v3394
      %v3539 = vunpack.c.l.b16 %v3395
      %v3540 = vunpack.c.l.b16 %v3396
      %v3541 = vunpack.c.l.b16 %v3397
      %v3542 = vunpack.c.l.b16 %v3398
      %v3543 = vunpack.c.l.b16 %v3399
      %v3544 = vunpack.c.l.b16 %v3400
      %v3545 = vunpack.c.l.b16 %v3401
      %v3546 = vunpack.c.l.b16 %v3402
      %v3547 = vunpack.c.l.b16 %v3403
      %v3548 = vunpack.c.l.b16 %v3404
      %v3549 = vunpack.c.l.b16 %v3405
      %v3550 = vunpack.c.l.b16 %v3406
      %v3551 = vunpack.c.l.b16 %v3407
      %v3552 = vunpack.c.l.b16 %v3408
      %v3553 = vunpack.c.l.b16 %v3409
      %v3554 = vpack.c.b16 %v3483, %v3482
      %v3555 = vpack.c.b16 %v3485, %v3484
      %v3556 = vpack.c.b16 %v3487, %v3486
      %v3557 = vpack.c.b16 %v3489, %v3488
      %v3558 = vpack.c.b16 %v3491, %v3490
      %v3559 = vpack.c.b16 %v3493, %v3492
      %v3560 = vpack.c.b16 %v3495, %v3494
      %v3561 = vpack.c.b16 %v3497, %v3496
      %v3562 = vpack.c.b16 %v3499, %v3498
      %v3563 = vpack.c.b16 %v3501, %v3500
      %v3564 = vpack.c.b16 %v3503, %v3502
      %v3565 = vpack.c.b16 %v3505, %v3504
      %v3566 = vpack.c.b16 %v3507, %v3506
      %v3567 = vpack.c.b16 %v3509, %v3508
      %v3568 = vpack.c.b16 %v3511, %v3510
      %v3569 = vpack.c.b16 %v3513, %v3512
      %v3570 = vpack.c.b16 %v3515, %v3514
      %v3571 = vpack.c.b16 %v3517, %v3516
      %v3572 = vpack.c.b16 %v3519, %v3518
      %v3573 = vpack.c.b16 %v3521, %v3520
      %v3574 = vpack.c.b16 %v3523, %v3522
      %v3575 = vpack.c.b16 %v3525, %v3524
      %v3576 = vpack.c.b16 %v3527, %v3526
      %v3577 = vpack.c.b16 %v3529, %v3528
      %v3578 = vpack.c.b16 %v3531, %v3530
      %v3579 = vpack.c.b16 %v3533, %v3532
      %v3580 = vpack.c.b16 %v3535, %v3534
      %v3581 = vpack.c.b16 %v3537, %v3536
      %v3582 = vpack.c.b16 %v3539, %v3538
      %v3583 = vpack.c.b16 %v3541, %v3540
      %v3584 = vpack.c.b16 %v3543, %v3542
      %v3585 = vpack.c.b16 %v3545, %v3544
      %v3586 = vpack.c.b16 %v3547, %v3546
      %v3587 = vpack.c.b16 %v3549, %v3548
      %v3588 = vpack.c.b16 %v3551, %v3550
      %v3589 = vpack.c.b16 %v3553, %v3552
      %3626 = vmatprep.subr.bf16.mxu0 0
      %3627 = vmatpush1.bf16.msra.mxu0 %v3265
      %3628 = vmatprep.subr.bf16.mxu0 0
      %3629 = vmatpush1.bf16.msra.mxu0 %v3264
      %3630 = vmatprep.subr.bf16.mxu0 0
      %3631 = vmatpush1.bf16.msra.mxu0 %v3263
      %3632 = vmatprep.subr.bf16.mxu0 0
      %3633 = vmatpush1.bf16.msra.mxu0 %v3262
      %3634 = vmatprep.subr.bf16.mxu0 0
      %3635 = vmatpush1.bf16.msra.mxu0 %v3261
      %3636 = vmatprep.subr.bf16.mxu0 0
      %3637 = vmatpush1.bf16.msra.mxu0 %v3260
      %3638 = vmatprep.subr.bf16.mxu0 0
      %3639 = vmatpush1.bf16.msra.mxu0 %v3259
      %3640 = vmatprep.subr.bf16.mxu0 0
      %3641 = vmatpush1.bf16.msra.mxu0 %v3258
      %3642 = vmatprep.subr.bf16.mxu0 0
      %3643 = vmatpush2.bf16.msra.mxu0 0
      %3644 = vmatprep.subr.bf16.mxu0 0
      %3645 = vmatpush2.bf16.msra.mxu0 0
      %3646 = vmatprep.subr.bf16.mxu0 0
      %3647 = vmatpush2.bf16.msra.mxu0 0
      %3648 = vmatprep.subr.bf16.mxu0 0
      %3649 = vmatpush2.bf16.msra.mxu0 0
      %3650 = vmatprep.subr.bf16.mxu0 0
      %3651 = vmatpush2.bf16.msra.mxu0 0
      %3652 = vmatprep.subr.bf16.mxu0 0
      %3653 = vmatpush2.bf16.msra.mxu0 0
      %3654 = vmatprep.subr.bf16.mxu0 0
      %3655 = vmatpush2.bf16.msra.mxu0 0
      %3656 = vmatprep.subr.bf16.mxu0 0
      %3657 = vmatpush2.bf16.msra.mxu0 0
      %3658 = vmatprep.mubr.bf16.mxu0 0
      %3659 = vmatmul.mubr.bf16.gmra.mxu0 %v3554
      %v3660 = vpop.f32.mrf.mxu0
      %v3661 = vadd.f32 0.0, %v3660
      %v3662 = vpop.f32.mrf.mxu0
      %v3663 = vpop.f32.mrf.mxu0
      %v3664 = vadd.f32 0.0, %v3663
      %v3665 = vpop.f32.mrf.mxu0
      %3666 = vmatprep.mubr.bf16.mxu0 0
      %3667 = vmatmul.mubr.bf16.gmra.mxu0 %v3555
      %v3668 = vpop.f32.mrf.mxu0
      %v3669 = vadd.f32 0.0, %v3668
      %v3670 = vpop.f32.mrf.mxu0
      %v3671 = vpop.f32.mrf.mxu0
      %v3672 = vadd.f32 0.0, %v3671
      %v3673 = vpop.f32.mrf.mxu0
      %3674 = vmatprep.mubr.bf16.mxu0 0
      %3675 = vmatmul.mubr.bf16.gmra.mxu0 %v3556
      %v3676 = vpop.f32.mrf.mxu0
      %v3677 = vadd.f32 0.0, %v3676
      %v3678 = vpop.f32.mrf.mxu0
      %v3679 = vpop.f32.mrf.mxu0
      %v3680 = vadd.f32 0.0, %v3679
      %v3681 = vpop.f32.mrf.mxu0
      %3682 = vmatprep.mubr.bf16.mxu0 0
      %3683 = vmatmul.mubr.bf16.gmra.mxu0 %v3557
      %v3684 = vpop.f32.mrf.mxu0
      %v3685 = vadd.f32 0.0, %v3684
      %v3686 = vpop.f32.mrf.mxu0
      %v3687 = vpop.f32.mrf.mxu0
      %v3688 = vadd.f32 0.0, %v3687
      %v3689 = vpop.f32.mrf.mxu0
      %3690 = vmatprep.mubr.bf16.mxu0 0
      %3691 = vmatmul.mubr.bf16.gmra.mxu0 %v3558
      %v3692 = vpop.f32.mrf.mxu0
      %v3693 = vadd.f32 0.0, %v3692
      %v3694 = vpop.f32.mrf.mxu0
      %v3695 = vpop.f32.mrf.mxu0
      %v3696 = vadd.f32 0.0, %v3695
      %v3697 = vpop.f32.mrf.mxu0
      %3698 = vmatprep.mubr.bf16.mxu0 0
      %3699 = vmatmul.mubr.bf16.gmra.mxu0 %v3559
      %v3700 = vpop.f32.mrf.mxu0
      %v3701 = vadd.f32 0.0, %v3700
      %v3702 = vpop.f32.mrf.mxu0
      %v3703 = vpop.f32.mrf.mxu0
      %v3704 = vadd.f32 0.0, %v3703
      %v3705 = vpop.f32.mrf.mxu0
      %3706 = vmatprep.mubr.bf16.mxu0 0
      %3707 = vmatmul.mubr.bf16.gmra.mxu0 %v3560
      %v3708 = vpop.f32.mrf.mxu0
      %v3709 = vadd.f32 0.0, %v3708
      %v3710 = vpop.f32.mrf.mxu0
      %v3711 = vpop.f32.mrf.mxu0
      %v3712 = vadd.f32 0.0, %v3711
      %v3713 = vpop.f32.mrf.mxu0
      %3714 = vmatprep.mubr.bf16.mxu0 0
      %3715 = vmatmul.mubr.bf16.gmra.mxu0 %v3561
      %v3716 = vpop.f32.mrf.mxu0
      %v3717 = vadd.f32 0.0, %v3716
      %v3718 = vpop.f32.mrf.mxu0
      %v3719 = vpop.f32.mrf.mxu0
      %v3720 = vadd.f32 0.0, %v3719
      %v3721 = vpop.f32.mrf.mxu0
      %3722 = vmatprep.mubr.bf16.mxu0 0
      %3723 = vmatmul.mubr.bf16.gmra.mxu0 %v3562
      %v3724 = vpop.f32.mrf.mxu0
      %v3725 = vadd.f32 0.0, %v3724
      %v3726 = vpop.f32.mrf.mxu0
      %v3727 = vpop.f32.mrf.mxu0
      %v3728 = vadd.f32 0.0, %v3727
      %v3729 = vpop.f32.mrf.mxu0
      %3730 = vmatprep.mubr.bf16.mxu0 0
      %3731 = vmatmul.mubr.bf16.gmra.mxu0 %v3563
      %v3732 = vpop.f32.mrf.mxu0
      %v3733 = vadd.f32 0.0, %v3732
      %v3734 = vpop.f32.mrf.mxu0
      %v3735 = vpop.f32.mrf.mxu0
      %v3736 = vadd.f32 0.0, %v3735
      %v3737 = vpop.f32.mrf.mxu0
      %3738 = vmatprep.mubr.bf16.mxu0 0
      %3739 = vmatmul.mubr.bf16.gmra.mxu0 %v3564
      %v3740 = vpop.f32.mrf.mxu0
      %v3741 = vadd.f32 0.0, %v3740
      %v3742 = vpop.f32.mrf.mxu0
      %v3743 = vpop.f32.mrf.mxu0
      %v3744 = vadd.f32 0.0, %v3743
      %v3745 = vpop.f32.mrf.mxu0
      %3746 = vmatprep.mubr.bf16.mxu0 0
      %3747 = vmatmul.mubr.bf16.gmra.mxu0 %v3565
      %v3748 = vpop.f32.mrf.mxu0
      %v3749 = vadd.f32 0.0, %v3748
      %v3750 = vpop.f32.mrf.mxu0
      %v3751 = vpop.f32.mrf.mxu0
      %v3752 = vadd.f32 0.0, %v3751
      %v3753 = vpop.f32.mrf.mxu0
      %3754 = vmatprep.mubr.bf16.mxu0 0
      %3755 = vmatmul.mubr.bf16.gmra.mxu0 %v3566
      %v3756 = vpop.f32.mrf.mxu0
      %v3757 = vadd.f32 0.0, %v3756
      %v3758 = vpop.f32.mrf.mxu0
      %v3759 = vpop.f32.mrf.mxu0
      %v3760 = vadd.f32 0.0, %v3759
      %v3761 = vpop.f32.mrf.mxu0
      %3762 = vmatprep.mubr.bf16.mxu0 0
      %3763 = vmatmul.mubr.bf16.gmra.mxu0 %v3567
      %v3764 = vpop.f32.mrf.mxu0
      %v3765 = vadd.f32 0.0, %v3764
      %v3766 = vpop.f32.mrf.mxu0
      %v3767 = vpop.f32.mrf.mxu0
      %v3768 = vadd.f32 0.0, %v3767
      %v3769 = vpop.f32.mrf.mxu0
      %3770 = vmatprep.mubr.bf16.mxu0 0
      %3771 = vmatmul.mubr.bf16.gmra.mxu0 %v3568
      %v3772 = vpop.f32.mrf.mxu0
      %v3773 = vadd.f32 0.0, %v3772
      %v3774 = vpop.f32.mrf.mxu0
      %v3775 = vpop.f32.mrf.mxu0
      %v3776 = vadd.f32 0.0, %v3775
      %v3777 = vpop.f32.mrf.mxu0
      %3778 = vmatprep.mubr.bf16.mxu0 0
      %3779 = vmatmul.mubr.bf16.gmra.mxu0 %v3569
      %v3780 = vpop.f32.mrf.mxu0
      %v3781 = vadd.f32 0.0, %v3780
      %v3782 = vpop.f32.mrf.mxu0
      %v3783 = vpop.f32.mrf.mxu0
      %v3784 = vadd.f32 0.0, %v3783
      %v3785 = vpop.f32.mrf.mxu0
      %3786 = vmatprep.mubr.bf16.mxu0 0
      %3787 = vmatmul.mubr.bf16.gmra.mxu0 %v3570
      %v3788 = vpop.f32.mrf.mxu0
      %v3789 = vadd.f32 0.0, %v3788
      %v3790 = vpop.f32.mrf.mxu0
      %v3791 = vpop.f32.mrf.mxu0
      %v3792 = vadd.f32 0.0, %v3791
      %v3793 = vpop.f32.mrf.mxu0
      %3794 = vmatprep.mubr.bf16.mxu0 0
      %3795 = vmatmul.mubr.bf16.gmra.mxu0 %v3571
      %v3796 = vpop.f32.mrf.mxu0
      %v3797 = vadd.f32 0.0, %v3796
      %v3798 = vpop.f32.mrf.mxu0
      %v3799 = vpop.f32.mrf.mxu0
      %v3800 = vadd.f32 0.0, %v3799
      %v3801 = vpop.f32.mrf.mxu0
      %3802 = vmatprep.mubr.bf16.mxu0 0
      %3803 = vmatmul.mubr.bf16.gmra.mxu0 %v3572
      %v3804 = vpop.f32.mrf.mxu0
      %v3805 = vadd.f32 0.0, %v3804
      %v3806 = vpop.f32.mrf.mxu0
      %v3807 = vpop.f32.mrf.mxu0
      %v3808 = vadd.f32 0.0, %v3807
      %v3809 = vpop.f32.mrf.mxu0
      %3810 = vmatprep.mubr.bf16.mxu0 0
      %3811 = vmatmul.mubr.bf16.gmra.mxu0 %v3573
      %v3812 = vpop.f32.mrf.mxu0
      %v3813 = vadd.f32 0.0, %v3812
      %v3814 = vpop.f32.mrf.mxu0
      %v3815 = vpop.f32.mrf.mxu0
      %v3816 = vadd.f32 0.0, %v3815
      %v3817 = vpop.f32.mrf.mxu0
      %3818 = vmatprep.mubr.bf16.mxu0 0
      %3819 = vmatmul.mubr.bf16.gmra.mxu0 %v3574
      %v3820 = vpop.f32.mrf.mxu0
      %v3821 = vadd.f32 0.0, %v3820
      %v3822 = vpop.f32.mrf.mxu0
      %v3823 = vpop.f32.mrf.mxu0
      %v3824 = vadd.f32 0.0, %v3823
      %v3825 = vpop.f32.mrf.mxu0
      %3826 = vmatprep.mubr.bf16.mxu0 0
      %3827 = vmatmul.mubr.bf16.gmra.mxu0 %v3575
      %v3828 = vpop.f32.mrf.mxu0
      %v3829 = vadd.f32 0.0, %v3828
      %v3830 = vpop.f32.mrf.mxu0
      %v3831 = vpop.f32.mrf.mxu0
      %v3832 = vadd.f32 0.0, %v3831
      %v3833 = vpop.f32.mrf.mxu0
      %3834 = vmatprep.mubr.bf16.mxu0 0
      %3835 = vmatmul.mubr.bf16.gmra.mxu0 %v3576
      %v3836 = vpop.f32.mrf.mxu0
      %v3837 = vadd.f32 0.0, %v3836
      %v3838 = vpop.f32.mrf.mxu0
      %v3839 = vpop.f32.mrf.mxu0
      %v3840 = vadd.f32 0.0, %v3839
      %v3841 = vpop.f32.mrf.mxu0
      %3842 = vmatprep.mubr.bf16.mxu0 0
      %3843 = vmatmul.mubr.bf16.gmra.mxu0 %v3577
      %v3844 = vpop.f32.mrf.mxu0
      %v3845 = vadd.f32 0.0, %v3844
      %v3846 = vpop.f32.mrf.mxu0
      %v3847 = vpop.f32.mrf.mxu0
      %v3848 = vadd.f32 0.0, %v3847
      %v3849 = vpop.f32.mrf.mxu0
      %3850 = vmatprep.mubr.bf16.mxu0 0
      %3851 = vmatmul.mubr.bf16.gmra.mxu0 %v3578
      %v3852 = vpop.f32.mrf.mxu0
      %v3853 = vadd.f32 0.0, %v3852
      %v3854 = vpop.f32.mrf.mxu0
      %v3855 = vpop.f32.mrf.mxu0
      %v3856 = vadd.f32 0.0, %v3855
      %v3857 = vpop.f32.mrf.mxu0
      %3858 = vmatprep.mubr.bf16.mxu0 0
      %3859 = vmatmul.mubr.bf16.gmra.mxu0 %v3579
      %v3860 = vpop.f32.mrf.mxu0
      %v3861 = vadd.f32 0.0, %v3860
      %v3862 = vpop.f32.mrf.mxu0
      %v3863 = vpop.f32.mrf.mxu0
      %v3864 = vadd.f32 0.0, %v3863
      %v3865 = vpop.f32.mrf.mxu0
      %3866 = vmatprep.mubr.bf16.mxu0 0
      %3867 = vmatmul.mubr.bf16.gmra.mxu0 %v3580
      %v3868 = vpop.f32.mrf.mxu0
      %v3869 = vadd.f32 0.0, %v3868
      %v3870 = vpop.f32.mrf.mxu0
      %v3871 = vpop.f32.mrf.mxu0
      %v3872 = vadd.f32 0.0, %v3871
      %v3873 = vpop.f32.mrf.mxu0
      %3874 = vmatprep.mubr.bf16.mxu0 0
      %3875 = vmatmul.mubr.bf16.gmra.mxu0 %v3581
      %v3876 = vpop.f32.mrf.mxu0
      %v3877 = vadd.f32 0.0, %v3876
      %v3878 = vpop.f32.mrf.mxu0
      %v3879 = vpop.f32.mrf.mxu0
      %v3880 = vadd.f32 0.0, %v3879
      %v3881 = vpop.f32.mrf.mxu0
      %3882 = vmatprep.mubr.bf16.mxu0 0
      %3883 = vmatmul.mubr.bf16.gmra.mxu0 %v3582
      %v3884 = vpop.f32.mrf.mxu0
      %v3885 = vadd.f32 0.0, %v3884
      %v3886 = vpop.f32.mrf.mxu0
      %v3887 = vpop.f32.mrf.mxu0
      %v3888 = vadd.f32 0.0, %v3887
      %v3889 = vpop.f32.mrf.mxu0
      %3890 = vmatprep.mubr.bf16.mxu0 0
      %3891 = vmatmul.mubr.bf16.gmra.mxu0 %v3583
      %v3892 = vpop.f32.mrf.mxu0
      %v3893 = vadd.f32 0.0, %v3892
      %v3894 = vpop.f32.mrf.mxu0
      %v3895 = vpop.f32.mrf.mxu0
      %v3896 = vadd.f32 0.0, %v3895
      %v3897 = vpop.f32.mrf.mxu0
      %3898 = vmatprep.mubr.bf16.mxu0 0
      %3899 = vmatmul.mubr.bf16.gmra.mxu0 %v3584
      %v3900 = vpop.f32.mrf.mxu0
      %v3901 = vadd.f32 0.0, %v3900
      %v3902 = vpop.f32.mrf.mxu0
      %v3903 = vpop.f32.mrf.mxu0
      %v3904 = vadd.f32 0.0, %v3903
      %v3905 = vpop.f32.mrf.mxu0
      %3906 = vmatprep.mubr.bf16.mxu0 0
      %3907 = vmatmul.mubr.bf16.gmra.mxu0 %v3585
      %v3908 = vpop.f32.mrf.mxu0
      %v3909 = vadd.f32 0.0, %v3908
      %v3910 = vpop.f32.mrf.mxu0
      %v3911 = vpop.f32.mrf.mxu0
      %v3912 = vadd.f32 0.0, %v3911
      %v3913 = vpop.f32.mrf.mxu0
      %3914 = vmatprep.mubr.bf16.mxu0 0
      %3915 = vmatmul.mubr.bf16.gmra.mxu0 %v3586
      %v3916 = vpop.f32.mrf.mxu0
      %v3917 = vadd.f32 0.0, %v3916
      %v3918 = vpop.f32.mrf.mxu0
      %v3919 = vpop.f32.mrf.mxu0
      %v3920 = vadd.f32 0.0, %v3919
      %v3921 = vpop.f32.mrf.mxu0
      %3922 = vmatprep.mubr.bf16.mxu0 0
      %3923 = vmatmul.mubr.bf16.gmra.mxu0 %v3587
      %v3924 = vpop.f32.mrf.mxu0
      %v3925 = vadd.f32 0.0, %v3924
      %v3926 = vpop.f32.mrf.mxu0
      %v3927 = vpop.f32.mrf.mxu0
      %v3928 = vadd.f32 0.0, %v3927
      %v3929 = vpop.f32.mrf.mxu0
      %3930 = vmatprep.mubr.bf16.mxu0 0
      %3931 = vmatmul.mubr.bf16.gmra.mxu0 %v3588
      %v3932 = vpop.f32.mrf.mxu0
      %v3933 = vadd.f32 0.0, %v3932
      %v3934 = vpop.f32.mrf.mxu0
      %v3935 = vpop.f32.mrf.mxu0
      %v3936 = vadd.f32 0.0, %v3935
      %v3937 = vpop.f32.mrf.mxu0
      %3938 = vmatprep.mubr.bf16.mxu0 0
      %3939 = vmatmul.mubr.bf16.gmra.mxu0 %v3589
      %v3940 = vpop.f32.mrf.mxu0
      %v3941 = vadd.f32 0.0, %v3940
      %v3942 = vpop.f32.mrf.mxu0
      %v3943 = vpop.f32.mrf.mxu0
      %v3944 = vadd.f32 0.0, %v3943
      %v3945 = vpop.f32.mrf.mxu0
      %3946 = vdwg.mxu0
      %v3947 = vpack.c.bf16 %v3664, %v3661
      %v3948 = vpack.c.bf16 %v3672, %v3669
      %v3949 = vpack.c.bf16 %v3680, %v3677
      %v3950 = vpack.c.bf16 %v3688, %v3685
      %v3951 = vpack.c.bf16 %v3696, %v3693
      %v3952 = vpack.c.bf16 %v3704, %v3701
      %v3953 = vpack.c.bf16 %v3712, %v3709
      %v3954 = vpack.c.bf16 %v3720, %v3717
      %v3955 = vpack.c.bf16 %v3728, %v3725
      %v3956 = vpack.c.bf16 %v3736, %v3733
      %v3957 = vpack.c.bf16 %v3744, %v3741
      %v3958 = vpack.c.bf16 %v3752, %v3749
      %v3959 = vpack.c.bf16 %v3760, %v3757
      %v3960 = vpack.c.bf16 %v3768, %v3765
      %v3961 = vpack.c.bf16 %v3776, %v3773
      %v3962 = vpack.c.bf16 %v3784, %v3781
      %v3963 = vpack.c.bf16 %v3792, %v3789
      %v3964 = vpack.c.bf16 %v3800, %v3797
      %v3965 = vpack.c.bf16 %v3808, %v3805
      %v3966 = vpack.c.bf16 %v3816, %v3813
      %v3967 = vpack.c.bf16 %v3824, %v3821
      %v3968 = vpack.c.bf16 %v3832, %v3829
      %v3969 = vpack.c.bf16 %v3840, %v3837
      %v3970 = vpack.c.bf16 %v3848, %v3845
      %v3971 = vpack.c.bf16 %v3856, %v3853
      %v3972 = vpack.c.bf16 %v3864, %v3861
      %v3973 = vpack.c.bf16 %v3872, %v3869
      %v3974 = vpack.c.bf16 %v3880, %v3877
      %v3975 = vpack.c.bf16 %v3888, %v3885
      %v3976 = vpack.c.bf16 %v3896, %v3893
      %v3977 = vpack.c.bf16 %v3904, %v3901
      %v3978 = vpack.c.bf16 %v3912, %v3909
      %v3979 = vpack.c.bf16 %v3920, %v3917
      %v3980 = vpack.c.bf16 %v3928, %v3925
      %v3981 = vpack.c.bf16 %v3936, %v3933
      %v3982 = vpack.c.bf16 %v3944, %v3941
      %v4019 = vunpack.c.l.b16 %v3947
      %v4020 = vunpack.c.h.b16 %v3947
      %v4021 = vunpack.c.l.b16 %v3948
      %v4022 = vunpack.c.h.b16 %v3948
      %v4023 = vunpack.c.l.b16 %v3949
      %v4024 = vunpack.c.h.b16 %v3949
      %v4025 = vunpack.c.l.b16 %v3950
      %v4026 = vunpack.c.h.b16 %v3950
      %v4027 = vunpack.c.l.b16 %v3951
      %v4028 = vunpack.c.h.b16 %v3951
      %v4029 = vunpack.c.l.b16 %v3952
      %v4030 = vunpack.c.h.b16 %v3952
      %v4031 = vunpack.c.l.b16 %v3953
      %v4032 = vunpack.c.h.b16 %v3953
      %v4033 = vunpack.c.l.b16 %v3954
      %v4034 = vunpack.c.h.b16 %v3954
      %v4035 = vunpack.c.l.b16 %v3955
      %v4036 = vunpack.c.h.b16 %v3955
      %v4037 = vunpack.c.l.b16 %v3956
      %v4038 = vunpack.c.h.b16 %v3956
      %v4039 = vunpack.c.l.b16 %v3957
      %v4040 = vunpack.c.h.b16 %v3957
      %v4041 = vunpack.c.l.b16 %v3958
      %v4042 = vunpack.c.h.b16 %v3958
      %v4043 = vunpack.c.l.b16 %v3959
      %v4044 = vunpack.c.h.b16 %v3959
      %v4045 = vunpack.c.l.b16 %v3960
      %v4046 = vunpack.c.h.b16 %v3960
      %v4047 = vunpack.c.l.b16 %v3961
      %v4048 = vunpack.c.h.b16 %v3961
      %v4049 = vunpack.c.l.b16 %v3962
      %v4050 = vunpack.c.h.b16 %v3962
      %v4051 = vunpack.c.l.b16 %v3963
      %v4052 = vunpack.c.h.b16 %v3963
      %v4053 = vunpack.c.l.b16 %v3964
      %v4054 = vunpack.c.h.b16 %v3964
      %v4055 = vunpack.c.l.b16 %v3965
      %v4056 = vunpack.c.h.b16 %v3965
      %v4057 = vunpack.c.l.b16 %v3966
      %v4058 = vunpack.c.h.b16 %v3966
      %v4059 = vunpack.c.l.b16 %v3967
      %v4060 = vunpack.c.h.b16 %v3967
      %v4061 = vunpack.c.l.b16 %v3968
      %v4062 = vunpack.c.h.b16 %v3968
      %v4063 = vunpack.c.l.b16 %v3969
      %v4064 = vunpack.c.h.b16 %v3969
      %v4065 = vunpack.c.l.b16 %v3970
      %v4066 = vunpack.c.h.b16 %v3970
      %v4067 = vunpack.c.l.b16 %v3971
      %v4068 = vunpack.c.h.b16 %v3971
      %v4069 = vunpack.c.l.b16 %v3972
      %v4070 = vunpack.c.h.b16 %v3972
      %v4071 = vunpack.c.l.b16 %v3973
      %v4072 = vunpack.c.h.b16 %v3973
      %v4073 = vunpack.c.l.b16 %v3974
      %v4074 = vunpack.c.h.b16 %v3974
      %v4075 = vunpack.c.l.b16 %v3975
      %v4076 = vunpack.c.h.b16 %v3975
      %v4077 = vunpack.c.l.b16 %v3976
      %v4078 = vunpack.c.h.b16 %v3976
      %v4079 = vunpack.c.l.b16 %v3977
      %v4080 = vunpack.c.h.b16 %v3977
      %v4081 = vunpack.c.l.b16 %v3978
      %v4082 = vunpack.c.h.b16 %v3978
      %v4083 = vunpack.c.l.b16 %v3979
      %v4084 = vunpack.c.h.b16 %v3979
      %v4085 = vunpack.c.l.b16 %v3980
      %v4086 = vunpack.c.h.b16 %v3980
      %v4087 = vunpack.c.l.b16 %v3981
      %v4088 = vunpack.c.h.b16 %v3981
      %v4089 = vunpack.c.l.b16 %v3982
      %v4090 = vunpack.c.h.b16 %v3982
      %v4091 = vpack.c.b16 %v4019, %v4019
      %v4092 = vpack.c.b16 %v4020, %v4020
      %v4093 = vpack.c.b16 %v4021, %v4021
      %v4094 = vpack.c.b16 %v4022, %v4022
      %v4095 = vpack.c.b16 %v4023, %v4023
      %v4096 = vpack.c.b16 %v4024, %v4024
      %v4097 = vpack.c.b16 %v4025, %v4025
      %v4098 = vpack.c.b16 %v4026, %v4026
      %v4099 = vpack.c.b16 %v4027, %v4027
      %v4100 = vpack.c.b16 %v4028, %v4028
      %v4101 = vpack.c.b16 %v4029, %v4029
      %v4102 = vpack.c.b16 %v4030, %v4030
      %v4103 = vpack.c.b16 %v4031, %v4031
      %v4104 = vpack.c.b16 %v4032, %v4032
      %v4105 = vpack.c.b16 %v4033, %v4033
      %v4106 = vpack.c.b16 %v4034, %v4034
      %v4107 = vpack.c.b16 %v4035, %v4035
      %v4108 = vpack.c.b16 %v4036, %v4036
      %v4109 = vpack.c.b16 %v4037, %v4037
      %v4110 = vpack.c.b16 %v4038, %v4038
      %v4111 = vpack.c.b16 %v4039, %v4039
      %v4112 = vpack.c.b16 %v4040, %v4040
      %v4113 = vpack.c.b16 %v4041, %v4041
      %v4114 = vpack.c.b16 %v4042, %v4042
      %v4115 = vpack.c.b16 %v4043, %v4043
      %v4116 = vpack.c.b16 %v4044, %v4044
      %v4117 = vpack.c.b16 %v4045, %v4045
      %v4118 = vpack.c.b16 %v4046, %v4046
      %v4119 = vpack.c.b16 %v4047, %v4047
      %v4120 = vpack.c.b16 %v4048, %v4048
      %v4121 = vpack.c.b16 %v4049, %v4049
      %v4122 = vpack.c.b16 %v4050, %v4050
      %v4123 = vpack.c.b16 %v4051, %v4051
      %v4124 = vpack.c.b16 %v4052, %v4052
      %v4125 = vpack.c.b16 %v4053, %v4053
      %v4126 = vpack.c.b16 %v4054, %v4054
      %v4127 = vpack.c.b16 %v4055, %v4055
      %v4128 = vpack.c.b16 %v4056, %v4056
      %v4129 = vpack.c.b16 %v4057, %v4057
      %v4130 = vpack.c.b16 %v4058, %v4058
      %v4131 = vpack.c.b16 %v4059, %v4059
      %v4132 = vpack.c.b16 %v4060, %v4060
      %v4133 = vpack.c.b16 %v4061, %v4061
      %v4134 = vpack.c.b16 %v4062, %v4062
      %v4135 = vpack.c.b16 %v4063, %v4063
      %v4136 = vpack.c.b16 %v4064, %v4064
      %v4137 = vpack.c.b16 %v4065, %v4065
      %v4138 = vpack.c.b16 %v4066, %v4066
      %v4139 = vpack.c.b16 %v4067, %v4067
      %v4140 = vpack.c.b16 %v4068, %v4068
      %v4141 = vpack.c.b16 %v4069, %v4069
      %v4142 = vpack.c.b16 %v4070, %v4070
      %v4143 = vpack.c.b16 %v4071, %v4071
      %v4144 = vpack.c.b16 %v4072, %v4072
      %v4145 = vpack.c.b16 %v4073, %v4073
      %v4146 = vpack.c.b16 %v4074, %v4074
      %v4147 = vpack.c.b16 %v4075, %v4075
      %v4148 = vpack.c.b16 %v4076, %v4076
      %v4149 = vpack.c.b16 %v4077, %v4077
      %v4150 = vpack.c.b16 %v4078, %v4078
      %v4151 = vpack.c.b16 %v4079, %v4079
      %v4152 = vpack.c.b16 %v4080, %v4080
      %v4153 = vpack.c.b16 %v4081, %v4081
      %v4154 = vpack.c.b16 %v4082, %v4082
      %v4155 = vpack.c.b16 %v4083, %v4083
      %v4156 = vpack.c.b16 %v4084, %v4084
      %v4157 = vpack.c.b16 %v4085, %v4085
      %v4158 = vpack.c.b16 %v4086, %v4086
      %v4159 = vpack.c.b16 %v4087, %v4087
      %v4160 = vpack.c.b16 %v4088, %v4088
      %v4161 = vpack.c.b16 %v4089, %v4089
      %v4162 = vpack.c.b16 %v4090, %v4090
      %4235 = vst [vmem:[#allocation2] sm:$0xf] %v4091
      %4236 = vst [vmem:[#allocation2 + $0x4] sm:$0xf] %v4092
      %4237 = vst [vmem:[#allocation2 + $0x8] sm:$0xf] %v4093
      %4238 = vst [vmem:[#allocation2 + $0xc] sm:$0xf] %v4094
      %4239 = vst [vmem:[#allocation2 + $0x10] sm:$0xf] %v4095
      %4240 = vst [vmem:[#allocation2 + $0x14] sm:$0xf] %v4096
      %4241 = vst [vmem:[#allocation2 + $0x18] sm:$0xf] %v4097
      %4242 = vst [vmem:[#allocation2 + $0x1c] sm:$0xf] %v4098
      %4243 = vst [vmem:[#allocation2 + $0x20] sm:$0xf] %v4099
      %4244 = vst [vmem:[#allocation2 + $0x24] sm:$0xf] %v4100
      %4245 = vst [vmem:[#allocation2 + $0x28] sm:$0xf] %v4101
      %4246 = vst [vmem:[#allocation2 + $0x2c] sm:$0xf] %v4102
      %4247 = vst [vmem:[#allocation2 + $0x30] sm:$0xf] %v4103
      %4248 = vst [vmem:[#allocation2 + $0x34] sm:$0xf] %v4104
      %4249 = vst [vmem:[#allocation2 + $0x38] sm:$0xf] %v4105
      %4250 = vst [vmem:[#allocation2 + $0x3c] sm:$0xf] %v4106
      %4251 = vst [vmem:[#allocation2 + $0x40] sm:$0xf] %v4107
      %4252 = vst [vmem:[#allocation2 + $0x44] sm:$0xf] %v4108
      %4253 = vst [vmem:[#allocation2 + $0x48] sm:$0xf] %v4109
      %4254 = vst [vmem:[#allocation2 + $0x4c] sm:$0xf] %v4110
      %4255 = vst [vmem:[#allocation2 + $0x50] sm:$0xf] %v4111
      %4256 = vst [vmem:[#allocation2 + $0x54] sm:$0xf] %v4112
      %4257 = vst [vmem:[#allocation2 + $0x58] sm:$0xf] %v4113
      %4258 = vst [vmem:[#allocation2 + $0x5c] sm:$0xf] %v4114
      %4259 = vst [vmem:[#allocation2 + $0x60] sm:$0xf] %v4115
      %4260 = vst [vmem:[#allocation2 + $0x64] sm:$0xf] %v4116
      %4261 = vst [vmem:[#allocation2 + $0x68] sm:$0xf] %v4117
      %4262 = vst [vmem:[#allocation2 + $0x6c] sm:$0xf] %v4118
      %4263 = vst [vmem:[#allocation2 + $0x70] sm:$0xf] %v4119
      %4264 = vst [vmem:[#allocation2 + $0x74] sm:$0xf] %v4120
      %4265 = vst [vmem:[#allocation2 + $0x78] sm:$0xf] %v4121
      %4266 = vst [vmem:[#allocation2 + $0x7c] sm:$0xf] %v4122
      %4267 = vst [vmem:[#allocation2 + $0x80] sm:$0xf] %v4123
      %4268 = vst [vmem:[#allocation2 + $0x84] sm:$0xf] %v4124
      %4269 = vst [vmem:[#allocation2 + $0x88] sm:$0xf] %v4125
      %4270 = vst [vmem:[#allocation2 + $0x8c] sm:$0xf] %v4126
      %4271 = vst [vmem:[#allocation2 + $0x90] sm:$0xf] %v4127
      %4272 = vst [vmem:[#allocation2 + $0x94] sm:$0xf] %v4128
      %4273 = vst [vmem:[#allocation2 + $0x98] sm:$0xf] %v4129
      %4274 = vst [vmem:[#allocation2 + $0x9c] sm:$0xf] %v4130
      %4275 = vst [vmem:[#allocation2 + $0xa0] sm:$0xf] %v4131
      %4276 = vst [vmem:[#allocation2 + $0xa4] sm:$0xf] %v4132
      %4277 = vst [vmem:[#allocation2 + $0xa8] sm:$0xf] %v4133
      %4278 = vst [vmem:[#allocation2 + $0xac] sm:$0xf] %v4134
      %4279 = vst [vmem:[#allocation2 + $0xb0] sm:$0xf] %v4135
      %4280 = vst [vmem:[#allocation2 + $0xb4] sm:$0xf] %v4136
      %4281 = vst [vmem:[#allocation2 + $0xb8] sm:$0xf] %v4137
      %4282 = vst [vmem:[#allocation2 + $0xbc] sm:$0xf] %v4138
      %4283 = vst [vmem:[#allocation2 + $0xc0] sm:$0xf] %v4139
      %4284 = vst [vmem:[#allocation2 + $0xc4] sm:$0xf] %v4140
      %4285 = vst [vmem:[#allocation2 + $0xc8] sm:$0xf] %v4141
      %4286 = vst [vmem:[#allocation2 + $0xcc] sm:$0xf] %v4142
      %4287 = vst [vmem:[#allocation2 + $0xd0] sm:$0xf] %v4143
      %4288 = vst [vmem:[#allocation2 + $0xd4] sm:$0xf] %v4144
      %4289 = vst [vmem:[#allocation2 + $0xd8] sm:$0xf] %v4145
      %4290 = vst [vmem:[#allocation2 + $0xdc] sm:$0xf] %v4146
      %4291 = vst [vmem:[#allocation2 + $0xe0] sm:$0xf] %v4147
      %4292 = vst [vmem:[#allocation2 + $0xe4] sm:$0xf] %v4148
      %4293 = vst [vmem:[#allocation2 + $0xe8] sm:$0xf] %v4149
      %4294 = vst [vmem:[#allocation2 + $0xec] sm:$0xf] %v4150
      %4295 = vst [vmem:[#allocation2 + $0xf0] sm:$0xf] %v4151
      %4296 = vst [vmem:[#allocation2 + $0xf4] sm:$0xf] %v4152
      %4297 = vst [vmem:[#allocation2 + $0xf8] sm:$0xf] %v4153
      %4298 = vst [vmem:[#allocation2 + $0xfc] sm:$0xf] %v4154
      %4299 = vst [vmem:[#allocation2 + $0x100] sm:$0xf] %v4155
      %4300 = vst [vmem:[#allocation2 + $0x104] sm:$0xf] %v4156
      %4301 = vst [vmem:[#allocation2 + $0x108] sm:$0xf] %v4157
      %4302 = vst [vmem:[#allocation2 + $0x10c] sm:$0xf] %v4158
      %4303 = vst [vmem:[#allocation2 + $0x110] sm:$0xf] %v4159
      %4304 = vst [vmem:[#allocation2 + $0x114] sm:$0xf] %v4160
      %4305 = vst [vmem:[#allocation2 + $0x118] sm:$0xf] %v4161
      %4306 = vst [vmem:[#allocation2 + $0x11c] sm:$0xf] %v4162
      %v4307 = vld [vmem:[#allocation2] sm:$0xf]
      %v4308 = vld [vmem:[#allocation2 + $0x4] sm:$0xf]
      %v4309 = vld [vmem:[#allocation2 + $0x8] sm:$0xf]
      %v4310 = vld [vmem:[#allocation2 + $0xc] sm:$0xf]
      %v4311 = vld [vmem:[#allocation2 + $0x10] sm:$0xf]
      %v4312 = vld [vmem:[#allocation2 + $0x14] sm:$0xf]
      %v4313 = vld [vmem:[#allocation2 + $0x18] sm:$0xf]
      %v4314 = vld [vmem:[#allocation2 + $0x1c] sm:$0xf]
      %v4315 = vld [vmem:[%s3] sm:$0xf]
      %v4316 = vld [vmem:[%s3 + $0x4] sm:$0xf]
      %v4317 = vld [vmem:[%s3 + $0x8] sm:$0xf]
      %v4318 = vld [vmem:[%s3 + $0xc] sm:$0xf]
      %v4319 = vld [vmem:[%s3 + $0x10] sm:$0xf]
      %v4320 = vld [vmem:[%s3 + $0x14] sm:$0xf]
      %v4321 = vld [vmem:[%s3 + $0x18] sm:$0xf]
      %v4322 = vld [vmem:[%s3 + $0x1c] sm:$0xf]
      %v4323 = vld [vmem:[%s3 + $0x20] sm:$0xf]
      %v4324 = vld [vmem:[%s3 + $0x24] sm:$0xf]
      %v4325 = vld [vmem:[%s3 + $0x28] sm:$0xf]
      %v4326 = vld [vmem:[%s3 + $0x2c] sm:$0xf]
      %v4327 = vld [vmem:[%s3 + $0x30] sm:$0xf]
      %v4328 = vld [vmem:[%s3 + $0x34] sm:$0xf]
      %v4329 = vld [vmem:[%s3 + $0x38] sm:$0xf]
      %v4330 = vld [vmem:[%s3 + $0x3c] sm:$0xf]
      %v4331 = vld [vmem:[#allocation2 + $0x20] sm:$0xf]
      %v4332 = vld [vmem:[#allocation2 + $0x24] sm:$0xf]
      %v4333 = vld [vmem:[#allocation2 + $0x28] sm:$0xf]
      %v4334 = vld [vmem:[#allocation2 + $0x2c] sm:$0xf]
      %v4335 = vld [vmem:[#allocation2 + $0x30] sm:$0xf]
      %v4336 = vld [vmem:[#allocation2 + $0x34] sm:$0xf]
      %v4337 = vld [vmem:[#allocation2 + $0x38] sm:$0xf]
      %v4338 = vld [vmem:[#allocation2 + $0x3c] sm:$0xf]
      %s4339 = scalar_lea.vmem %s3, 64
      %v4340 = vld [vmem:[%s4339] sm:$0xf]
      %v4341 = vld [vmem:[%s4339 + $0x4] sm:$0xf]
      %v4342 = vld [vmem:[%s4339 + $0x8] sm:$0xf]
      %v4343 = vld [vmem:[%s4339 + $0xc] sm:$0xf]
      %v4344 = vld [vmem:[%s4339 + $0x10] sm:$0xf]
      %v4345 = vld [vmem:[%s4339 + $0x14] sm:$0xf]
      %v4346 = vld [vmem:[%s4339 + $0x18] sm:$0xf]
      %v4347 = vld [vmem:[%s4339 + $0x1c] sm:$0xf]
      %v4348 = vld [vmem:[%s4339 + $0x20] sm:$0xf]
      %v4349 = vld [vmem:[%s4339 + $0x24] sm:$0xf]
      %v4350 = vld [vmem:[%s4339 + $0x28] sm:$0xf]
      %v4351 = vld [vmem:[%s4339 + $0x2c] sm:$0xf]
      %v4352 = vld [vmem:[%s4339 + $0x30] sm:$0xf]
      %v4353 = vld [vmem:[%s4339 + $0x34] sm:$0xf]
      %v4354 = vld [vmem:[%s4339 + $0x38] sm:$0xf]
      %v4355 = vld [vmem:[%s4339 + $0x3c] sm:$0xf]
      %v4364 = vunpack.c.l.b16 %v4331
      %v4365 = vunpack.c.l.b16 %v4332
      %v4366 = vunpack.c.l.b16 %v4333
      %v4367 = vunpack.c.l.b16 %v4334
      %v4368 = vunpack.c.l.b16 %v4335
      %v4369 = vunpack.c.l.b16 %v4336
      %v4370 = vunpack.c.l.b16 %v4337
      %v4371 = vunpack.c.l.b16 %v4338
      %v4372 = vpack.c.b16 %v4365, %v4364
      %v4373 = vpack.c.b16 %v4367, %v4366
      %v4374 = vpack.c.b16 %v4369, %v4368
      %v4375 = vpack.c.b16 %v4371, %v4370
      %v4396 = vunpack.c.l.b16 %v4340
      %v4397 = vunpack.c.l.b16 %v4341
      %v4398 = vunpack.c.l.b16 %v4342
      %v4399 = vunpack.c.l.b16 %v4343
      %v4400 = vunpack.c.l.b16 %v4344
      %v4401 = vunpack.c.l.b16 %v4345
      %v4402 = vunpack.c.l.b16 %v4346
      %v4403 = vunpack.c.l.b16 %v4347
      %v4404 = vunpack.c.l.b16 %v4348
      %v4405 = vunpack.c.l.b16 %v4349
      %v4406 = vunpack.c.l.b16 %v4350
      %v4407 = vunpack.c.l.b16 %v4351
      %v4408 = vunpack.c.l.b16 %v4352
      %v4409 = vunpack.c.l.b16 %v4353
      %v4410 = vunpack.c.l.b16 %v4354
      %v4411 = vunpack.c.l.b16 %v4355
      %v4412 = vpack.c.b16 %v4397, %v4396
      %v4413 = vpack.c.b16 %v4399, %v4398
      %v4414 = vpack.c.b16 %v4401, %v4400
      %v4415 = vpack.c.b16 %v4403, %v4402
      %v4416 = vpack.c.b16 %v4405, %v4404
      %v4417 = vpack.c.b16 %v4407, %v4406
      %v4418 = vpack.c.b16 %v4409, %v4408
      %v4419 = vpack.c.b16 %v4411, %v4410
      %4428 = vmatprep.subr.bf16.mxu0 0
      %4429 = vmatpush1.bf16.msra.mxu0 %v4419
      %4430 = vmatprep.subr.bf16.mxu0 0
      %4431 = vmatpush1.bf16.msra.mxu0 %v4418
      %4432 = vmatprep.subr.bf16.mxu0 0
      %4433 = vmatpush1.bf16.msra.mxu0 %v4417
      %4434 = vmatprep.subr.bf16.mxu0 0
      %4435 = vmatpush1.bf16.msra.mxu0 %v4416
      %4436 = vmatprep.subr.bf16.mxu0 0
      %4437 = vmatpush1.bf16.msra.mxu0 %v4415
      %4438 = vmatprep.subr.bf16.mxu0 0
      %4439 = vmatpush1.bf16.msra.mxu0 %v4414
      %4440 = vmatprep.subr.bf16.mxu0 0
      %4441 = vmatpush1.bf16.msra.mxu0 %v4413
      %4442 = vmatprep.subr.bf16.mxu0 0
      %4443 = vmatpush1.bf16.msra.mxu0 %v4412
      %4444 = vmatprep.subr.bf16.mxu0 0
      %4445 = vmatpush2.bf16.msra.mxu0 0
      %4446 = vmatprep.subr.bf16.mxu0 0
      %4447 = vmatpush2.bf16.msra.mxu0 0
      %4448 = vmatprep.subr.bf16.mxu0 0
      %4449 = vmatpush2.bf16.msra.mxu0 0
      %4450 = vmatprep.subr.bf16.mxu0 0
      %4451 = vmatpush2.bf16.msra.mxu0 0
      %4452 = vmatprep.subr.bf16.mxu0 0
      %4453 = vmatpush2.bf16.msra.mxu0 0
      %4454 = vmatprep.subr.bf16.mxu0 0
      %4455 = vmatpush2.bf16.msra.mxu0 0
      %4456 = vmatprep.subr.bf16.mxu0 0
      %4457 = vmatpush2.bf16.msra.mxu0 0
      %4458 = vmatprep.subr.bf16.mxu0 0
      %4459 = vmatpush2.bf16.msra.mxu0 0
      %4460 = vmatprep.mubr.bf16.mxu0 0
      %4461 = vmatmul.mubr.bf16.gmra.mxu0 %v4372
      %v4462 = vpop.f32.mrf.mxu0
      %v4463 = vadd.f32 0.0, %v4462
      %v4464 = vpop.f32.mrf.mxu0
      %v4465 = vpop.f32.mrf.mxu0
      %v4466 = vadd.f32 0.0, %v4465
      %v4467 = vpop.f32.mrf.mxu0
      %4468 = vmatprep.mubr.bf16.mxu0 0
      %4469 = vmatmul.mubr.bf16.gmra.mxu0 %v4373
      %v4470 = vpop.f32.mrf.mxu0
      %v4471 = vadd.f32 0.0, %v4470
      %v4472 = vpop.f32.mrf.mxu0
      %v4473 = vpop.f32.mrf.mxu0
      %v4474 = vadd.f32 0.0, %v4473
      %v4475 = vpop.f32.mrf.mxu0
      %4476 = vmatprep.mubr.bf16.mxu0 0
      %4477 = vmatmul.mubr.bf16.gmra.mxu0 %v4374
      %v4478 = vpop.f32.mrf.mxu0
      %v4479 = vadd.f32 0.0, %v4478
      %v4480 = vpop.f32.mrf.mxu0
      %v4481 = vpop.f32.mrf.mxu0
      %v4482 = vadd.f32 0.0, %v4481
      %v4483 = vpop.f32.mrf.mxu0
      %4484 = vmatprep.mubr.bf16.mxu0 0
      %4485 = vmatmul.mubr.bf16.gmra.mxu0 %v4375
      %v4486 = vpop.f32.mrf.mxu0
      %v4487 = vadd.f32 0.0, %v4486
      %v4488 = vpop.f32.mrf.mxu0
      %v4489 = vpop.f32.mrf.mxu0
      %v4490 = vadd.f32 0.0, %v4489
      %v4491 = vpop.f32.mrf.mxu0
      %4492 = vdwg.mxu0
      %v4501 = vunpack.c.l.b16 %v4307
      %v4502 = vunpack.c.l.b16 %v4308
      %v4503 = vunpack.c.l.b16 %v4309
      %v4504 = vunpack.c.l.b16 %v4310
      %v4505 = vunpack.c.l.b16 %v4311
      %v4506 = vunpack.c.l.b16 %v4312
      %v4507 = vunpack.c.l.b16 %v4313
      %v4508 = vunpack.c.l.b16 %v4314
      %v4509 = vpack.c.b16 %v4502, %v4501
      %v4510 = vpack.c.b16 %v4504, %v4503
      %v4511 = vpack.c.b16 %v4506, %v4505
      %v4512 = vpack.c.b16 %v4508, %v4507
      %v4533 = vunpack.c.l.b16 %v4315
      %v4534 = vunpack.c.l.b16 %v4316
      %v4535 = vunpack.c.l.b16 %v4317
      %v4536 = vunpack.c.l.b16 %v4318
      %v4537 = vunpack.c.l.b16 %v4319
      %v4538 = vunpack.c.l.b16 %v4320
      %v4539 = vunpack.c.l.b16 %v4321
      %v4540 = vunpack.c.l.b16 %v4322
      %v4541 = vunpack.c.l.b16 %v4323
      %v4542 = vunpack.c.l.b16 %v4324
      %v4543 = vunpack.c.l.b16 %v4325
      %v4544 = vunpack.c.l.b16 %v4326
      %v4545 = vunpack.c.l.b16 %v4327
      %v4546 = vunpack.c.l.b16 %v4328
      %v4547 = vunpack.c.l.b16 %v4329
      %v4548 = vunpack.c.l.b16 %v4330
      %v4549 = vpack.c.b16 %v4534, %v4533
      %v4550 = vpack.c.b16 %v4536, %v4535
      %v4551 = vpack.c.b16 %v4538, %v4537
      %v4552 = vpack.c.b16 %v4540, %v4539
      %v4553 = vpack.c.b16 %v4542, %v4541
      %v4554 = vpack.c.b16 %v4544, %v4543
      %v4555 = vpack.c.b16 %v4546, %v4545
      %v4556 = vpack.c.b16 %v4548, %v4547
      %4565 = vmatprep.subr.bf16.mxu0 0
      %4566 = vmatpush1.bf16.msra.mxu0 %v4556
      %4567 = vmatprep.subr.bf16.mxu0 0
      %4568 = vmatpush1.bf16.msra.mxu0 %v4555
      %4569 = vmatprep.subr.bf16.mxu0 0
      %4570 = vmatpush1.bf16.msra.mxu0 %v4554
      %4571 = vmatprep.subr.bf16.mxu0 0
      %4572 = vmatpush1.bf16.msra.mxu0 %v4553
      %4573 = vmatprep.subr.bf16.mxu0 0
      %4574 = vmatpush1.bf16.msra.mxu0 %v4552
      %4575 = vmatprep.subr.bf16.mxu0 0
      %4576 = vmatpush1.bf16.msra.mxu0 %v4551
      %4577 = vmatprep.subr.bf16.mxu0 0
      %4578 = vmatpush1.bf16.msra.mxu0 %v4550
      %4579 = vmatprep.subr.bf16.mxu0 0
      %4580 = vmatpush1.bf16.msra.mxu0 %v4549
      %4581 = vmatprep.subr.bf16.mxu0 0
      %4582 = vmatpush2.bf16.msra.mxu0 0
      %4583 = vmatprep.subr.bf16.mxu0 0
      %4584 = vmatpush2.bf16.msra.mxu0 0
      %4585 = vmatprep.subr.bf16.mxu0 0
      %4586 = vmatpush2.bf16.msra.mxu0 0
      %4587 = vmatprep.subr.bf16.mxu0 0
      %4588 = vmatpush2.bf16.msra.mxu0 0
      %4589 = vmatprep.subr.bf16.mxu0 0
      %4590 = vmatpush2.bf16.msra.mxu0 0
      %4591 = vmatprep.subr.bf16.mxu0 0
      %4592 = vmatpush2.bf16.msra.mxu0 0
      %4593 = vmatprep.subr.bf16.mxu0 0
      %4594 = vmatpush2.bf16.msra.mxu0 0
      %4595 = vmatprep.subr.bf16.mxu0 0
      %4596 = vmatpush2.bf16.msra.mxu0 0
      %4597 = vmatprep.mubr.bf16.mxu0 0
      %4598 = vmatmul.mubr.bf16.gmra.mxu0 %v4509
      %v4599 = vpop.f32.mrf.mxu0
      %v4600 = vadd.f32 %v4463, %v4599
      %v4601 = vpop.f32.mrf.mxu0
      %v4602 = vpop.f32.mrf.mxu0
      %v4603 = vadd.f32 %v4466, %v4602
      %v4604 = vpop.f32.mrf.mxu0
      %4605 = vmatprep.mubr.bf16.mxu0 0
      %4606 = vmatmul.mubr.bf16.gmra.mxu0 %v4510
      %v4607 = vpop.f32.mrf.mxu0
      %v4608 = vadd.f32 %v4471, %v4607
      %v4609 = vpop.f32.mrf.mxu0
      %v4610 = vpop.f32.mrf.mxu0
      %v4611 = vadd.f32 %v4474, %v4610
      %v4612 = vpop.f32.mrf.mxu0
      %4613 = vmatprep.mubr.bf16.mxu0 0
      %4614 = vmatmul.mubr.bf16.gmra.mxu0 %v4511
      %v4615 = vpop.f32.mrf.mxu0
      %v4616 = vadd.f32 %v4479, %v4615
      %v4617 = vpop.f32.mrf.mxu0
      %v4618 = vpop.f32.mrf.mxu0
      %v4619 = vadd.f32 %v4482, %v4618
      %v4620 = vpop.f32.mrf.mxu0
      %4621 = vmatprep.mubr.bf16.mxu0 0
      %4622 = vmatmul.mubr.bf16.gmra.mxu0 %v4512
      %v4623 = vpop.f32.mrf.mxu0
      %v4624 = vadd.f32 %v4487, %v4623
      %v4625 = vpop.f32.mrf.mxu0
      %v4626 = vpop.f32.mrf.mxu0
      %v4627 = vadd.f32 %v4490, %v4626
      %v4628 = vpop.f32.mrf.mxu0
      %4629 = vdwg.mxu0
      %v4630 = vld [vmem:[#allocation2 + $0x40] sm:$0xf]
      %v4631 = vld [vmem:[#allocation2 + $0x44] sm:$0xf]
      %v4632 = vld [vmem:[#allocation2 + $0x48] sm:$0xf]
      %v4633 = vld [vmem:[#allocation2 + $0x4c] sm:$0xf]
      %v4634 = vld [vmem:[#allocation2 + $0x50] sm:$0xf]
      %v4635 = vld [vmem:[#allocation2 + $0x54] sm:$0xf]
      %v4636 = vld [vmem:[#allocation2 + $0x58] sm:$0xf]
      %v4637 = vld [vmem:[#allocation2 + $0x5c] sm:$0xf]
      %s4638 = scalar_lea.vmem %s3, 128
      %v4639 = vld [vmem:[%s4638] sm:$0xf]
      %v4640 = vld [vmem:[%s4638 + $0x4] sm:$0xf]
      %v4641 = vld [vmem:[%s4638 + $0x8] sm:$0xf]
      %v4642 = vld [vmem:[%s4638 + $0xc] sm:$0xf]
      %v4643 = vld [vmem:[%s4638 + $0x10] sm:$0xf]
      %v4644 = vld [vmem:[%s4638 + $0x14] sm:$0xf]
      %v4645 = vld [vmem:[%s4638 + $0x18] sm:$0xf]
      %v4646 = vld [vmem:[%s4638 + $0x1c] sm:$0xf]
      %v4647 = vld [vmem:[%s4638 + $0x20] sm:$0xf]
      %v4648 = vld [vmem:[%s4638 + $0x24] sm:$0xf]
      %v4649 = vld [vmem:[%s4638 + $0x28] sm:$0xf]
      %v4650 = vld [vmem:[%s4638 + $0x2c] sm:$0xf]
      %v4651 = vld [vmem:[%s4638 + $0x30] sm:$0xf]
      %v4652 = vld [vmem:[%s4638 + $0x34] sm:$0xf]
      %v4653 = vld [vmem:[%s4638 + $0x38] sm:$0xf]
      %v4654 = vld [vmem:[%s4638 + $0x3c] sm:$0xf]
      %v4663 = vunpack.c.l.b16 %v4630
      %v4664 = vunpack.c.l.b16 %v4631
      %v4665 = vunpack.c.l.b16 %v4632
      %v4666 = vunpack.c.l.b16 %v4633
      %v4667 = vunpack.c.l.b16 %v4634
      %v4668 = vunpack.c.l.b16 %v4635
      %v4669 = vunpack.c.l.b16 %v4636
      %v4670 = vunpack.c.l.b16 %v4637
      %v4671 = vpack.c.b16 %v4664, %v4663
      %v4672 = vpack.c.b16 %v4666, %v4665
      %v4673 = vpack.c.b16 %v4668, %v4667
      %v4674 = vpack.c.b16 %v4670, %v4669
      %v4695 = vunpack.c.l.b16 %v4639
      %v4696 = vunpack.c.l.b16 %v4640
      %v4697 = vunpack.c.l.b16 %v4641
      %v4698 = vunpack.c.l.b16 %v4642
      %v4699 = vunpack.c.l.b16 %v4643
      %v4700 = vunpack.c.l.b16 %v4644
      %v4701 = vunpack.c.l.b16 %v4645
      %v4702 = vunpack.c.l.b16 %v4646
      %v4703 = vunpack.c.l.b16 %v4647
      %v4704 = vunpack.c.l.b16 %v4648
      %v4705 = vunpack.c.l.b16 %v4649
      %v4706 = vunpack.c.l.b16 %v4650
      %v4707 = vunpack.c.l.b16 %v4651
      %v4708 = vunpack.c.l.b16 %v4652
      %v4709 = vunpack.c.l.b16 %v4653
      %v4710 = vunpack.c.l.b16 %v4654
      %v4711 = vpack.c.b16 %v4696, %v4695
      %v4712 = vpack.c.b16 %v4698, %v4697
      %v4713 = vpack.c.b16 %v4700, %v4699
      %v4714 = vpack.c.b16 %v4702, %v4701
      %v4715 = vpack.c.b16 %v4704, %v4703
      %v4716 = vpack.c.b16 %v4706, %v4705
      %v4717 = vpack.c.b16 %v4708, %v4707
      %v4718 = vpack.c.b16 %v4710, %v4709
      %4727 = vmatprep.subr.bf16.mxu0 0
      %4728 = vmatpush1.bf16.msra.mxu0 %v4718
      %4729 = vmatprep.subr.bf16.mxu0 0
      %4730 = vmatpush1.bf16.msra.mxu0 %v4717
      %4731 = vmatprep.subr.bf16.mxu0 0
      %4732 = vmatpush1.bf16.msra.mxu0 %v4716
      %4733 = vmatprep.subr.bf16.mxu0 0
      %4734 = vmatpush1.bf16.msra.mxu0 %v4715
      %4735 = vmatprep.subr.bf16.mxu0 0
      %4736 = vmatpush1.bf16.msra.mxu0 %v4714
      %4737 = vmatprep.subr.bf16.mxu0 0
      %4738 = vmatpush1.bf16.msra.mxu0 %v4713
      %4739 = vmatprep.subr.bf16.mxu0 0
      %4740 = vmatpush1.bf16.msra.mxu0 %v4712
      %4741 = vmatprep.subr.bf16.mxu0 0
      %4742 = vmatpush1.bf16.msra.mxu0 %v4711
      %4743 = vmatprep.subr.bf16.mxu0 0
      %4744 = vmatpush2.bf16.msra.mxu0 0
      %4745 = vmatprep.subr.bf16.mxu0 0
      %4746 = vmatpush2.bf16.msra.mxu0 0
      %4747 = vmatprep.subr.bf16.mxu0 0
      %4748 = vmatpush2.bf16.msra.mxu0 0
      %4749 = vmatprep.subr.bf16.mxu0 0
      %4750 = vmatpush2.bf16.msra.mxu0 0
      %4751 = vmatprep.subr.bf16.mxu0 0
      %4752 = vmatpush2.bf16.msra.mxu0 0
      %4753 = vmatprep.subr.bf16.mxu0 0
      %4754 = vmatpush2.bf16.msra.mxu0 0
      %4755 = vmatprep.subr.bf16.mxu0 0
      %4756 = vmatpush2.bf16.msra.mxu0 0
      %4757 = vmatprep.subr.bf16.mxu0 0
      %4758 = vmatpush2.bf16.msra.mxu0 0
      %4759 = vmatprep.mubr.bf16.mxu0 0
      %4760 = vmatmul.mubr.bf16.gmra.mxu0 %v4671
      %v4761 = vpop.f32.mrf.mxu0
      %v4762 = vadd.f32 0.0, %v4761
      %v4763 = vpop.f32.mrf.mxu0
      %v4764 = vpop.f32.mrf.mxu0
      %v4765 = vadd.f32 0.0, %v4764
      %v4766 = vpop.f32.mrf.mxu0
      %4767 = vmatprep.mubr.bf16.mxu0 0
      %4768 = vmatmul.mubr.bf16.gmra.mxu0 %v4672
      %v4769 = vpop.f32.mrf.mxu0
      %v4770 = vadd.f32 0.0, %v4769
      %v4771 = vpop.f32.mrf.mxu0
      %v4772 = vpop.f32.mrf.mxu0
      %v4773 = vadd.f32 0.0, %v4772
      %v4774 = vpop.f32.mrf.mxu0
      %4775 = vmatprep.mubr.bf16.mxu0 0
      %4776 = vmatmul.mubr.bf16.gmra.mxu0 %v4673
      %v4777 = vpop.f32.mrf.mxu0
      %v4778 = vadd.f32 0.0, %v4777
      %v4779 = vpop.f32.mrf.mxu0
      %v4780 = vpop.f32.mrf.mxu0
      %v4781 = vadd.f32 0.0, %v4780
      %v4782 = vpop.f32.mrf.mxu0
      %4783 = vmatprep.mubr.bf16.mxu0 0
      %4784 = vmatmul.mubr.bf16.gmra.mxu0 %v4674
      %v4785 = vpop.f32.mrf.mxu0
      %v4786 = vadd.f32 0.0, %v4785
      %v4787 = vpop.f32.mrf.mxu0
      %v4788 = vpop.f32.mrf.mxu0
      %v4789 = vadd.f32 0.0, %v4788
      %v4790 = vpop.f32.mrf.mxu0
      %4791 = vdwg.mxu0
      %v4792 = vadd.f32 %v4600, %v4762
      %v4793 = vadd.f32 %v4603, %v4765
      %v4794 = vadd.f32 %v4608, %v4770
      %v4795 = vadd.f32 %v4611, %v4773
      %v4796 = vadd.f32 %v4616, %v4778
      %v4797 = vadd.f32 %v4619, %v4781
      %v4798 = vadd.f32 %v4624, %v4786
      %v4799 = vadd.f32 %v4627, %v4789
      %v4800 = vld [vmem:[#allocation2 + $0x60] sm:$0xf]
      %v4801 = vld [vmem:[#allocation2 + $0x64] sm:$0xf]
      %v4802 = vld [vmem:[#allocation2 + $0x68] sm:$0xf]
      %v4803 = vld [vmem:[#allocation2 + $0x6c] sm:$0xf]
      %v4804 = vld [vmem:[#allocation2 + $0x70] sm:$0xf]
      %v4805 = vld [vmem:[#allocation2 + $0x74] sm:$0xf]
      %v4806 = vld [vmem:[#allocation2 + $0x78] sm:$0xf]
      %v4807 = vld [vmem:[#allocation2 + $0x7c] sm:$0xf]
      %s4808 = scalar_lea.vmem %s3, 192
      %v4809 = vld [vmem:[%s4808] sm:$0xf]
      %v4810 = vld [vmem:[%s4808 + $0x4] sm:$0xf]
      %v4811 = vld [vmem:[%s4808 + $0x8] sm:$0xf]
      %v4812 = vld [vmem:[%s4808 + $0xc] sm:$0xf]
      %v4813 = vld [vmem:[%s4808 + $0x10] sm:$0xf]
      %v4814 = vld [vmem:[%s4808 + $0x14] sm:$0xf]
      %v4815 = vld [vmem:[%s4808 + $0x18] sm:$0xf]
      %v4816 = vld [vmem:[%s4808 + $0x1c] sm:$0xf]
      %v4817 = vld [vmem:[%s4808 + $0x20] sm:$0xf]
      %v4818 = vld [vmem:[%s4808 + $0x24] sm:$0xf]
      %v4819 = vld [vmem:[%s4808 + $0x28] sm:$0xf]
      %v4820 = vld [vmem:[%s4808 + $0x2c] sm:$0xf]
      %v4821 = vld [vmem:[%s4808 + $0x30] sm:$0xf]
      %v4822 = vld [vmem:[%s4808 + $0x34] sm:$0xf]
      %v4823 = vld [vmem:[%s4808 + $0x38] sm:$0xf]
      %v4824 = vld [vmem:[%s4808 + $0x3c] sm:$0xf]
      %v4833 = vunpack.c.l.b16 %v4800
      %v4834 = vunpack.c.l.b16 %v4801
      %v4835 = vunpack.c.l.b16 %v4802
      %v4836 = vunpack.c.l.b16 %v4803
      %v4837 = vunpack.c.l.b16 %v4804
      %v4838 = vunpack.c.l.b16 %v4805
      %v4839 = vunpack.c.l.b16 %v4806
      %v4840 = vunpack.c.l.b16 %v4807
      %v4841 = vpack.c.b16 %v4834, %v4833
      %v4842 = vpack.c.b16 %v4836, %v4835
      %v4843 = vpack.c.b16 %v4838, %v4837
      %v4844 = vpack.c.b16 %v4840, %v4839
      %v4865 = vunpack.c.l.b16 %v4809
      %v4866 = vunpack.c.l.b16 %v4810
      %v4867 = vunpack.c.l.b16 %v4811
      %v4868 = vunpack.c.l.b16 %v4812
      %v4869 = vunpack.c.l.b16 %v4813
      %v4870 = vunpack.c.l.b16 %v4814
      %v4871 = vunpack.c.l.b16 %v4815
      %v4872 = vunpack.c.l.b16 %v4816
      %v4873 = vunpack.c.l.b16 %v4817
      %v4874 = vunpack.c.l.b16 %v4818
      %v4875 = vunpack.c.l.b16 %v4819
      %v4876 = vunpack.c.l.b16 %v4820
      %v4877 = vunpack.c.l.b16 %v4821
      %v4878 = vunpack.c.l.b16 %v4822
      %v4879 = vunpack.c.l.b16 %v4823
      %v4880 = vunpack.c.l.b16 %v4824
      %v4881 = vpack.c.b16 %v4866, %v4865
      %v4882 = vpack.c.b16 %v4868, %v4867
      %v4883 = vpack.c.b16 %v4870, %v4869
      %v4884 = vpack.c.b16 %v4872, %v4871
      %v4885 = vpack.c.b16 %v4874, %v4873
      %v4886 = vpack.c.b16 %v4876, %v4875
      %v4887 = vpack.c.b16 %v4878, %v4877
      %v4888 = vpack.c.b16 %v4880, %v4879
      %4897 = vmatprep.subr.bf16.mxu0 0
      %4898 = vmatpush1.bf16.msra.mxu0 %v4888
      %4899 = vmatprep.subr.bf16.mxu0 0
      %4900 = vmatpush1.bf16.msra.mxu0 %v4887
      %4901 = vmatprep.subr.bf16.mxu0 0
      %4902 = vmatpush1.bf16.msra.mxu0 %v4886
      %4903 = vmatprep.subr.bf16.mxu0 0
      %4904 = vmatpush1.bf16.msra.mxu0 %v4885
      %4905 = vmatprep.subr.bf16.mxu0 0
      %4906 = vmatpush1.bf16.msra.mxu0 %v4884
      %4907 = vmatprep.subr.bf16.mxu0 0
      %4908 = vmatpush1.bf16.msra.mxu0 %v4883
      %4909 = vmatprep.subr.bf16.mxu0 0
      %4910 = vmatpush1.bf16.msra.mxu0 %v4882
      %4911 = vmatprep.subr.bf16.mxu0 0
      %4912 = vmatpush1.bf16.msra.mxu0 %v4881
      %4913 = vmatprep.subr.bf16.mxu0 0
      %4914 = vmatpush2.bf16.msra.mxu0 0
      %4915 = vmatprep.subr.bf16.mxu0 0
      %4916 = vmatpush2.bf16.msra.mxu0 0
      %4917 = vmatprep.subr.bf16.mxu0 0
      %4918 = vmatpush2.bf16.msra.mxu0 0
      %4919 = vmatprep.subr.bf16.mxu0 0
      %4920 = vmatpush2.bf16.msra.mxu0 0
      %4921 = vmatprep.subr.bf16.mxu0 0
      %4922 = vmatpush2.bf16.msra.mxu0 0
      %4923 = vmatprep.subr.bf16.mxu0 0
      %4924 = vmatpush2.bf16.msra.mxu0 0
      %4925 = vmatprep.subr.bf16.mxu0 0
      %4926 = vmatpush2.bf16.msra.mxu0 0
      %4927 = vmatprep.subr.bf16.mxu0 0
      %4928 = vmatpush2.bf16.msra.mxu0 0
      %4929 = vmatprep.mubr.bf16.mxu0 0
      %4930 = vmatmul.mubr.bf16.gmra.mxu0 %v4841
      %v4931 = vpop.f32.mrf.mxu0
      %v4932 = vadd.f32 0.0, %v4931
      %v4933 = vpop.f32.mrf.mxu0
      %v4934 = vpop.f32.mrf.mxu0
      %v4935 = vadd.f32 0.0, %v4934
      %v4936 = vpop.f32.mrf.mxu0
      %4937 = vmatprep.mubr.bf16.mxu0 0
      %4938 = vmatmul.mubr.bf16.gmra.mxu0 %v4842
      %v4939 = vpop.f32.mrf.mxu0
      %v4940 = vadd.f32 0.0, %v4939
      %v4941 = vpop.f32.mrf.mxu0
      %v4942 = vpop.f32.mrf.mxu0
      %v4943 = vadd.f32 0.0, %v4942
      %v4944 = vpop.f32.mrf.mxu0
      %4945 = vmatprep.mubr.bf16.mxu0 0
      %4946 = vmatmul.mubr.bf16.gmra.mxu0 %v4843
      %v4947 = vpop.f32.mrf.mxu0
      %v4948 = vadd.f32 0.0, %v4947
      %v4949 = vpop.f32.mrf.mxu0
      %v4950 = vpop.f32.mrf.mxu0
      %v4951 = vadd.f32 0.0, %v4950
      %v4952 = vpop.f32.mrf.mxu0
      %4953 = vmatprep.mubr.bf16.mxu0 0
      %4954 = vmatmul.mubr.bf16.gmra.mxu0 %v4844
      %v4955 = vpop.f32.mrf.mxu0
      %v4956 = vadd.f32 0.0, %v4955
      %v4957 = vpop.f32.mrf.mxu0
      %v4958 = vpop.f32.mrf.mxu0
      %v4959 = vadd.f32 0.0, %v4958
      %v4960 = vpop.f32.mrf.mxu0
      %4961 = vdwg.mxu0
      %v4962 = vadd.f32 %v4792, %v4932
      %v4963 = vadd.f32 %v4793, %v4935
      %v4964 = vadd.f32 %v4794, %v4940
      %v4965 = vadd.f32 %v4795, %v4943
      %v4966 = vadd.f32 %v4796, %v4948
      %v4967 = vadd.f32 %v4797, %v4951
      %v4968 = vadd.f32 %v4798, %v4956
      %v4969 = vadd.f32 %v4799, %v4959
      %v4970 = vld [vmem:[#allocation2 + $0x80] sm:$0xf]
      %v4971 = vld [vmem:[#allocation2 + $0x84] sm:$0xf]
      %v4972 = vld [vmem:[#allocation2 + $0x88] sm:$0xf]
      %v4973 = vld [vmem:[#allocation2 + $0x8c] sm:$0xf]
      %v4974 = vld [vmem:[#allocation2 + $0x90] sm:$0xf]
      %v4975 = vld [vmem:[#allocation2 + $0x94] sm:$0xf]
      %v4976 = vld [vmem:[#allocation2 + $0x98] sm:$0xf]
      %v4977 = vld [vmem:[#allocation2 + $0x9c] sm:$0xf]
      %s4978 = scalar_lea.vmem %s3, 256
      %v4979 = vld [vmem:[%s4978] sm:$0xf]
      %v4980 = vld [vmem:[%s4978 + $0x4] sm:$0xf]
      %v4981 = vld [vmem:[%s4978 + $0x8] sm:$0xf]
      %v4982 = vld [vmem:[%s4978 + $0xc] sm:$0xf]
      %v4983 = vld [vmem:[%s4978 + $0x10] sm:$0xf]
      %v4984 = vld [vmem:[%s4978 + $0x14] sm:$0xf]
      %v4985 = vld [vmem:[%s4978 + $0x18] sm:$0xf]
      %v4986 = vld [vmem:[%s4978 + $0x1c] sm:$0xf]
      %v4987 = vld [vmem:[%s4978 + $0x20] sm:$0xf]
      %v4988 = vld [vmem:[%s4978 + $0x24] sm:$0xf]
      %v4989 = vld [vmem:[%s4978 + $0x28] sm:$0xf]
      %v4990 = vld [vmem:[%s4978 + $0x2c] sm:$0xf]
      %v4991 = vld [vmem:[%s4978 + $0x30] sm:$0xf]
      %v4992 = vld [vmem:[%s4978 + $0x34] sm:$0xf]
      %v4993 = vld [vmem:[%s4978 + $0x38] sm:$0xf]
      %v4994 = vld [vmem:[%s4978 + $0x3c] sm:$0xf]
      %v5003 = vunpack.c.l.b16 %v4970
      %v5004 = vunpack.c.l.b16 %v4971
      %v5005 = vunpack.c.l.b16 %v4972
      %v5006 = vunpack.c.l.b16 %v4973
      %v5007 = vunpack.c.l.b16 %v4974
      %v5008 = vunpack.c.l.b16 %v4975
      %v5009 = vunpack.c.l.b16 %v4976
      %v5010 = vunpack.c.l.b16 %v4977
      %v5011 = vpack.c.b16 %v5004, %v5003
      %v5012 = vpack.c.b16 %v5006, %v5005
      %v5013 = vpack.c.b16 %v5008, %v5007
      %v5014 = vpack.c.b16 %v5010, %v5009
      %v5035 = vunpack.c.l.b16 %v4979
      %v5036 = vunpack.c.l.b16 %v4980
      %v5037 = vunpack.c.l.b16 %v4981
      %v5038 = vunpack.c.l.b16 %v4982
      %v5039 = vunpack.c.l.b16 %v4983
      %v5040 = vunpack.c.l.b16 %v4984
      %v5041 = vunpack.c.l.b16 %v4985
      %v5042 = vunpack.c.l.b16 %v4986
      %v5043 = vunpack.c.l.b16 %v4987
      %v5044 = vunpack.c.l.b16 %v4988
      %v5045 = vunpack.c.l.b16 %v4989
      %v5046 = vunpack.c.l.b16 %v4990
      %v5047 = vunpack.c.l.b16 %v4991
      %v5048 = vunpack.c.l.b16 %v4992
      %v5049 = vunpack.c.l.b16 %v4993
      %v5050 = vunpack.c.l.b16 %v4994
      %v5051 = vpack.c.b16 %v5036, %v5035
      %v5052 = vpack.c.b16 %v5038, %v5037
      %v5053 = vpack.c.b16 %v5040, %v5039
      %v5054 = vpack.c.b16 %v5042, %v5041
      %v5055 = vpack.c.b16 %v5044, %v5043
      %v5056 = vpack.c.b16 %v5046, %v5045
      %v5057 = vpack.c.b16 %v5048, %v5047
      %v5058 = vpack.c.b16 %v5050, %v5049
      %5067 = vmatprep.subr.bf16.mxu0 0
      %5068 = vmatpush1.bf16.msra.mxu0 %v5058
      %5069 = vmatprep.subr.bf16.mxu0 0
      %5070 = vmatpush1.bf16.msra.mxu0 %v5057
      %5071 = vmatprep.subr.bf16.mxu0 0
      %5072 = vmatpush1.bf16.msra.mxu0 %v5056
      %5073 = vmatprep.subr.bf16.mxu0 0
      %5074 = vmatpush1.bf16.msra.mxu0 %v5055
      %5075 = vmatprep.subr.bf16.mxu0 0
      %5076 = vmatpush1.bf16.msra.mxu0 %v5054
      %5077 = vmatprep.subr.bf16.mxu0 0
      %5078 = vmatpush1.bf16.msra.mxu0 %v5053
      %5079 = vmatprep.subr.bf16.mxu0 0
      %5080 = vmatpush1.bf16.msra.mxu0 %v5052
      %5081 = vmatprep.subr.bf16.mxu0 0
      %5082 = vmatpush1.bf16.msra.mxu0 %v5051
      %5083 = vmatprep.subr.bf16.mxu0 0
      %5084 = vmatpush2.bf16.msra.mxu0 0
      %5085 = vmatprep.subr.bf16.mxu0 0
      %5086 = vmatpush2.bf16.msra.mxu0 0
      %5087 = vmatprep.subr.bf16.mxu0 0
      %5088 = vmatpush2.bf16.msra.mxu0 0
      %5089 = vmatprep.subr.bf16.mxu0 0
      %5090 = vmatpush2.bf16.msra.mxu0 0
      %5091 = vmatprep.subr.bf16.mxu0 0
      %5092 = vmatpush2.bf16.msra.mxu0 0
      %5093 = vmatprep.subr.bf16.mxu0 0
      %5094 = vmatpush2.bf16.msra.mxu0 0
      %5095 = vmatprep.subr.bf16.mxu0 0
      %5096 = vmatpush2.bf16.msra.mxu0 0
      %5097 = vmatprep.subr.bf16.mxu0 0
      %5098 = vmatpush2.bf16.msra.mxu0 0
      %5099 = vmatprep.mubr.bf16.mxu0 0
      %5100 = vmatmul.mubr.bf16.gmra.mxu0 %v5011
      %v5101 = vpop.f32.mrf.mxu0
      %v5102 = vadd.f32 0.0, %v5101
      %v5103 = vpop.f32.mrf.mxu0
      %v5104 = vpop.f32.mrf.mxu0
      %v5105 = vadd.f32 0.0, %v5104
      %v5106 = vpop.f32.mrf.mxu0
      %5107 = vmatprep.mubr.bf16.mxu0 0
      %5108 = vmatmul.mubr.bf16.gmra.mxu0 %v5012
      %v5109 = vpop.f32.mrf.mxu0
      %v5110 = vadd.f32 0.0, %v5109
      %v5111 = vpop.f32.mrf.mxu0
      %v5112 = vpop.f32.mrf.mxu0
      %v5113 = vadd.f32 0.0, %v5112
      %v5114 = vpop.f32.mrf.mxu0
      %5115 = vmatprep.mubr.bf16.mxu0 0
      %5116 = vmatmul.mubr.bf16.gmra.mxu0 %v5013
      %v5117 = vpop.f32.mrf.mxu0
      %v5118 = vadd.f32 0.0, %v5117
      %v5119 = vpop.f32.mrf.mxu0
      %v5120 = vpop.f32.mrf.mxu0
      %v5121 = vadd.f32 0.0, %v5120
      %v5122 = vpop.f32.mrf.mxu0
      %5123 = vmatprep.mubr.bf16.mxu0 0
      %5124 = vmatmul.mubr.bf16.gmra.mxu0 %v5014
      %v5125 = vpop.f32.mrf.mxu0
      %v5126 = vadd.f32 0.0, %v5125
      %v5127 = vpop.f32.mrf.mxu0
      %v5128 = vpop.f32.mrf.mxu0
      %v5129 = vadd.f32 0.0, %v5128
      %v5130 = vpop.f32.mrf.mxu0
      %5131 = vdwg.mxu0
      %v5132 = vadd.f32 %v4962, %v5102
      %v5133 = vadd.f32 %v4963, %v5105
      %v5134 = vadd.f32 %v4964, %v5110
      %v5135 = vadd.f32 %v4965, %v5113
      %v5136 = vadd.f32 %v4966, %v5118
      %v5137 = vadd.f32 %v4967, %v5121
      %v5138 = vadd.f32 %v4968, %v5126
      %v5139 = vadd.f32 %v4969, %v5129
      %v5140 = vld [vmem:[#allocation2 + $0xa0] sm:$0xf]
      %v5141 = vld [vmem:[#allocation2 + $0xa4] sm:$0xf]
      %v5142 = vld [vmem:[#allocation2 + $0xa8] sm:$0xf]
      %v5143 = vld [vmem:[#allocation2 + $0xac] sm:$0xf]
      %v5144 = vld [vmem:[#allocation2 + $0xb0] sm:$0xf]
      %v5145 = vld [vmem:[#allocation2 + $0xb4] sm:$0xf]
      %v5146 = vld [vmem:[#allocation2 + $0xb8] sm:$0xf]
      %v5147 = vld [vmem:[#allocation2 + $0xbc] sm:$0xf]
      %s5148 = scalar_lea.vmem %s3, 320
      %v5149 = vld [vmem:[%s5148] sm:$0xf]
      %v5150 = vld [vmem:[%s5148 + $0x4] sm:$0xf]
      %v5151 = vld [vmem:[%s5148 + $0x8] sm:$0xf]
      %v5152 = vld [vmem:[%s5148 + $0xc] sm:$0xf]
      %v5153 = vld [vmem:[%s5148 + $0x10] sm:$0xf]
      %v5154 = vld [vmem:[%s5148 + $0x14] sm:$0xf]
      %v5155 = vld [vmem:[%s5148 + $0x18] sm:$0xf]
      %v5156 = vld [vmem:[%s5148 + $0x1c] sm:$0xf]
      %v5157 = vld [vmem:[%s5148 + $0x20] sm:$0xf]
      %v5158 = vld [vmem:[%s5148 + $0x24] sm:$0xf]
      %v5159 = vld [vmem:[%s5148 + $0x28] sm:$0xf]
      %v5160 = vld [vmem:[%s5148 + $0x2c] sm:$0xf]
      %v5161 = vld [vmem:[%s5148 + $0x30] sm:$0xf]
      %v5162 = vld [vmem:[%s5148 + $0x34] sm:$0xf]
      %v5163 = vld [vmem:[%s5148 + $0x38] sm:$0xf]
      %v5164 = vld [vmem:[%s5148 + $0x3c] sm:$0xf]
      %v5173 = vunpack.c.l.b16 %v5140
      %v5174 = vunpack.c.l.b16 %v5141
      %v5175 = vunpack.c.l.b16 %v5142
      %v5176 = vunpack.c.l.b16 %v5143
      %v5177 = vunpack.c.l.b16 %v5144
      %v5178 = vunpack.c.l.b16 %v5145
      %v5179 = vunpack.c.l.b16 %v5146
      %v5180 = vunpack.c.l.b16 %v5147
      %v5181 = vpack.c.b16 %v5174, %v5173
      %v5182 = vpack.c.b16 %v5176, %v5175
      %v5183 = vpack.c.b16 %v5178, %v5177
      %v5184 = vpack.c.b16 %v5180, %v5179
      %v5205 = vunpack.c.l.b16 %v5149
      %v5206 = vunpack.c.l.b16 %v5150
      %v5207 = vunpack.c.l.b16 %v5151
      %v5208 = vunpack.c.l.b16 %v5152
      %v5209 = vunpack.c.l.b16 %v5153
      %v5210 = vunpack.c.l.b16 %v5154
      %v5211 = vunpack.c.l.b16 %v5155
      %v5212 = vunpack.c.l.b16 %v5156
      %v5213 = vunpack.c.l.b16 %v5157
      %v5214 = vunpack.c.l.b16 %v5158
      %v5215 = vunpack.c.l.b16 %v5159
      %v5216 = vunpack.c.l.b16 %v5160
      %v5217 = vunpack.c.l.b16 %v5161
      %v5218 = vunpack.c.l.b16 %v5162
      %v5219 = vunpack.c.l.b16 %v5163
      %v5220 = vunpack.c.l.b16 %v5164
      %v5221 = vpack.c.b16 %v5206, %v5205
      %v5222 = vpack.c.b16 %v5208, %v5207
      %v5223 = vpack.c.b16 %v5210, %v5209
      %v5224 = vpack.c.b16 %v5212, %v5211
      %v5225 = vpack.c.b16 %v5214, %v5213
      %v5226 = vpack.c.b16 %v5216, %v5215
      %v5227 = vpack.c.b16 %v5218, %v5217
      %v5228 = vpack.c.b16 %v5220, %v5219
      %5237 = vmatprep.subr.bf16.mxu0 0
      %5238 = vmatpush1.bf16.msra.mxu0 %v5228
      %5239 = vmatprep.subr.bf16.mxu0 0
      %5240 = vmatpush1.bf16.msra.mxu0 %v5227
      %5241 = vmatprep.subr.bf16.mxu0 0
      %5242 = vmatpush1.bf16.msra.mxu0 %v5226
      %5243 = vmatprep.subr.bf16.mxu0 0
      %5244 = vmatpush1.bf16.msra.mxu0 %v5225
      %5245 = vmatprep.subr.bf16.mxu0 0
      %5246 = vmatpush1.bf16.msra.mxu0 %v5224
      %5247 = vmatprep.subr.bf16.mxu0 0
      %5248 = vmatpush1.bf16.msra.mxu0 %v5223
      %5249 = vmatprep.subr.bf16.mxu0 0
      %5250 = vmatpush1.bf16.msra.mxu0 %v5222
      %5251 = vmatprep.subr.bf16.mxu0 0
      %5252 = vmatpush1.bf16.msra.mxu0 %v5221
      %5253 = vmatprep.subr.bf16.mxu0 0
      %5254 = vmatpush2.bf16.msra.mxu0 0
      %5255 = vmatprep.subr.bf16.mxu0 0
      %5256 = vmatpush2.bf16.msra.mxu0 0
      %5257 = vmatprep.subr.bf16.mxu0 0
      %5258 = vmatpush2.bf16.msra.mxu0 0
      %5259 = vmatprep.subr.bf16.mxu0 0
      %5260 = vmatpush2.bf16.msra.mxu0 0
      %5261 = vmatprep.subr.bf16.mxu0 0
      %5262 = vmatpush2.bf16.msra.mxu0 0
      %5263 = vmatprep.subr.bf16.mxu0 0
      %5264 = vmatpush2.bf16.msra.mxu0 0
      %5265 = vmatprep.subr.bf16.mxu0 0
      %5266 = vmatpush2.bf16.msra.mxu0 0
      %5267 = vmatprep.subr.bf16.mxu0 0
      %5268 = vmatpush2.bf16.msra.mxu0 0
      %5269 = vmatprep.mubr.bf16.mxu0 0
      %5270 = vmatmul.mubr.bf16.gmra.mxu0 %v5181
      %v5271 = vpop.f32.mrf.mxu0
      %v5272 = vadd.f32 0.0, %v5271
      %v5273 = vpop.f32.mrf.mxu0
      %v5274 = vpop.f32.mrf.mxu0
      %v5275 = vadd.f32 0.0, %v5274
      %v5276 = vpop.f32.mrf.mxu0
      %5277 = vmatprep.mubr.bf16.mxu0 0
      %5278 = vmatmul.mubr.bf16.gmra.mxu0 %v5182
      %v5279 = vpop.f32.mrf.mxu0
      %v5280 = vadd.f32 0.0, %v5279
      %v5281 = vpop.f32.mrf.mxu0
      %v5282 = vpop.f32.mrf.mxu0
      %v5283 = vadd.f32 0.0, %v5282
      %v5284 = vpop.f32.mrf.mxu0
      %5285 = vmatprep.mubr.bf16.mxu0 0
      %5286 = vmatmul.mubr.bf16.gmra.mxu0 %v5183
      %v5287 = vpop.f32.mrf.mxu0
      %v5288 = vadd.f32 0.0, %v5287
      %v5289 = vpop.f32.mrf.mxu0
      %v5290 = vpop.f32.mrf.mxu0
      %v5291 = vadd.f32 0.0, %v5290
      %v5292 = vpop.f32.mrf.mxu0
      %5293 = vmatprep.mubr.bf16.mxu0 0
      %5294 = vmatmul.mubr.bf16.gmra.mxu0 %v5184
      %v5295 = vpop.f32.mrf.mxu0
      %v5296 = vadd.f32 0.0, %v5295
      %v5297 = vpop.f32.mrf.mxu0
      %v5298 = vpop.f32.mrf.mxu0
      %v5299 = vadd.f32 0.0, %v5298
      %v5300 = vpop.f32.mrf.mxu0
      %5301 = vdwg.mxu0
      %v5302 = vadd.f32 %v5132, %v5272
      %v5303 = vadd.f32 %v5133, %v5275
      %v5304 = vadd.f32 %v5134, %v5280
      %v5305 = vadd.f32 %v5135, %v5283
      %v5306 = vadd.f32 %v5136, %v5288
      %v5307 = vadd.f32 %v5137, %v5291
      %v5308 = vadd.f32 %v5138, %v5296
      %v5309 = vadd.f32 %v5139, %v5299
      %v5310 = vld [vmem:[#allocation2 + $0xc0] sm:$0xf]
      %v5311 = vld [vmem:[#allocation2 + $0xc4] sm:$0xf]
      %v5312 = vld [vmem:[#allocation2 + $0xc8] sm:$0xf]
      %v5313 = vld [vmem:[#allocation2 + $0xcc] sm:$0xf]
      %v5314 = vld [vmem:[#allocation2 + $0xd0] sm:$0xf]
      %v5315 = vld [vmem:[#allocation2 + $0xd4] sm:$0xf]
      %v5316 = vld [vmem:[#allocation2 + $0xd8] sm:$0xf]
      %v5317 = vld [vmem:[#allocation2 + $0xdc] sm:$0xf]
      %s5318 = scalar_lea.vmem %s3, 384
      %v5319 = vld [vmem:[%s5318] sm:$0xf]
      %v5320 = vld [vmem:[%s5318 + $0x4] sm:$0xf]
      %v5321 = vld [vmem:[%s5318 + $0x8] sm:$0xf]
      %v5322 = vld [vmem:[%s5318 + $0xc] sm:$0xf]
      %v5323 = vld [vmem:[%s5318 + $0x10] sm:$0xf]
      %v5324 = vld [vmem:[%s5318 + $0x14] sm:$0xf]
      %v5325 = vld [vmem:[%s5318 + $0x18] sm:$0xf]
      %v5326 = vld [vmem:[%s5318 + $0x1c] sm:$0xf]
      %v5327 = vld [vmem:[%s5318 + $0x20] sm:$0xf]
      %v5328 = vld [vmem:[%s5318 + $0x24] sm:$0xf]
      %v5329 = vld [vmem:[%s5318 + $0x28] sm:$0xf]
      %v5330 = vld [vmem:[%s5318 + $0x2c] sm:$0xf]
      %v5331 = vld [vmem:[%s5318 + $0x30] sm:$0xf]
      %v5332 = vld [vmem:[%s5318 + $0x34] sm:$0xf]
      %v5333 = vld [vmem:[%s5318 + $0x38] sm:$0xf]
      %v5334 = vld [vmem:[%s5318 + $0x3c] sm:$0xf]
      %v5343 = vunpack.c.l.b16 %v5310
      %v5344 = vunpack.c.l.b16 %v5311
      %v5345 = vunpack.c.l.b16 %v5312
      %v5346 = vunpack.c.l.b16 %v5313
      %v5347 = vunpack.c.l.b16 %v5314
      %v5348 = vunpack.c.l.b16 %v5315
      %v5349 = vunpack.c.l.b16 %v5316
      %v5350 = vunpack.c.l.b16 %v5317
      %v5351 = vpack.c.b16 %v5344, %v5343
      %v5352 = vpack.c.b16 %v5346, %v5345
      %v5353 = vpack.c.b16 %v5348, %v5347
      %v5354 = vpack.c.b16 %v5350, %v5349
      %v5375 = vunpack.c.l.b16 %v5319
      %v5376 = vunpack.c.l.b16 %v5320
      %v5377 = vunpack.c.l.b16 %v5321
      %v5378 = vunpack.c.l.b16 %v5322
      %v5379 = vunpack.c.l.b16 %v5323
      %v5380 = vunpack.c.l.b16 %v5324
      %v5381 = vunpack.c.l.b16 %v5325
      %v5382 = vunpack.c.l.b16 %v5326
      %v5383 = vunpack.c.l.b16 %v5327
      %v5384 = vunpack.c.l.b16 %v5328
      %v5385 = vunpack.c.l.b16 %v5329
      %v5386 = vunpack.c.l.b16 %v5330
      %v5387 = vunpack.c.l.b16 %v5331
      %v5388 = vunpack.c.l.b16 %v5332
      %v5389 = vunpack.c.l.b16 %v5333
      %v5390 = vunpack.c.l.b16 %v5334
      %v5391 = vpack.c.b16 %v5376, %v5375
      %v5392 = vpack.c.b16 %v5378, %v5377
      %v5393 = vpack.c.b16 %v5380, %v5379
      %v5394 = vpack.c.b16 %v5382, %v5381
      %v5395 = vpack.c.b16 %v5384, %v5383
      %v5396 = vpack.c.b16 %v5386, %v5385
      %v5397 = vpack.c.b16 %v5388, %v5387
      %v5398 = vpack.c.b16 %v5390, %v5389
      %5407 = vmatprep.subr.bf16.mxu0 0
      %5408 = vmatpush1.bf16.msra.mxu0 %v5398
      %5409 = vmatprep.subr.bf16.mxu0 0
      %5410 = vmatpush1.bf16.msra.mxu0 %v5397
      %5411 = vmatprep.subr.bf16.mxu0 0
      %5412 = vmatpush1.bf16.msra.mxu0 %v5396
      %5413 = vmatprep.subr.bf16.mxu0 0
      %5414 = vmatpush1.bf16.msra.mxu0 %v5395
      %5415 = vmatprep.subr.bf16.mxu0 0
      %5416 = vmatpush1.bf16.msra.mxu0 %v5394
      %5417 = vmatprep.subr.bf16.mxu0 0
      %5418 = vmatpush1.bf16.msra.mxu0 %v5393
      %5419 = vmatprep.subr.bf16.mxu0 0
      %5420 = vmatpush1.bf16.msra.mxu0 %v5392
      %5421 = vmatprep.subr.bf16.mxu0 0
      %5422 = vmatpush1.bf16.msra.mxu0 %v5391
      %5423 = vmatprep.subr.bf16.mxu0 0
      %5424 = vmatpush2.bf16.msra.mxu0 0
      %5425 = vmatprep.subr.bf16.mxu0 0
      %5426 = vmatpush2.bf16.msra.mxu0 0
      %5427 = vmatprep.subr.bf16.mxu0 0
      %5428 = vmatpush2.bf16.msra.mxu0 0
      %5429 = vmatprep.subr.bf16.mxu0 0
      %5430 = vmatpush2.bf16.msra.mxu0 0
      %5431 = vmatprep.subr.bf16.mxu0 0
      %5432 = vmatpush2.bf16.msra.mxu0 0
      %5433 = vmatprep.subr.bf16.mxu0 0
      %5434 = vmatpush2.bf16.msra.mxu0 0
      %5435 = vmatprep.subr.bf16.mxu0 0
      %5436 = vmatpush2.bf16.msra.mxu0 0
      %5437 = vmatprep.subr.bf16.mxu0 0
      %5438 = vmatpush2.bf16.msra.mxu0 0
      %5439 = vmatprep.mubr.bf16.mxu0 0
      %5440 = vmatmul.mubr.bf16.gmra.mxu0 %v5351
      %v5441 = vpop.f32.mrf.mxu0
      %v5442 = vadd.f32 0.0, %v5441
      %v5443 = vpop.f32.mrf.mxu0
      %v5444 = vpop.f32.mrf.mxu0
      %v5445 = vadd.f32 0.0, %v5444
      %v5446 = vpop.f32.mrf.mxu0
      %5447 = vmatprep.mubr.bf16.mxu0 0
      %5448 = vmatmul.mubr.bf16.gmra.mxu0 %v5352
      %v5449 = vpop.f32.mrf.mxu0
      %v5450 = vadd.f32 0.0, %v5449
      %v5451 = vpop.f32.mrf.mxu0
      %v5452 = vpop.f32.mrf.mxu0
      %v5453 = vadd.f32 0.0, %v5452
      %v5454 = vpop.f32.mrf.mxu0
      %5455 = vmatprep.mubr.bf16.mxu0 0
      %5456 = vmatmul.mubr.bf16.gmra.mxu0 %v5353
      %v5457 = vpop.f32.mrf.mxu0
      %v5458 = vadd.f32 0.0, %v5457
      %v5459 = vpop.f32.mrf.mxu0
      %v5460 = vpop.f32.mrf.mxu0
      %v5461 = vadd.f32 0.0, %v5460
      %v5462 = vpop.f32.mrf.mxu0
      %5463 = vmatprep.mubr.bf16.mxu0 0
      %5464 = vmatmul.mubr.bf16.gmra.mxu0 %v5354
      %v5465 = vpop.f32.mrf.mxu0
      %v5466 = vadd.f32 0.0, %v5465
      %v5467 = vpop.f32.mrf.mxu0
      %v5468 = vpop.f32.mrf.mxu0
      %v5469 = vadd.f32 0.0, %v5468
      %v5470 = vpop.f32.mrf.mxu0
      %5471 = vdwg.mxu0
      %v5472 = vadd.f32 %v5302, %v5442
      %v5473 = vadd.f32 %v5303, %v5445
      %v5474 = vadd.f32 %v5304, %v5450
      %v5475 = vadd.f32 %v5305, %v5453
      %v5476 = vadd.f32 %v5306, %v5458
      %v5477 = vadd.f32 %v5307, %v5461
      %v5478 = vadd.f32 %v5308, %v5466
      %v5479 = vadd.f32 %v5309, %v5469
      %v5480 = vld [vmem:[#allocation2 + $0xe0] sm:$0xf]
      %v5481 = vld [vmem:[#allocation2 + $0xe4] sm:$0xf]
      %v5482 = vld [vmem:[#allocation2 + $0xe8] sm:$0xf]
      %v5483 = vld [vmem:[#allocation2 + $0xec] sm:$0xf]
      %v5484 = vld [vmem:[#allocation2 + $0xf0] sm:$0xf]
      %v5485 = vld [vmem:[#allocation2 + $0xf4] sm:$0xf]
      %v5486 = vld [vmem:[#allocation2 + $0xf8] sm:$0xf]
      %v5487 = vld [vmem:[#allocation2 + $0xfc] sm:$0xf]
      %s5488 = scalar_lea.vmem %s3, 448
      %v5489 = vld [vmem:[%s5488] sm:$0xf]
      %v5490 = vld [vmem:[%s5488 + $0x4] sm:$0xf]
      %v5491 = vld [vmem:[%s5488 + $0x8] sm:$0xf]
      %v5492 = vld [vmem:[%s5488 + $0xc] sm:$0xf]
      %v5493 = vld [vmem:[%s5488 + $0x10] sm:$0xf]
      %v5494 = vld [vmem:[%s5488 + $0x14] sm:$0xf]
      %v5495 = vld [vmem:[%s5488 + $0x18] sm:$0xf]
      %v5496 = vld [vmem:[%s5488 + $0x1c] sm:$0xf]
      %v5497 = vld [vmem:[%s5488 + $0x20] sm:$0xf]
      %v5498 = vld [vmem:[%s5488 + $0x24] sm:$0xf]
      %v5499 = vld [vmem:[%s5488 + $0x28] sm:$0xf]
      %v5500 = vld [vmem:[%s5488 + $0x2c] sm:$0xf]
      %v5501 = vld [vmem:[%s5488 + $0x30] sm:$0xf]
      %v5502 = vld [vmem:[%s5488 + $0x34] sm:$0xf]
      %v5503 = vld [vmem:[%s5488 + $0x38] sm:$0xf]
      %v5504 = vld [vmem:[%s5488 + $0x3c] sm:$0xf]
      %v5513 = vunpack.c.l.b16 %v5480
      %v5514 = vunpack.c.l.b16 %v5481
      %v5515 = vunpack.c.l.b16 %v5482
      %v5516 = vunpack.c.l.b16 %v5483
      %v5517 = vunpack.c.l.b16 %v5484
      %v5518 = vunpack.c.l.b16 %v5485
      %v5519 = vunpack.c.l.b16 %v5486
      %v5520 = vunpack.c.l.b16 %v5487
      %v5521 = vpack.c.b16 %v5514, %v5513
      %v5522 = vpack.c.b16 %v5516, %v5515
      %v5523 = vpack.c.b16 %v5518, %v5517
      %v5524 = vpack.c.b16 %v5520, %v5519
      %v5545 = vunpack.c.l.b16 %v5489
      %v5546 = vunpack.c.l.b16 %v5490
      %v5547 = vunpack.c.l.b16 %v5491
      %v5548 = vunpack.c.l.b16 %v5492
      %v5549 = vunpack.c.l.b16 %v5493
      %v5550 = vunpack.c.l.b16 %v5494
      %v5551 = vunpack.c.l.b16 %v5495
      %v5552 = vunpack.c.l.b16 %v5496
      %v5553 = vunpack.c.l.b16 %v5497
      %v5554 = vunpack.c.l.b16 %v5498
      %v5555 = vunpack.c.l.b16 %v5499
      %v5556 = vunpack.c.l.b16 %v5500
      %v5557 = vunpack.c.l.b16 %v5501
      %v5558 = vunpack.c.l.b16 %v5502
      %v5559 = vunpack.c.l.b16 %v5503
      %v5560 = vunpack.c.l.b16 %v5504
      %v5561 = vpack.c.b16 %v5546, %v5545
      %v5562 = vpack.c.b16 %v5548, %v5547
      %v5563 = vpack.c.b16 %v5550, %v5549
      %v5564 = vpack.c.b16 %v5552, %v5551
      %v5565 = vpack.c.b16 %v5554, %v5553
      %v5566 = vpack.c.b16 %v5556, %v5555
      %v5567 = vpack.c.b16 %v5558, %v5557
      %v5568 = vpack.c.b16 %v5560, %v5559
      %5577 = vmatprep.subr.bf16.mxu0 0
      %5578 = vmatpush1.bf16.msra.mxu0 %v5568
      %5579 = vmatprep.subr.bf16.mxu0 0
      %5580 = vmatpush1.bf16.msra.mxu0 %v5567
      %5581 = vmatprep.subr.bf16.mxu0 0
      %5582 = vmatpush1.bf16.msra.mxu0 %v5566
      %5583 = vmatprep.subr.bf16.mxu0 0
      %5584 = vmatpush1.bf16.msra.mxu0 %v5565
      %5585 = vmatprep.subr.bf16.mxu0 0
      %5586 = vmatpush1.bf16.msra.mxu0 %v5564
      %5587 = vmatprep.subr.bf16.mxu0 0
      %5588 = vmatpush1.bf16.msra.mxu0 %v5563
      %5589 = vmatprep.subr.bf16.mxu0 0
      %5590 = vmatpush1.bf16.msra.mxu0 %v5562
      %5591 = vmatprep.subr.bf16.mxu0 0
      %5592 = vmatpush1.bf16.msra.mxu0 %v5561
      %5593 = vmatprep.subr.bf16.mxu0 0
      %5594 = vmatpush2.bf16.msra.mxu0 0
      %5595 = vmatprep.subr.bf16.mxu0 0
      %5596 = vmatpush2.bf16.msra.mxu0 0
      %5597 = vmatprep.subr.bf16.mxu0 0
      %5598 = vmatpush2.bf16.msra.mxu0 0
      %5599 = vmatprep.subr.bf16.mxu0 0
      %5600 = vmatpush2.bf16.msra.mxu0 0
      %5601 = vmatprep.subr.bf16.mxu0 0
      %5602 = vmatpush2.bf16.msra.mxu0 0
      %5603 = vmatprep.subr.bf16.mxu0 0
      %5604 = vmatpush2.bf16.msra.mxu0 0
      %5605 = vmatprep.subr.bf16.mxu0 0
      %5606 = vmatpush2.bf16.msra.mxu0 0
      %5607 = vmatprep.subr.bf16.mxu0 0
      %5608 = vmatpush2.bf16.msra.mxu0 0
      %5609 = vmatprep.mubr.bf16.mxu0 0
      %5610 = vmatmul.mubr.bf16.gmra.mxu0 %v5521
      %v5611 = vpop.f32.mrf.mxu0
      %v5612 = vadd.f32 0.0, %v5611
      %v5613 = vpop.f32.mrf.mxu0
      %v5614 = vpop.f32.mrf.mxu0
      %v5615 = vadd.f32 0.0, %v5614
      %v5616 = vpop.f32.mrf.mxu0
      %5617 = vmatprep.mubr.bf16.mxu0 0
      %5618 = vmatmul.mubr.bf16.gmra.mxu0 %v5522
      %v5619 = vpop.f32.mrf.mxu0
      %v5620 = vadd.f32 0.0, %v5619
      %v5621 = vpop.f32.mrf.mxu0
      %v5622 = vpop.f32.mrf.mxu0
      %v5623 = vadd.f32 0.0, %v5622
      %v5624 = vpop.f32.mrf.mxu0
      %5625 = vmatprep.mubr.bf16.mxu0 0
      %5626 = vmatmul.mubr.bf16.gmra.mxu0 %v5523
      %v5627 = vpop.f32.mrf.mxu0
      %v5628 = vadd.f32 0.0, %v5627
      %v5629 = vpop.f32.mrf.mxu0
      %v5630 = vpop.f32.mrf.mxu0
      %v5631 = vadd.f32 0.0, %v5630
      %v5632 = vpop.f32.mrf.mxu0
      %5633 = vmatprep.mubr.bf16.mxu0 0
      %5634 = vmatmul.mubr.bf16.gmra.mxu0 %v5524
      %v5635 = vpop.f32.mrf.mxu0
      %v5636 = vadd.f32 0.0, %v5635
      %v5637 = vpop.f32.mrf.mxu0
      %v5638 = vpop.f32.mrf.mxu0
      %v5639 = vadd.f32 0.0, %v5638
      %v5640 = vpop.f32.mrf.mxu0
      %5641 = vdwg.mxu0
      %v5642 = vadd.f32 %v5472, %v5612
      %v5643 = vadd.f32 %v5473, %v5615
      %v5644 = vadd.f32 %v5474, %v5620
      %v5645 = vadd.f32 %v5475, %v5623
      %v5646 = vadd.f32 %v5476, %v5628
      %v5647 = vadd.f32 %v5477, %v5631
      %v5648 = vadd.f32 %v5478, %v5636
      %v5649 = vadd.f32 %v5479, %v5639
      %v5650 = vld [vmem:[#allocation2 + $0x100] sm:$0xf]
      %v5651 = vld [vmem:[#allocation2 + $0x104] sm:$0xf]
      %v5652 = vld [vmem:[#allocation2 + $0x108] sm:$0xf]
      %v5653 = vld [vmem:[#allocation2 + $0x10c] sm:$0xf]
      %v5654 = vld [vmem:[#allocation2 + $0x110] sm:$0xf]
      %v5655 = vld [vmem:[#allocation2 + $0x114] sm:$0xf]
      %v5656 = vld [vmem:[#allocation2 + $0x118] sm:$0xf]
      %v5657 = vld [vmem:[#allocation2 + $0x11c] sm:$0xf]
      %s5658 = scalar_lea.vmem %s3, 512
      %v5659 = vld [vmem:[%s5658] sm:$0xf]
      %v5660 = vld [vmem:[%s5658 + $0x4] sm:$0xf]
      %v5661 = vld [vmem:[%s5658 + $0x8] sm:$0xf]
      %v5662 = vld [vmem:[%s5658 + $0xc] sm:$0xf]
      %v5663 = vld [vmem:[%s5658 + $0x10] sm:$0xf]
      %v5664 = vld [vmem:[%s5658 + $0x14] sm:$0xf]
      %v5665 = vld [vmem:[%s5658 + $0x18] sm:$0xf]
      %v5666 = vld [vmem:[%s5658 + $0x1c] sm:$0xf]
      %v5667 = vld [vmem:[%s5658 + $0x20] sm:$0xf]
      %v5668 = vld [vmem:[%s5658 + $0x24] sm:$0xf]
      %v5669 = vld [vmem:[%s5658 + $0x28] sm:$0xf]
      %v5670 = vld [vmem:[%s5658 + $0x2c] sm:$0xf]
      %v5671 = vld [vmem:[%s5658 + $0x30] sm:$0xf]
      %v5672 = vld [vmem:[%s5658 + $0x34] sm:$0xf]
      %v5673 = vld [vmem:[%s5658 + $0x38] sm:$0xf]
      %v5674 = vld [vmem:[%s5658 + $0x3c] sm:$0xf]
      %v5683 = vunpack.c.l.b16 %v5650
      %v5684 = vunpack.c.l.b16 %v5651
      %v5685 = vunpack.c.l.b16 %v5652
      %v5686 = vunpack.c.l.b16 %v5653
      %v5687 = vunpack.c.l.b16 %v5654
      %v5688 = vunpack.c.l.b16 %v5655
      %v5689 = vunpack.c.l.b16 %v5656
      %v5690 = vunpack.c.l.b16 %v5657
      %v5691 = vpack.c.b16 %v5684, %v5683
      %v5692 = vpack.c.b16 %v5686, %v5685
      %v5693 = vpack.c.b16 %v5688, %v5687
      %v5694 = vpack.c.b16 %v5690, %v5689
      %v5715 = vunpack.c.l.b16 %v5659
      %v5716 = vunpack.c.l.b16 %v5660
      %v5717 = vunpack.c.l.b16 %v5661
      %v5718 = vunpack.c.l.b16 %v5662
      %v5719 = vunpack.c.l.b16 %v5663
      %v5720 = vunpack.c.l.b16 %v5664
      %v5721 = vunpack.c.l.b16 %v5665
      %v5722 = vunpack.c.l.b16 %v5666
      %v5723 = vunpack.c.l.b16 %v5667
      %v5724 = vunpack.c.l.b16 %v5668
      %v5725 = vunpack.c.l.b16 %v5669
      %v5726 = vunpack.c.l.b16 %v5670
      %v5727 = vunpack.c.l.b16 %v5671
      %v5728 = vunpack.c.l.b16 %v5672
      %v5729 = vunpack.c.l.b16 %v5673
      %v5730 = vunpack.c.l.b16 %v5674
      %v5731 = vpack.c.b16 %v5716, %v5715
      %v5732 = vpack.c.b16 %v5718, %v5717
      %v5733 = vpack.c.b16 %v5720, %v5719
      %v5734 = vpack.c.b16 %v5722, %v5721
      %v5735 = vpack.c.b16 %v5724, %v5723
      %v5736 = vpack.c.b16 %v5726, %v5725
      %v5737 = vpack.c.b16 %v5728, %v5727
      %v5738 = vpack.c.b16 %v5730, %v5729
      %5747 = vmatprep.subr.bf16.mxu0 0
      %5748 = vmatpush1.bf16.msra.mxu0 %v5738
      %5749 = vmatprep.subr.bf16.mxu0 0
      %5750 = vmatpush1.bf16.msra.mxu0 %v5737
      %5751 = vmatprep.subr.bf16.mxu0 0
      %5752 = vmatpush1.bf16.msra.mxu0 %v5736
      %5753 = vmatprep.subr.bf16.mxu0 0
      %5754 = vmatpush1.bf16.msra.mxu0 %v5735
      %5755 = vmatprep.subr.bf16.mxu0 0
      %5756 = vmatpush1.bf16.msra.mxu0 %v5734
      %5757 = vmatprep.subr.bf16.mxu0 0
      %5758 = vmatpush1.bf16.msra.mxu0 %v5733
      %5759 = vmatprep.subr.bf16.mxu0 0
      %5760 = vmatpush1.bf16.msra.mxu0 %v5732
      %5761 = vmatprep.subr.bf16.mxu0 0
      %5762 = vmatpush1.bf16.msra.mxu0 %v5731
      %5763 = vmatprep.subr.bf16.mxu0 0
      %5764 = vmatpush2.bf16.msra.mxu0 0
      %5765 = vmatprep.subr.bf16.mxu0 0
      %5766 = vmatpush2.bf16.msra.mxu0 0
      %5767 = vmatprep.subr.bf16.mxu0 0
      %5768 = vmatpush2.bf16.msra.mxu0 0
      %5769 = vmatprep.subr.bf16.mxu0 0
      %5770 = vmatpush2.bf16.msra.mxu0 0
      %5771 = vmatprep.subr.bf16.mxu0 0
      %5772 = vmatpush2.bf16.msra.mxu0 0
      %5773 = vmatprep.subr.bf16.mxu0 0
      %5774 = vmatpush2.bf16.msra.mxu0 0
      %5775 = vmatprep.subr.bf16.mxu0 0
      %5776 = vmatpush2.bf16.msra.mxu0 0
      %5777 = vmatprep.subr.bf16.mxu0 0
      %5778 = vmatpush2.bf16.msra.mxu0 0
      %5779 = vmatprep.mubr.bf16.mxu0 0
      %5780 = vmatmul.mubr.bf16.gmra.mxu0 %v5691
      %v5781 = vpop.f32.mrf.mxu0
      %v5782 = vadd.f32 0.0, %v5781
      %v5783 = vpop.f32.mrf.mxu0
      %v5784 = vpop.f32.mrf.mxu0
      %v5785 = vadd.f32 0.0, %v5784
      %v5786 = vpop.f32.mrf.mxu0
      %5787 = vmatprep.mubr.bf16.mxu0 0
      %5788 = vmatmul.mubr.bf16.gmra.mxu0 %v5692
      %v5789 = vpop.f32.mrf.mxu0
      %v5790 = vadd.f32 0.0, %v5789
      %v5791 = vpop.f32.mrf.mxu0
      %v5792 = vpop.f32.mrf.mxu0
      %v5793 = vadd.f32 0.0, %v5792
      %v5794 = vpop.f32.mrf.mxu0
      %5795 = vmatprep.mubr.bf16.mxu0 0
      %5796 = vmatmul.mubr.bf16.gmra.mxu0 %v5693
      %v5797 = vpop.f32.mrf.mxu0
      %v5798 = vadd.f32 0.0, %v5797
      %v5799 = vpop.f32.mrf.mxu0
      %v5800 = vpop.f32.mrf.mxu0
      %v5801 = vadd.f32 0.0, %v5800
      %v5802 = vpop.f32.mrf.mxu0
      %5803 = vmatprep.mubr.bf16.mxu0 0
      %5804 = vmatmul.mubr.bf16.gmra.mxu0 %v5694
      %v5805 = vpop.f32.mrf.mxu0
      %v5806 = vadd.f32 0.0, %v5805
      %v5807 = vpop.f32.mrf.mxu0
      %v5808 = vpop.f32.mrf.mxu0
      %v5809 = vadd.f32 0.0, %v5808
      %v5810 = vpop.f32.mrf.mxu0
      %5811 = vdwg.mxu0
      %v5812 = vadd.f32 %v5642, %v5782
      %v5813 = vadd.f32 %v5643, %v5785
      %v5814 = vadd.f32 %v5644, %v5790
      %v5815 = vadd.f32 %v5645, %v5793
      %v5816 = vadd.f32 %v5646, %v5798
      %v5817 = vadd.f32 %v5647, %v5801
      %v5818 = vadd.f32 %v5648, %v5806
      %v5819 = vadd.f32 %v5649, %v5809
      %v5820 = vpack.c.bf16 %v5813, %v5812
      %v5821 = vpack.c.bf16 %v5815, %v5814
      %v5822 = vpack.c.bf16 %v5817, %v5816
      %v5823 = vpack.c.bf16 %v5819, %v5818
      %v5828 = vunpack.c.l.b16 %v5820
      %v5829 = vunpack.c.h.b16 %v5820
      %v5830 = vunpack.c.l.b16 %v5821
      %v5831 = vunpack.c.h.b16 %v5821
      %v5832 = vunpack.c.l.b16 %v5822
      %v5833 = vunpack.c.h.b16 %v5822
      %v5834 = vunpack.c.l.b16 %v5823
      %v5835 = vunpack.c.h.b16 %v5823
      %v5836 = vpack.c.b16 %v5828, %v5828
      %v5837 = vpack.c.b16 %v5829, %v5829
      %v5838 = vpack.c.b16 %v5830, %v5830
      %v5839 = vpack.c.b16 %v5831, %v5831
      %v5840 = vpack.c.b16 %v5832, %v5832
      %v5841 = vpack.c.b16 %v5833, %v5833
      %v5842 = vpack.c.b16 %v5834, %v5834
      %v5843 = vpack.c.b16 %v5835, %v5835
      %5852 = vst [vmem:[%s237] sm:$0xf] %v5836
      %5853 = vst [vmem:[%s237 + $0x4] sm:$0xf] %v5837
      %5854 = vst [vmem:[%s237 + $0x8] sm:$0xf] %v5838
      %5855 = vst [vmem:[%s237 + $0xc] sm:$0xf] %v5839
      %5856 = vst [vmem:[%s237 + $0x10] sm:$0xf] %v5840
      %5857 = vst [vmem:[%s237 + $0x14] sm:$0xf] %v5841
      %5858 = vst [vmem:[%s237 + $0x18] sm:$0xf] %v5842
      %5859 = vst [vmem:[%s237 + $0x1c] sm:$0xf] %v5843
      %p5860 = scmp.lt.s32.totalorder %s17, 1
      %s5861 = scalar_select %p5860, %s17, 1
      %s5862 = smul.addr %s5861, 16
      %s5863 = smul.addr %s5862, 4
      %s5864 = scalar_lea.vmem %s4, %s5863
      %p5865 = scmp.lt.s32.totalorder %s17, 1
      %s5866 = scalar_select %p5865, %s17, 1
      %s5867 = smul.addr %s5866, 8
      %s5868 = smul.addr %s5867, 4
      %s5869 = scalar_lea.vmem %s5, %s5868
      // Predicated region
      $region37: #{_forward_impl.1} parent=35 // pred_check
        %p5870 = pneg %p124
      $region38: #{_forward_impl.1} parent=35 // pred_check_branch
        %5872 = sbr.rel (%p5870) target = $region40
      $region39: #{_forward_impl.1} parent=35 // pred_region
        _
      $region40: #{_forward_impl.1} parent=35 // pred_fallthru
        _
      // Predicated region
      $region41: #{_forward_impl.1} parent=35 // pred_check
        %p5873 = pneg %p150
      $region42: #{_forward_impl.1} parent=35 // pred_check_branch
        %5875 = sbr.rel (%p5873) target = $region44
      $region43: #{_forward_impl.1} parent=35 // pred_region
        _
      $region44: #{_forward_impl.1} parent=35 // pred_fallthru
        _
    $region36: #{_forward_impl.1} parent=5 // pred_fallthru
      _
    %p5876 = scmp.le.s32.totalorder 2, %s12
    // Predicated region
    $region45: #{_forward_impl.1} parent=5 // pred_check
      %p5877 = pneg %p5876
    $region46: #{_forward_impl.1} parent=5 // pred_check_branch
      %5879 = sbr.rel (%p5877) target = $region48
    $region47: #{_forward_impl.1} parent=5 // pred_region
      %s5880 = ssub.s32 %s12, 2
      // Predicated region
      $region49: #{_forward_impl.1} parent=47 // pred_check
        %p5881 = pneg %p130
      $region50: #{_forward_impl.1} parent=47 // pred_check_branch
        %5883 = sbr.rel (%p5881) target = $region52
      $region51: #{_forward_impl.1} parent=47 // pred_region
        %p5884 = scmp.lt.s32.totalorder %s18, 1
        %s5885 = scalar_select %p5884, %s18, 1
        %s5886 = smul.addr %s5885, 16
        %s5887 = smul.addr %s5886, 4
        %s5888 = scalar_lea.vmem %s4, %s5887
      $region52: #{_forward_impl.1} parent=47 // pred_fallthru
        _
      // Predicated region
      $region53: #{_forward_impl.1} parent=47 // pred_check
        %p5889 = pneg %p156
      $region54: #{_forward_impl.1} parent=47 // pred_check_branch
        %5891 = sbr.rel (%p5889) target = $region56
      $region55: #{_forward_impl.1} parent=47 // pred_region
        %p5892 = scmp.lt.s32.totalorder %s18, 1
        %s5893 = scalar_select %p5892, %s18, 1
        %s5894 = smul.addr %s5893, 8
        %s5895 = smul.addr %s5894, 4
        %s5896 = scalar_lea.vmem %s5, %s5895
      $region56: #{_forward_impl.1} parent=47 // pred_fallthru
        _
    $region48: #{_forward_impl.1} parent=5 // pred_fallthru
      _
  $region6: #{_forward_impl.1} parent=0 // loop_footer
    %s16 = sadd.s32 1, %s12
  $region7: #{_forward_impl.1} parent=0 // loop_footer_branch
    %11 = sbr.rel target = $region3
  $region8: #{_forward_impl.1} parent=0 // loop_exit
    _

</llo_original>
